<compile_context>
chip_gen: v6e
topology: v6e:2x2x1
jax: 0.10.0
libtpu: 0.0.40
codegen_flags: <defaults>
</compile_context>

<pallas_src>
import functools

import jax
import jax.numpy as jnp
from jax.experimental import pallas as pl
from jax.experimental.pallas import tpu as pltpu


def _round_up(a, m):
    return (a + m - 1) // m * m


# ---------------------------------------------------------------------------
# fused kernel: point_filter + masked chamfer + axis_reg + boundary_reg
# ---------------------------------------------------------------------------
def _mesh_loss_fused_kernel(scal_ref,             # SMEM (8,) [v0,v1,v2,lo,hi,pmin,pmax,myv]
                            x_ref, xn_ref,        # (TN,3) sampled pts / normals (tiled over N)
                            yt_ref, ynt_ref,      # (3,Mp) echo pts / normals (transposed, resident)
                            w_ref, r_ref,         # (Vp,3) warped / rigid verts (resident)
                            o_ref,                # (8,128) scalar results
                            dmin_sc,              # (1,Mp)  running per-column min dist
                            cosy_sc,              # (1,Mp)  cos at running min
                            acc_sc,               # (8,128) scalar accumulators (cx,nx,cnt)
                            *, n_real, m_real, tile_n):
    f32 = jnp.float32
    BIG = f32(1e30)
    INIT = f32(3e37)
    EPS2 = f32(1e-12)

    nb = pl.program_id(0)
    last = pl.num_programs(0) - 1

    v0 = scal_ref[0]
    v1 = scal_ref[1]
    v2 = scal_ref[2]
    lo = scal_ref[3]
    hi = scal_ref[4]
    pmin = scal_ref[5]
    pmax = scal_ref[6]
    myv = scal_ref[7]

    @pl.when(nb == 0)
    def _():
        dmin_sc[...] = jnp.full(dmin_sc.shape, INIT, f32)
        cosy_sc[...] = jnp.zeros(cosy_sc.shape, f32)
        acc_sc[...] = jnp.zeros(acc_sc.shape, f32)

    x = x_ref[...]                                     # (TN, 3)
    xn = xn_ref[...]                                   # (TN, 3)
    yt = yt_ref[...]                                   # (3, Mp)
    ynt = ynt_ref[...]                                 # (3, Mp)
    tn = x.shape[0]
    mp = yt.shape[1]

    x0, x1, x2 = x[:, 0:1], x[:, 1:2], x[:, 2:3]       # (TN, 1)
    y0, y1, y2 = yt[0:1, :], yt[1:2, :], yt[2:3, :]    # (1, Mp)

    col_ids = jax.lax.broadcasted_iota(jnp.int32, (1, mp), 1)
    col_valid = (col_ids < m_real).astype(f32)          # real echo cols
    col_pen = (f32(1.0) - col_valid) * BIG
    row_ids = jax.lax.broadcasted_iota(jnp.int32, (tn, 1), 0) + nb * tile_n
    row_valid = (row_ids < n_real).astype(f32)           # real sample rows

    # ---- point_filter: projection about echo centroid, range from SMEM ----
    p1 = x0 * v0 + x1 * v1 + x2 * v2 - myv                # (TN, 1)
    keep = jnp.logical_and(p1 >= pmin, p1 <= pmax).astype(f32) * row_valid
    row_pen = (f32(1.0) - keep) * BIG                     # (TN, 1)

    # ---- pairwise sq. distances: VPU broadcast FMAs (no MXU for K=3) ----
    xx = x0 * x0 + x1 * x1 + x2 * x2                      # (TN, 1)
    yy = y0 * y0 + y1 * y1 + y2 * y2                      # (1, Mp)
    xy = x0 * y0 + x1 * y1 + x2 * y2                      # (TN, Mp)
    d2m = jnp.maximum(xx + yy - f32(2.0) * xy, f32(0.0)) + row_pen + col_pen

    # ---- absolute normal cosines ----
    xn0, xn1, xn2 = xn[:, 0:1], xn[:, 1:2], xn[:, 2:3]
    yn0, yn1, yn2 = ynt[0:1, :], ynt[1:2, :], ynt[2:3, :]
    inv_xn = jax.lax.rsqrt(jnp.maximum(xn0 * xn0 + xn1 * xn1 + xn2 * xn2, EPS2))
    inv_yn = jax.lax.rsqrt(jnp.maximum(yn0 * yn0 + yn1 * yn1 + yn2 * yn2, EPS2))
    cos = jnp.abs(xn0 * yn0 + xn1 * yn1 + xn2 * yn2) * inv_xn * inv_yn   # (TN, Mp)

    # ---- x -> y direction (filtered x rows of this tile only) ----
    dmin_x = jnp.min(d2m, axis=1, keepdims=True)          # (TN, 1)
    hit_x = (d2m <= dmin_x).astype(f32)
    cos_x = (jnp.sum(hit_x * cos, axis=1, keepdims=True)
             * pl.reciprocal(jnp.sum(hit_x, axis=1, keepdims=True), approx=True))
    cx_p = jnp.sum(keep * dmin_x, axis=(0, 1), keepdims=True)        # (1,1)
    nx_p = jnp.sum(keep * (f32(1.0) - cos_x), axis=(0, 1), keepdims=True)
    cnt_p = jnp.sum(keep, axis=(0, 1), keepdims=True)

    # ---- y -> x direction: online per-column min across N tiles ----
    tmin = jnp.min(d2m, axis=0, keepdims=True)            # (1, Mp)
    hit_y = (d2m <= tmin).astype(f32)
    cos_ty = (jnp.sum(hit_y * cos, axis=0, keepdims=True)
              * pl.reciprocal(jnp.sum(hit_y, axis=0, keepdims=True), approx=True))
    prev_min = dmin_sc[...]
    better = tmin < prev_min
    dmin_sc[...] = jnp.where(better, tmin, prev_min)
    cosy_sc[...] = jnp.where(better, cos_ty, cosy_sc[...])

    def row(s):
        return jnp.broadcast_to(jnp.reshape(s, (1, 1)).astype(f32), (1, 128))

    zero = jnp.zeros((1, 128), f32)
    acc_sc[...] += jnp.concatenate(
        [row(cx_p), row(nx_p), row(cnt_p), zero, zero, zero, zero, zero], axis=0)

    # ---- finalize: y->x reduction + axis / boundary reg, one dense store ----
    @pl.when(nb == last)
    def _():
        cy = jnp.sum(col_valid * dmin_sc[...], axis=(0, 1), keepdims=True)
        ny = jnp.sum(col_valid * (f32(1.0) - cosy_sc[...]), axis=(0, 1),
                     keepdims=True)

        w = w_ref[...]                                     # (Vp, 3)
        r = r_ref[...]                                     # (Vp, 3)
        pr = r[:, 0:1] * v0 + r[:, 1:2] * v1 + r[:, 2:3] * v2
        pw = w[:, 0:1] * v0 + w[:, 1:2] * v1 + w[:, 2:3] * v2
        dpr = pw - pr
        axis_reg = jnp.sum(dpr * dpr, axis=(0, 1), keepdims=True)

        bmask = jnp.logical_or(pr <= lo, pr >= hi).astype(f32)   # (Vp, 1)
        dv = r - w                                                # pad rows are 0
        sq = jnp.sum(dv * dv, axis=1, keepdims=True)
        bound = jnp.sum(bmask * sq, axis=(0, 1), keepdims=True)

        acc = acc_sc[...]
        o_ref[...] = jnp.concatenate(
            [acc[0:1, :],        # cx
             row(cy),
             acc[1:2, :],        # nx
             row(ny),
             acc[2:3, :],        # cnt
             row(axis_reg),
             row(bound),
             zero], axis=0)


# ---------------------------------------------------------------------------
# Mesh_loss.forward equivalent
# ---------------------------------------------------------------------------
def mesh_loss_forward(mesh_verts, sample_pcd, sample_norm, echo_pcd,
                      pcd_vector, aligned_pcd_norm, rigid_static_verts,
                      loss_list=('loss_p0', 'loss_n1', 'axis_reg_loss',
                                 'bound_reg_loss'),
                      percentage=0.05, tile_n=256):
    f32 = jnp.float32
    v = pcd_vector[0:1, :].astype(f32)                 # == pcd_vector[0,:].view(1,3)
    N = sample_pcd.shape[0]
    M = echo_pcd.shape[0]
    V = mesh_verts.shape[0]

    if N <= tile_n:
        Np = _round_up(N, 8)
        TN = Np
    else:
        Np = _round_up(N, tile_n)
        TN = tile_n
    Mp = _round_up(M, 128)
    Vp = _round_up(V, 8)
    grid_n = Np // TN

    # point_filter thresholds: grid-invariant, computed once in the wrapper
    echo = echo_pcd.astype(f32)
    my = jnp.mean(echo, axis=0)                        # (3,) echo centroid
    myv = jnp.dot(my, v[0])
    proj2 = echo @ v[0] - myv                          # (M,)
    pmin = jnp.min(proj2)
    pmax = jnp.max(proj2)

    # boundary thresholds: k-th smallest / largest projection via top_k
    k = int(V * percentage)
    projr = rigid_static_verts.astype(f32) @ v[0]      # (V,)
    if k > 0:
        lo = -jax.lax.top_k(-projr, k)[0][k - 1]
        hi = jax.lax.top_k(projr, k)[0][k - 1]
    else:
        # torch's sorted_indices[-0:] selects every vertex; replicate that quirk
        lo = jnp.array(-jnp.inf, f32)
        hi = jnp.array(-jnp.inf, f32)

    scal = jnp.stack([v[0, 0], v[0, 1], v[0, 2],
                      lo, hi, pmin, pmax, myv]).astype(f32)          # (8,)

    def pad_rows(a, rows):
        return jnp.pad(a.astype(f32), ((0, rows - a.shape[0]), (0, 0)))

    x_p = pad_rows(sample_pcd, Np)                       # (Np, 3)
    xn_p = pad_rows(sample_norm, Np)                     # (Np, 3)
    yt = pad_rows(echo_pcd, Mp).T                        # (3, Mp) lane-dense
    ynt = pad_rows(aligned_pcd_norm, Mp).T               # (3, Mp)
    w_p = pad_rows(mesh_verts, Vp)                       # (Vp, 3)
    r_p = pad_rows(rigid_static_verts, Vp)               # (Vp, 3)

    kernel = functools.partial(_mesh_loss_fused_kernel,
                               n_real=N, m_real=M, tile_n=TN)
    out = pl.pallas_call(
        kernel,
        out_shape=jax.ShapeDtypeStruct((8, 128), f32),
        grid_spec=pltpu.PrefetchScalarGridSpec(
            num_scalar_prefetch=1,
            grid=(grid_n,),
            in_specs=[
                pl.BlockSpec((TN, 3), lambda i, s: (i, 0)),   # x tile
                pl.BlockSpec((TN, 3), lambda i, s: (i, 0)),   # xn tile
                pl.BlockSpec((3, Mp), lambda i, s: (0, 0)),   # echo (resident)
                pl.BlockSpec((3, Mp), lambda i, s: (0, 0)),   # echo normals
                pl.BlockSpec((Vp, 3), lambda i, s: (0, 0)),   # warped verts
                pl.BlockSpec((Vp, 3), lambda i, s: (0, 0)),   # rigid verts
            ],
            out_specs=pl.BlockSpec((8, 128), lambda i, s: (0, 0)),
            scratch_shapes=[
                pltpu.VMEM((1, Mp), jnp.float32),   # running per-col min dist
                pltpu.VMEM((1, Mp), jnp.float32),   # cos at running min
                pltpu.VMEM((8, 128), jnp.float32),  # scalar accumulators
            ],
        ),
        compiler_params=pltpu.CompilerParams(
            dimension_semantics=("arbitrary",)),
    )(scal, x_p, xn_p, yt, ynt, w_p, r_p)

    cx, cy = out[0, 0], out[1, 0]
    nx, ny = out[2, 0], out[3, 0]
    cnt = out[4, 0]
    axis_reg, bound_reg = out[5, 0], out[6, 0]

    m_f = jnp.float32(M)
    safe = cnt > 0.5                                     # empty filtered set guard
    denom = jnp.maximum(cnt, 1.0)
    loss_p0 = jnp.where(safe, cx / denom + cy / m_f, 0.0)
    loss_n1 = jnp.where(safe, nx / denom + ny / m_f, 0.0)
    loss_p0 = jnp.where(jnp.isnan(loss_p0), 0.0, loss_p0)
    loss_n1 = jnp.where(jnp.isnan(loss_n1), 0.0, loss_n1)

    loss_dict = {}
    if 'loss_p0' in loss_list:
        loss_dict['loss_p0'] = loss_p0
    if 'loss_n1' in loss_list:
        loss_dict['loss_n1'] = loss_n1
    # TODO(synk): loss_laplacian / loss_edge / loss_consistency / loss_rigid
    # require cot-Laplacian weights and face connectivity; not modelled here.
    if 'axis_reg_loss' in loss_list:
        loss_dict['axis_reg_loss'] = axis_reg
    if 'bound_reg_loss' in loss_list:
        loss_dict['bound_reg_loss'] = bound_reg
    return loss_dict


if __name__ == "__main__":
    key = jax.random.PRNGKey(0)
    kV, kS, kSn, kE, kEn, kVec, kR = jax.random.split(key, 7)

    V, N, M = 128, 320, 96                               # verts, sampled pts, echo pts
    mesh_verts = jax.random.normal(kV, (V, 3), jnp.float32)
    sample_pcd = jax.random.normal(kS, (N, 3), jnp.float32)
    sample_norm = jax.random.normal(kSn, (N, 3), jnp.float32)
    sample_norm = sample_norm / jnp.linalg.norm(sample_norm, axis=1, keepdims=True)
    echo_pcd = jax.random.normal(kE, (M, 3), jnp.float32)
    aligned_pcd_norm = jax.random.normal(kEn, (M, 3), jnp.float32)
    aligned_pcd_norm = aligned_pcd_norm / jnp.linalg.norm(aligned_pcd_norm, axis=1,
                                                          keepdims=True)
    pcd_vector = jax.random.normal(kVec, (1, 3), jnp.float32)
    pcd_vector = pcd_vector / jnp.linalg.norm(pcd_vector)
    rigid_static_verts = mesh_verts + 0.01 * jax.random.normal(kR, (V, 3), jnp.float32)

    # tile_n=128 so the demo exercises the multi-tile (grid > 1) online path
    fwd = jax.jit(lambda *a: mesh_loss_forward(*a, tile_n=128))
    out = fwd(mesh_verts, sample_pcd, sample_norm, echo_pcd,
              pcd_vector, aligned_pcd_norm, rigid_static_verts)
    jax.block_until_ready(out)
    print("KERNEL_OK")
</pallas_src>

<mosaic_0001>
module attributes {stable_mosaic.version = 11 : i64} {
  func.func @_mesh_loss_fused_kernel(%arg0: i32, %arg1: memref<8xf32, #tpu.memory_space<smem>>, %arg2: memref<128x3xf32, #tpu.memory_space<vmem>>, %arg3: memref<128x3xf32, #tpu.memory_space<vmem>>, %arg4: memref<3x128xf32, #tpu.memory_space<vmem>>, %arg5: memref<3x128xf32, #tpu.memory_space<vmem>>, %arg6: memref<128x3xf32, #tpu.memory_space<vmem>>, %arg7: memref<128x3xf32, #tpu.memory_space<vmem>>, %arg8: memref<8x128xf32, #tpu.memory_space<vmem>>, %arg9: memref<1x128xf32, #tpu.memory_space<vmem>>, %arg10: memref<1x128xf32, #tpu.memory_space<vmem>>, %arg11: memref<8x128xf32, #tpu.memory_space<vmem>>) attributes {dimension_semantics = [#tpu.dimension_semantics<arbitrary>], iteration_bounds = array<i64: 3>, scalar_prefetch = 1 : i64, scratch_operands = 3 : i64, tpu.core_type = #tpu.core_type<tc>, window_params = [{transform_indices = @transform_0, window_bounds = array<i64: 128, 3>}, {transform_indices = @transform_1, window_bounds = array<i64: 128, 3>}, {pipeline_mode = #tpu.pipeline_mode<synchronous>, transform_indices = @transform_2, window_bounds = array<i64: 3, 128>}, {pipeline_mode = #tpu.pipeline_mode<synchronous>, transform_indices = @transform_3, window_bounds = array<i64: 3, 128>}, {pipeline_mode = #tpu.pipeline_mode<synchronous>, transform_indices = @transform_4, window_bounds = array<i64: 128, 3>}, {pipeline_mode = #tpu.pipeline_mode<synchronous>, transform_indices = @transform_5, window_bounds = array<i64: 128, 3>}, {pipeline_mode = #tpu.pipeline_mode<synchronous>, transform_indices = @transform_6, window_bounds = array<i64: 8, 128>}]} {
    %c0 = arith.constant 0 : index
    %0 = memref.load %arg1[%c0] : memref<8xf32, #tpu.memory_space<smem>>
    %c1 = arith.constant 1 : index
    %1 = memref.load %arg1[%c1] : memref<8xf32, #tpu.memory_space<smem>>
    %c2 = arith.constant 2 : index
    %2 = memref.load %arg1[%c2] : memref<8xf32, #tpu.memory_space<smem>>
    %c3 = arith.constant 3 : index
    %3 = memref.load %arg1[%c3] : memref<8xf32, #tpu.memory_space<smem>>
    %c4 = arith.constant 4 : index
    %4 = memref.load %arg1[%c4] : memref<8xf32, #tpu.memory_space<smem>>
    %c5 = arith.constant 5 : index
    %5 = memref.load %arg1[%c5] : memref<8xf32, #tpu.memory_space<smem>>
    %c6 = arith.constant 6 : index
    %6 = memref.load %arg1[%c6] : memref<8xf32, #tpu.memory_space<smem>>
    %c7 = arith.constant 7 : index
    %7 = memref.load %arg1[%c7] : memref<8xf32, #tpu.memory_space<smem>>
    %c0_i32 = arith.constant 0 : i32
    %8 = arith.cmpi eq, %arg0, %c0_i32 : i32
    %9 = arith.extui %8 : i1 to i32
    %cst = arith.constant 3.000000e+37 : f32
    %c0_i32_0 = arith.constant 0 : i32
    %10 = arith.cmpi ne, %9, %c0_i32_0 : i32
    scf.if %10 {
      %197 = vector.broadcast %cst : f32 to vector<1x128xf32>
      %c0_41 = arith.constant 0 : index
      %c0_42 = arith.constant 0 : index
      %198 = vector.load %arg9[%c0_41, %c0_42] : memref<1x128xf32, #tpu.memory_space<vmem>>, vector<1x128xf32>
      tpu.vector_store %arg9[%c0_41, %c0_42], %197 {strides = array<i32>} : memref<1x128xf32, #tpu.memory_space<vmem>>, vector<1x128xf32>,
      %cst_43 = arith.constant 0.000000e+00 : f32
      %199 = vector.broadcast %cst_43 : f32 to vector<1x128xf32>
      %c0_44 = arith.constant 0 : index
      %c0_45 = arith.constant 0 : index
      %200 = vector.load %arg10[%c0_44, %c0_45] : memref<1x128xf32, #tpu.memory_space<vmem>>, vector<1x128xf32>
      tpu.vector_store %arg10[%c0_44, %c0_45], %199 {strides = array<i32>} : memref<1x128xf32, #tpu.memory_space<vmem>>, vector<1x128xf32>,
      %cst_46 = arith.constant 0.000000e+00 : f32
      %201 = vector.broadcast %cst_46 : f32 to vector<8x128xf32>
      %c0_47 = arith.constant 0 : index
      %c0_48 = arith.constant 0 : index
      %202 = vector.load %arg11[%c0_47, %c0_48] : memref<8x128xf32, #tpu.memory_space<vmem>>, vector<8x128xf32>
      tpu.vector_store %arg11[%c0_47, %c0_48], %201 {strides = array<i32>} : memref<8x128xf32, #tpu.memory_space<vmem>>, vector<8x128xf32>,
    } else {
    }
    %c0_1 = arith.constant 0 : index
    %c0_2 = arith.constant 0 : index
    %11 = vector.load %arg2[%c0_1, %c0_2] : memref<128x3xf32, #tpu.memory_space<vmem>>, vector<128x3xf32>
    %c0_3 = arith.constant 0 : index
    %c0_4 = arith.constant 0 : index
    %12 = vector.load %arg3[%c0_3, %c0_4] : memref<128x3xf32, #tpu.memory_space<vmem>>, vector<128x3xf32>
    %c0_5 = arith.constant 0 : index
    %c0_6 = arith.constant 0 : index
    %13 = vector.load %arg4[%c0_5, %c0_6] : memref<3x128xf32, #tpu.memory_space<vmem>>, vector<3x128xf32>
    %c0_7 = arith.constant 0 : index
    %c0_8 = arith.constant 0 : index
    %14 = vector.load %arg5[%c0_7, %c0_8] : memref<3x128xf32, #tpu.memory_space<vmem>>, vector<3x128xf32>
    %15 = vector.extract_strided_slice %11 {offsets = [0, 0], sizes = [128, 1], strides = [1, 1]} : vector<128x3xf32> to vector<128x1xf32>
    %16 = vector.extract_strided_slice %11 {offsets = [0, 1], sizes = [128, 1], strides = [1, 1]} : vector<128x3xf32> to vector<128x1xf32>
    %17 = vector.extract_strided_slice %11 {offsets = [0, 2], sizes = [128, 1], strides = [1, 1]} : vector<128x3xf32> to vector<128x1xf32>
    %18 = vector.extract_strided_slice %13 {offsets = [0, 0], sizes = [1, 128], strides = [1, 1]} : vector<3x128xf32> to vector<1x128xf32>
    %19 = vector.extract_strided_slice %13 {offsets = [1, 0], sizes = [1, 128], strides = [1, 1]} : vector<3x128xf32> to vector<1x128xf32>
    %20 = vector.extract_strided_slice %13 {offsets = [2, 0], sizes = [1, 128], strides = [1, 1]} : vector<3x128xf32> to vector<1x128xf32>
    %21 = tpu.iota {dimensions = array<i32: 1>} : vector<1x128xi32>
    %c96_i32 = arith.constant 96 : i32
    %22 = vector.broadcast %c96_i32 : i32 to vector<1x128xi32>
    %23 = arith.cmpi slt, %21, %22 : vector<1x128xi32>
    %24 = arith.extui %23 : vector<1x128xi1> to vector<1x128xi32>
    %25 = arith.sitofp %24 : vector<1x128xi32> to vector<1x128xf32>
    %cst_9 = arith.constant 1.000000e+00 : f32
    %26 = vector.broadcast %cst_9 : f32 to vector<1x128xf32>
    %27 = arith.subf %26, %25 : vector<1x128xf32>
    %cst_10 = arith.constant 1.000000e+30 : f32
    %28 = vector.broadcast %cst_10 : f32 to vector<1x128xf32>
    %29 = arith.mulf %27, %28 : vector<1x128xf32>
    %30 = tpu.iota {dimensions = array<i32: 0>} : vector<128x1xi32>
    %c128_i32 = arith.constant 128 : i32
    %31 = arith.muli %arg0, %c128_i32 : i32
    %32 = vector.broadcast %31 : i32 to vector<128x1xi32>
    %33 = arith.addi %30, %32 : vector<128x1xi32>
    %c320_i32 = arith.constant 320 : i32
    %34 = vector.broadcast %c320_i32 : i32 to vector<128x1xi32>
    %35 = arith.cmpi slt, %33, %34 : vector<128x1xi32>
    %36 = arith.extui %35 : vector<128x1xi1> to vector<128x1xi32>
    %37 = arith.sitofp %36 : vector<128x1xi32> to vector<128x1xf32>
    %38 = vector.broadcast %0 : f32 to vector<128x1xf32>
    %39 = arith.mulf %15, %38 : vector<128x1xf32>
    %40 = vector.broadcast %1 : f32 to vector<128x1xf32>
    %41 = arith.mulf %16, %40 : vector<128x1xf32>
    %42 = arith.addf %39, %41 : vector<128x1xf32>
    %43 = vector.broadcast %2 : f32 to vector<128x1xf32>
    %44 = arith.mulf %17, %43 : vector<128x1xf32>
    %45 = arith.addf %42, %44 : vector<128x1xf32>
    %46 = vector.broadcast %7 : f32 to vector<128x1xf32>
    %47 = arith.subf %45, %46 : vector<128x1xf32>
    %48 = vector.broadcast %5 : f32 to vector<128x1xf32>
    %49 = arith.cmpf oge, %47, %48 : vector<128x1xf32>
    %50 = vector.broadcast %6 : f32 to vector<128x1xf32>
    %51 = arith.cmpf ole, %47, %50 : vector<128x1xf32>
    %52 = arith.andi %49, %51 : vector<128x1xi1>
    %53 = arith.extui %52 : vector<128x1xi1> to vector<128x1xi32>
    %54 = arith.sitofp %53 : vector<128x1xi32> to vector<128x1xf32>
    %55 = arith.mulf %54, %37 : vector<128x1xf32>
    %cst_11 = arith.constant 1.000000e+00 : f32
    %56 = vector.broadcast %cst_11 : f32 to vector<128x1xf32>
    %57 = arith.subf %56, %55 : vector<128x1xf32>
    %cst_12 = arith.constant 1.000000e+30 : f32
    %58 = vector.broadcast %cst_12 : f32 to vector<128x1xf32>
    %59 = arith.mulf %57, %58 : vector<128x1xf32>
    %60 = arith.mulf %15, %15 : vector<128x1xf32>
    %61 = arith.mulf %16, %16 : vector<128x1xf32>
    %62 = arith.addf %60, %61 : vector<128x1xf32>
    %63 = arith.mulf %17, %17 : vector<128x1xf32>
    %64 = arith.addf %62, %63 : vector<128x1xf32>
    %65 = arith.mulf %18, %18 : vector<1x128xf32>
    %66 = arith.mulf %19, %19 : vector<1x128xf32>
    %67 = arith.addf %65, %66 : vector<1x128xf32>
    %68 = arith.mulf %20, %20 : vector<1x128xf32>
    %69 = arith.addf %67, %68 : vector<1x128xf32>
    %70 = vector.broadcast %15 : vector<128x1xf32> to vector<128x128xf32>
    %71 = vector.broadcast %18 : vector<1x128xf32> to vector<128x128xf32>
    %72 = arith.mulf %70, %71 : vector<128x128xf32>
    %73 = vector.broadcast %16 : vector<128x1xf32> to vector<128x128xf32>
    %74 = vector.broadcast %19 : vector<1x128xf32> to vector<128x128xf32>
    %75 = arith.mulf %73, %74 : vector<128x128xf32>
    %76 = arith.addf %72, %75 : vector<128x128xf32>
    %77 = vector.broadcast %17 : vector<128x1xf32> to vector<128x128xf32>
    %78 = vector.broadcast %20 : vector<1x128xf32> to vector<128x128xf32>
    %79 = arith.mulf %77, %78 : vector<128x128xf32>
    %80 = arith.addf %76, %79 : vector<128x128xf32>
    %81 = vector.broadcast %64 : vector<128x1xf32> to vector<128x128xf32>
    %82 = vector.broadcast %69 : vector<1x128xf32> to vector<128x128xf32>
    %83 = arith.addf %81, %82 : vector<128x128xf32>
    %cst_13 = arith.constant 2.000000e+00 : f32
    %84 = vector.broadcast %cst_13 : f32 to vector<128x128xf32>
    %85 = arith.mulf %84, %80 : vector<128x128xf32>
    %86 = arith.subf %83, %85 : vector<128x128xf32>
    %cst_14 = arith.constant 0.000000e+00 : f32
    %87 = vector.broadcast %cst_14 : f32 to vector<128x128xf32>
    %88 = arith.maximumf %86, %87 : vector<128x128xf32>
    %89 = vector.broadcast %59 : vector<128x1xf32> to vector<128x128xf32>
    %90 = arith.addf %88, %89 : vector<128x128xf32>
    %91 = vector.broadcast %29 : vector<1x128xf32> to vector<128x128xf32>
    %92 = arith.addf %90, %91 : vector<128x128xf32>
    %93 = vector.extract_strided_slice %12 {offsets = [0, 0], sizes = [128, 1], strides = [1, 1]} : vector<128x3xf32> to vector<128x1xf32>
    %94 = vector.extract_strided_slice %12 {offsets = [0, 1], sizes = [128, 1], strides = [1, 1]} : vector<128x3xf32> to vector<128x1xf32>
    %95 = vector.extract_strided_slice %12 {offsets = [0, 2], sizes = [128, 1], strides = [1, 1]} : vector<128x3xf32> to vector<128x1xf32>
    %96 = vector.extract_strided_slice %14 {offsets = [0, 0], sizes = [1, 128], strides = [1, 1]} : vector<3x128xf32> to vector<1x128xf32>
    %97 = vector.extract_strided_slice %14 {offsets = [1, 0], sizes = [1, 128], strides = [1, 1]} : vector<3x128xf32> to vector<1x128xf32>
    %98 = vector.extract_strided_slice %14 {offsets = [2, 0], sizes = [1, 128], strides = [1, 1]} : vector<3x128xf32> to vector<1x128xf32>
    %99 = arith.mulf %93, %93 : vector<128x1xf32>
    %100 = arith.mulf %94, %94 : vector<128x1xf32>
    %101 = arith.addf %99, %100 : vector<128x1xf32>
    %102 = arith.mulf %95, %95 : vector<128x1xf32>
    %103 = arith.addf %101, %102 : vector<128x1xf32>
    %cst_15 = arith.constant 9.99999996E-13 : f32
    %104 = vector.broadcast %cst_15 : f32 to vector<128x1xf32>
    %105 = arith.maximumf %103, %104 : vector<128x1xf32>
    %106 = math.rsqrt %105 : vector<128x1xf32>
    %107 = arith.mulf %96, %96 : vector<1x128xf32>
    %108 = arith.mulf %97, %97 : vector<1x128xf32>
    %109 = arith.addf %107, %108 : vector<1x128xf32>
    %110 = arith.mulf %98, %98 : vector<1x128xf32>
    %111 = arith.addf %109, %110 : vector<1x128xf32>
    %cst_16 = arith.constant 9.99999996E-13 : f32
    %112 = vector.broadcast %cst_16 : f32 to vector<1x128xf32>
    %113 = arith.maximumf %111, %112 : vector<1x128xf32>
    %114 = math.rsqrt %113 : vector<1x128xf32>
    %115 = vector.broadcast %93 : vector<128x1xf32> to vector<128x128xf32>
    %116 = vector.broadcast %96 : vector<1x128xf32> to vector<128x128xf32>
    %117 = arith.mulf %115, %116 : vector<128x128xf32>
    %118 = vector.broadcast %94 : vector<128x1xf32> to vector<128x128xf32>
    %119 = vector.broadcast %97 : vector<1x128xf32> to vector<128x128xf32>
    %120 = arith.mulf %118, %119 : vector<128x128xf32>
    %121 = arith.addf %117, %120 : vector<128x128xf32>
    %122 = vector.broadcast %95 : vector<128x1xf32> to vector<128x128xf32>
    %123 = vector.broadcast %98 : vector<1x128xf32> to vector<128x128xf32>
    %124 = arith.mulf %122, %123 : vector<128x128xf32>
    %125 = arith.addf %121, %124 : vector<128x128xf32>
    %126 = math.absf %125 : vector<128x128xf32>
    %127 = vector.broadcast %106 : vector<128x1xf32> to vector<128x128xf32>
    %128 = arith.mulf %126, %127 : vector<128x128xf32>
    %129 = vector.broadcast %114 : vector<1x128xf32> to vector<128x128xf32>
    %130 = arith.mulf %128, %129 : vector<128x128xf32>
    %cst_17 = arith.constant dense<0x7F800000> : vector<128xf32>
    %131 = vector.multi_reduction <minimumf>, %92, %cst_17 [1] : vector<128x128xf32> to vector<128xf32>
    %132 = vector.shape_cast %131 : vector<128xf32> to vector<128x1xf32>
    %133 = vector.broadcast %132 : vector<128x1xf32> to vector<128x128xf32>
    %134 = arith.cmpf ole, %92, %133 : vector<128x128xf32>
    %135 = arith.extui %134 : vector<128x128xi1> to vector<128x128xi32>
    %136 = arith.sitofp %135 : vector<128x128xi32> to vector<128x128xf32>
    %137 = arith.mulf %136, %130 : vector<128x128xf32>
    %cst_18 = arith.constant dense<0.000000e+00> : vector<128xf32>
    %138 = vector.multi_reduction <add>, %137, %cst_18 [1] : vector<128x128xf32> to vector<128xf32>
    %139 = vector.shape_cast %138 : vector<128xf32> to vector<128x1xf32>
    %cst_19 = arith.constant dense<0.000000e+00> : vector<128xf32>
    %140 = vector.multi_reduction <add>, %136, %cst_19 [1] : vector<128x128xf32> to vector<128xf32>
    %141 = vector.shape_cast %140 : vector<128xf32> to vector<128x1xf32>
    %142 = tpu.reciprocal %141 {approx = true} : vector<128x1xf32> -> vector<128x1xf32>
    %143 = arith.mulf %139, %142 : vector<128x1xf32>
    %144 = arith.mulf %55, %132 : vector<128x1xf32>
    %145 = vector.shape_cast %144 : vector<128x1xf32> to vector<1x128x1xf32>
    %cst_20 = arith.constant dense<0.000000e+00> : vector<1xf32>
    %146 = vector.multi_reduction <add>, %145, %cst_20 [1, 2] : vector<1x128x1xf32> to vector<1xf32>
    %147 = vector.shape_cast %146 : vector<1xf32> to vector<1x1x1xf32>
    %148 = vector.extract %147[0, 0, 0] : f32 from vector<1x1x1xf32>
    %149 = vector.broadcast %148 : f32 to vector<1x1xf32>
    %cst_21 = arith.constant 1.000000e+00 : f32
    %150 = vector.broadcast %cst_21 : f32 to vector<128x1xf32>
    %151 = arith.subf %150, %143 : vector<128x1xf32>
    %152 = arith.mulf %55, %151 : vector<128x1xf32>
    %153 = vector.shape_cast %152 : vector<128x1xf32> to vector<1x128x1xf32>
    %cst_22 = arith.constant dense<0.000000e+00> : vector<1xf32>
    %154 = vector.multi_reduction <add>, %153, %cst_22 [1, 2] : vector<1x128x1xf32> to vector<1xf32>
    %155 = vector.shape_cast %154 : vector<1xf32> to vector<1x1x1xf32>
    %156 = vector.extract %155[0, 0, 0] : f32 from vector<1x1x1xf32>
    %157 = vector.broadcast %156 : f32 to vector<1x1xf32>
    %158 = vector.shape_cast %55 : vector<128x1xf32> to vector<1x128x1xf32>
    %cst_23 = arith.constant dense<0.000000e+00> : vector<1xf32>
    %159 = vector.multi_reduction <add>, %158, %cst_23 [1, 2] : vector<1x128x1xf32> to vector<1xf32>
    %160 = vector.shape_cast %159 : vector<1xf32> to vector<1x1x1xf32>
    %161 = vector.extract %160[0, 0, 0] : f32 from vector<1x1x1xf32>
    %162 = vector.broadcast %161 : f32 to vector<1x1xf32>
    %cst_24 = arith.constant dense<0x7F800000> : vector<128xf32>
    %163 = vector.multi_reduction <minimumf>, %92, %cst_24 [0] : vector<128x128xf32> to vector<128xf32>
    %164 = vector.shape_cast %163 : vector<128xf32> to vector<1x128xf32>
    %165 = vector.broadcast %164 : vector<1x128xf32> to vector<128x128xf32>
    %166 = arith.cmpf ole, %92, %165 : vector<128x128xf32>
    %167 = arith.extui %166 : vector<128x128xi1> to vector<128x128xi32>
    %168 = arith.sitofp %167 : vector<128x128xi32> to vector<128x128xf32>
    %169 = arith.mulf %168, %130 : vector<128x128xf32>
    %cst_25 = arith.constant dense<0.000000e+00> : vector<128xf32>
    %170 = vector.multi_reduction <add>, %169, %cst_25 [0] : vector<128x128xf32> to vector<128xf32>
    %171 = vector.shape_cast %170 : vector<128xf32> to vector<1x128xf32>
    %cst_26 = arith.constant dense<0.000000e+00> : vector<128xf32>
    %172 = vector.multi_reduction <add>, %168, %cst_26 [0] : vector<128x128xf32> to vector<128xf32>
    %173 = vector.shape_cast %172 : vector<128xf32> to vector<1x128xf32>
    %174 = tpu.reciprocal %173 {approx = true} : vector<1x128xf32> -> vector<1x128xf32>
    %175 = arith.mulf %171, %174 : vector<1x128xf32>
    %c0_27 = arith.constant 0 : index
    %c0_28 = arith.constant 0 : index
    %176 = vector.load %arg9[%c0_27, %c0_28] : memref<1x128xf32, #tpu.memory_space<vmem>>, vector<1x128xf32>
    %177 = arith.cmpf olt, %164, %176 : vector<1x128xf32>
    %178 = arith.select %177, %164, %176 : vector<1x128xi1>, vector<1x128xf32>
    %c0_29 = arith.constant 0 : index
    %c0_30 = arith.constant 0 : index
    %179 = vector.load %arg9[%c0_29, %c0_30] : memref<1x128xf32, #tpu.memory_space<vmem>>, vector<1x128xf32>
    tpu.vector_store %arg9[%c0_29, %c0_30], %178 {strides = array<i32>} : memref<1x128xf32, #tpu.memory_space<vmem>>, vector<1x128xf32>,
    %c0_31 = arith.constant 0 : index
    %c0_32 = arith.constant 0 : index
    %180 = vector.load %arg10[%c0_31, %c0_32] : memref<1x128xf32, #tpu.memory_space<vmem>>, vector<1x128xf32>
    %181 = arith.select %177, %175, %180 : vector<1x128xi1>, vector<1x128xf32>
    %c0_33 = arith.constant 0 : index
    %c0_34 = arith.constant 0 : index
    %182 = vector.load %arg10[%c0_33, %c0_34] : memref<1x128xf32, #tpu.memory_space<vmem>>, vector<1x128xf32>
    tpu.vector_store %arg10[%c0_33, %c0_34], %181 {strides = array<i32>} : memref<1x128xf32, #tpu.memory_space<vmem>>, vector<1x128xf32>,
    %cst_35 = arith.constant 0.000000e+00 : f32
    %183 = vector.broadcast %cst_35 : f32 to vector<1x128xf32>
    %c0_36 = arith.constant 0 : index
    %c0_37 = arith.constant 0 : index
    %184 = vector.load %arg11[%c0_36, %c0_37] : memref<8x128xf32, #tpu.memory_space<vmem>>, vector<8x128xf32>
    %185 = vector.shape_cast %149 : vector<1x1xf32> to vector<1x1xf32>
    %186 = vector.broadcast %185 : vector<1x1xf32> to vector<1x128xf32>
    %187 = vector.shape_cast %157 : vector<1x1xf32> to vector<1x1xf32>
    %188 = vector.broadcast %187 : vector<1x1xf32> to vector<1x128xf32>
    %189 = vector.shape_cast %162 : vector<1x1xf32> to vector<1x1xf32>
    %190 = vector.broadcast %189 : vector<1x1xf32> to vector<1x128xf32>
    %191 = tpu.concatenate %186, %188, %190, %183, %183, %183, %183, %183 in 0 : vector<1x128xf32>, vector<1x128xf32>, vector<1x128xf32>, vector<1x128xf32>, vector<1x128xf32>, vector<1x128xf32>, vector<1x128xf32>, vector<1x128xf32> -> vector<8x128xf32>
    %192 = arith.addf %184, %191 : vector<8x128xf32>
    %c0_38 = arith.constant 0 : index
    %c0_39 = arith.constant 0 : index
    %193 = vector.load %arg11[%c0_38, %c0_39] : memref<8x128xf32, #tpu.memory_space<vmem>>, vector<8x128xf32>
    tpu.vector_store %arg11[%c0_38, %c0_39], %192 {strides = array<i32>} : memref<8x128xf32, #tpu.memory_space<vmem>>, vector<8x128xf32>,
    %c2_i32 = arith.constant 2 : i32
    %194 = arith.cmpi eq, %arg0, %c2_i32 : i32
    %195 = arith.extui %194 : i1 to i32
    %c0_i32_40 = arith.constant 0 : i32
    %196 = arith.cmpi ne, %195, %c0_i32_40 : i32
    scf.if %196 {
      %c0_41 = arith.constant 0 : index
      %c0_42 = arith.constant 0 : index
      %197 = vector.load %arg9[%c0_41, %c0_42] : memref<1x128xf32, #tpu.memory_space<vmem>>, vector<1x128xf32>
      %198 = arith.mulf %25, %197 : vector<1x128xf32>
      %199 = vector.shape_cast %198 : vector<1x128xf32> to vector<1x1x128xf32>
      %cst_43 = arith.constant dense<0.000000e+00> : vector<1xf32>
      %200 = vector.multi_reduction <add>, %199, %cst_43 [1, 2] : vector<1x1x128xf32> to vector<1xf32>
      %201 = vector.shape_cast %200 : vector<1xf32> to vector<1x1x1xf32>
      %202 = vector.extract %201[0, 0, 0] : f32 from vector<1x1x1xf32>
      %203 = vector.broadcast %202 : f32 to vector<1x1xf32>
      %c0_44 = arith.constant 0 : index
      %c0_45 = arith.constant 0 : index
      %204 = vector.load %arg10[%c0_44, %c0_45] : memref<1x128xf32, #tpu.memory_space<vmem>>, vector<1x128xf32>
      %cst_46 = arith.constant 1.000000e+00 : f32
      %205 = vector.broadcast %cst_46 : f32 to vector<1x128xf32>
      %206 = arith.subf %205, %204 : vector<1x128xf32>
      %207 = arith.mulf %25, %206 : vector<1x128xf32>
      %208 = vector.shape_cast %207 : vector<1x128xf32> to vector<1x1x128xf32>
      %cst_47 = arith.constant dense<0.000000e+00> : vector<1xf32>
      %209 = vector.multi_reduction <add>, %208, %cst_47 [1, 2] : vector<1x1x128xf32> to vector<1xf32>
      %210 = vector.shape_cast %209 : vector<1xf32> to vector<1x1x1xf32>
      %211 = vector.extract %210[0, 0, 0] : f32 from vector<1x1x1xf32>
      %212 = vector.broadcast %211 : f32 to vector<1x1xf32>
      %c0_48 = arith.constant 0 : index
      %c0_49 = arith.constant 0 : index
      %213 = vector.load %arg6[%c0_48, %c0_49] : memref<128x3xf32, #tpu.memory_space<vmem>>, vector<128x3xf32>
      %c0_50 = arith.constant 0 : index
      %c0_51 = arith.constant 0 : index
      %214 = vector.load %arg7[%c0_50, %c0_51] : memref<128x3xf32, #tpu.memory_space<vmem>>, vector<128x3xf32>
      %215 = vector.extract_strided_slice %214 {offsets = [0, 0], sizes = [128, 1], strides = [1, 1]} : vector<128x3xf32> to vector<128x1xf32>
      %216 = vector.broadcast %0 : f32 to vector<128x1xf32>
      %217 = arith.mulf %215, %216 : vector<128x1xf32>
      %218 = vector.extract_strided_slice %214 {offsets = [0, 1], sizes = [128, 1], strides = [1, 1]} : vector<128x3xf32> to vector<128x1xf32>
      %219 = vector.broadcast %1 : f32 to vector<128x1xf32>
      %220 = arith.mulf %218, %219 : vector<128x1xf32>
      %221 = arith.addf %217, %220 : vector<128x1xf32>
      %222 = vector.extract_strided_slice %214 {offsets = [0, 2], sizes = [128, 1], strides = [1, 1]} : vector<128x3xf32> to vector<128x1xf32>
      %223 = vector.broadcast %2 : f32 to vector<128x1xf32>
      %224 = arith.mulf %222, %223 : vector<128x1xf32>
      %225 = arith.addf %221, %224 : vector<128x1xf32>
      %226 = vector.extract_strided_slice %213 {offsets = [0, 0], sizes = [128, 1], strides = [1, 1]} : vector<128x3xf32> to vector<128x1xf32>
      %227 = vector.broadcast %0 : f32 to vector<128x1xf32>
      %228 = arith.mulf %226, %227 : vector<128x1xf32>
      %229 = vector.extract_strided_slice %213 {offsets = [0, 1], sizes = [128, 1], strides = [1, 1]} : vector<128x3xf32> to vector<128x1xf32>
      %230 = vector.broadcast %1 : f32 to vector<128x1xf32>
      %231 = arith.mulf %229, %230 : vector<128x1xf32>
      %232 = arith.addf %228, %231 : vector<128x1xf32>
      %233 = vector.extract_strided_slice %213 {offsets = [0, 2], sizes = [128, 1], strides = [1, 1]} : vector<128x3xf32> to vector<128x1xf32>
      %234 = vector.broadcast %2 : f32 to vector<128x1xf32>
      %235 = arith.mulf %233, %234 : vector<128x1xf32>
      %236 = arith.addf %232, %235 : vector<128x1xf32>
      %237 = arith.subf %236, %225 : vector<128x1xf32>
      %238 = arith.mulf %237, %237 : vector<128x1xf32>
      %239 = vector.shape_cast %238 : vector<128x1xf32> to vector<1x128x1xf32>
      %cst_52 = arith.constant dense<0.000000e+00> : vector<1xf32>
      %240 = vector.multi_reduction <add>, %239, %cst_52 [1, 2] : vector<1x128x1xf32> to vector<1xf32>
      %241 = vector.shape_cast %240 : vector<1xf32> to vector<1x1x1xf32>
      %242 = vector.extract %241[0, 0, 0] : f32 from vector<1x1x1xf32>
      %243 = vector.broadcast %242 : f32 to vector<1x1xf32>
      %244 = vector.broadcast %3 : f32 to vector<128x1xf32>
      %245 = arith.cmpf ole, %225, %244 : vector<128x1xf32>
      %246 = vector.broadcast %4 : f32 to vector<128x1xf32>
      %247 = arith.cmpf oge, %225, %246 : vector<128x1xf32>
      %248 = arith.ori %245, %247 : vector<128x1xi1>
      %249 = arith.extui %248 : vector<128x1xi1> to vector<128x1xi32>
      %250 = arith.sitofp %249 : vector<128x1xi32> to vector<128x1xf32>
      %251 = arith.subf %214, %213 : vector<128x3xf32>
      %252 = arith.mulf %251, %251 : vector<128x3xf32>
      %cst_53 = arith.constant dense<0.000000e+00> : vector<128xf32>
      %253 = vector.multi_reduction <add>, %252, %cst_53 [1] : vector<128x3xf32> to vector<128xf32>
      %254 = vector.shape_cast %253 : vector<128xf32> to vector<128x1xf32>
      %255 = arith.mulf %250, %254 : vector<128x1xf32>
      %256 = vector.shape_cast %255 : vector<128x1xf32> to vector<1x128x1xf32>
      %cst_54 = arith.constant dense<0.000000e+00> : vector<1xf32>
      %257 = vector.multi_reduction <add>, %256, %cst_54 [1, 2] : vector<1x128x1xf32> to vector<1xf32>
      %258 = vector.shape_cast %257 : vector<1xf32> to vector<1x1x1xf32>
      %259 = vector.extract %258[0, 0, 0] : f32 from vector<1x1x1xf32>
      %260 = vector.broadcast %259 : f32 to vector<1x1xf32>
      %c0_55 = arith.constant 0 : index
      %c0_56 = arith.constant 0 : index
      %261 = vector.load %arg11[%c0_55, %c0_56] : memref<8x128xf32, #tpu.memory_space<vmem>>, vector<8x128xf32>
      %262 = vector.extract_strided_slice %261 {offsets = [0, 0], sizes = [1, 128], strides = [1, 1]} : vector<8x128xf32> to vector<1x128xf32>
      %263 = vector.shape_cast %203 : vector<1x1xf32> to vector<1x1xf32>
      %264 = vector.broadcast %263 : vector<1x1xf32> to vector<1x128xf32>
      %265 = vector.extract_strided_slice %261 {offsets = [1, 0], sizes = [1, 128], strides = [1, 1]} : vector<8x128xf32> to vector<1x128xf32>
      %266 = vector.shape_cast %212 : vector<1x1xf32> to vector<1x1xf32>
      %267 = vector.broadcast %266 : vector<1x1xf32> to vector<1x128xf32>
      %268 = vector.extract_strided_slice %261 {offsets = [2, 0], sizes = [1, 128], strides = [1, 1]} : vector<8x128xf32> to vector<1x128xf32>
      %269 = vector.shape_cast %243 : vector<1x1xf32> to vector<1x1xf32>
      %270 = vector.broadcast %269 : vector<1x1xf32> to vector<1x128xf32>
      %271 = vector.shape_cast %260 : vector<1x1xf32> to vector<1x1xf32>
      %272 = vector.broadcast %271 : vector<1x1xf32> to vector<1x128xf32>
      %273 = tpu.concatenate %262, %264, %265, %267, %268, %270, %272, %183 in 0 : vector<1x128xf32>, vector<1x128xf32>, vector<1x128xf32>, vector<1x128xf32>, vector<1x128xf32>, vector<1x128xf32>, vector<1x128xf32>, vector<1x128xf32> -> vector<8x128xf32>
      %c0_57 = arith.constant 0 : index
      %c0_58 = arith.constant 0 : index
      %274 = vector.load %arg8[%c0_57, %c0_58] : memref<8x128xf32, #tpu.memory_space<vmem>>, vector<8x128xf32>
      tpu.vector_store %arg8[%c0_57, %c0_58], %273 {strides = array<i32>} : memref<8x128xf32, #tpu.memory_space<vmem>>, vector<8x128xf32>,
    } else {
    }
    return
  }
  func.func @transform_0(%arg0: i32, %arg1: memref<8xf32, #tpu.memory_space<smem>>) -> (i32, i32) {
    %c0_i32 = arith.constant 0 : i32
    %c0_i32_0 = arith.constant 0 : i32
    return %arg0, %c0_i32 : i32, i32
  }
  func.func @transform_1(%arg0: i32, %arg1: memref<8xf32, #tpu.memory_space<smem>>) -> (i32, i32) {
    %c0_i32 = arith.constant 0 : i32
    %c0_i32_0 = arith.constant 0 : i32
    return %arg0, %c0_i32 : i32, i32
  }
  func.func @transform_2(%arg0: i32, %arg1: memref<8xf32, #tpu.memory_space<smem>>) -> (i32, i32) {
    %c0_i32 = arith.constant 0 : i32
    %c0_i32_0 = arith.constant 0 : i32
    %c0_i32_1 = arith.constant 0 : i32
    return %c0_i32, %c0_i32_0 : i32, i32
  }
  func.func @transform_3(%arg0: i32, %arg1: memref<8xf32, #tpu.memory_space<smem>>) -> (i32, i32) {
    %c0_i32 = arith.constant 0 : i32
    %c0_i32_0 = arith.constant 0 : i32
    %c0_i32_1 = arith.constant 0 : i32
    return %c0_i32, %c0_i32_0 : i32, i32
  }
  func.func @transform_4(%arg0: i32, %arg1: memref<8xf32, #tpu.memory_space<smem>>) -> (i32, i32) {
    %c0_i32 = arith.constant 0 : i32
    %c0_i32_0 = arith.constant 0 : i32
    %c0_i32_1 = arith.constant 0 : i32
    return %c0_i32, %c0_i32_0 : i32, i32
  }
  func.func @transform_5(%arg0: i32, %arg1: memref<8xf32, #tpu.memory_space<smem>>) -> (i32, i32) {
    %c0_i32 = arith.constant 0 : i32
    %c0_i32_0 = arith.constant 0 : i32
    %c0_i32_1 = arith.constant 0 : i32
    return %c0_i32, %c0_i32_0 : i32, i32
  }
  func.func @transform_6(%arg0: i32, %arg1: memref<8xf32, #tpu.memory_space<smem>>) -> (i32, i32) {
    %c0_i32 = arith.constant 0 : i32
    %c0_i32_0 = arith.constant 0 : i32
    %c0_i32_1 = arith.constant 0 : i32
    return %c0_i32, %c0_i32_0 : i32, i32
  }
}

</mosaic_0001>

<llo_original>
// kernel: neg.2
$region0: #{neg.2}
  #allocation0 [shape = 's32[1]{0}', space=sflag, size = 0x4, scoped, tag = 'scoped memory for neg.2']
  %s0 = inlined_call_operand.vmem [shape: f32[128], index: 0, kind: input, shape index: {}]
  %s1 = inlined_call_operand.vmem [shape: f32[128], index: 1, kind: output, shape index: {}]
  %v2 = vld [vmem:[%s0] sm:$0x1]
  %3 = xla_tuple %v2
  %4 = xla_tuple %3
  %v5 = vxor.u32 %v2, 2147483648
  %6 = xla_tuple %v5
  %7 = vst [vmem:[%s1] sm:$0x1] %v5

// kernel: _lambda_.1
$region0: #{_lambda_.1}
  #allocation0 [shape = 'u32[]', space=smem, size = 0x4, offset = 0x4, fixed_abs, tag = 'smem constant byte address 0x4 - core index']
  #allocation1 [shape = 'u32[144,128]{1,0:T(1,128)}', space=vmem, size = 0x12000, scoped, tag = 'internal scratch']
  #allocation2 [shape = 'f32[1,128]{1,0:T(1,128)}', space=vmem, size = 0x200, scoped, tag = 'scratch operand']
  #allocation3 [shape = 'f32[1,128]{1,0:T(1,128)}', space=vmem, size = 0x200, scoped, tag = 'scratch operand']
  #allocation4 [shape = 'f32[8,128]{1,0:T(8,128)}', space=vmem, size = 0x1000, scoped, tag = 'scratch operand']
  #allocation5 [shape = 's32[1]{0}', space=sflag, size = 0x4, scoped, tag = 'scoped memory for _lambda_.1']
  #allocation6 [shape = 'u8[512]{0}', space=smem, size = 0x200, scoped, tag = 'prefetched SMEM operand 0']
  %s0 = inlined_call_operand.vmem [shape: f32[8], index: 0, kind: input, shape index: {}]
  %s1 = inlined_call_operand.vmem [shape: f32[384,3], index: 1, kind: input, shape index: {}]
  %s2 = inlined_call_operand.vmem [shape: f32[384,3], index: 2, kind: input, shape index: {}]
  %s3 = inlined_call_operand.vmem [shape: f32[3,128], index: 3, kind: input, shape index: {}]
  %s4 = inlined_call_operand.vmem [shape: f32[3,128], index: 4, kind: input, shape index: {}]
  %s5 = inlined_call_operand.vmem [shape: f32[128,3], index: 5, kind: input, shape index: {}]
  %s6 = inlined_call_operand.vmem [shape: f32[128,3], index: 6, kind: input, shape index: {}]
  %s7 = inlined_call_operand.vmem [shape: f32[8,128], index: 7, kind: output, shape index: {}]
  %s8 = sld [smem:[#allocation0]]
  $region65: #{_lambda_.1} parent=0
    _
  %s10 = ssub.s32 1, %s8
  %s11 = scalar_select 0, %s10, %s8
  %s12 = sshll.u32 %s0, 4
  %s13 = int_to_ptr.vmem [resolvable:$true] %s12
  %15 = dma.vmem_to_smem %s13, 16, [#allocation6], [#allocation5]
  %16 = dma.done [#allocation5], 16
  %17 = sfence
  loop: start=0, step=1, limit=5
  $region2: #{_lambda_.1} parent=0 // loop_pre_header
    _
  $region3: #{_lambda_.1} parent=0 // loop_header
    %s19 = sphi 0, %s23
    %p20 = scmp.ge.s32.totalorder %s19, 5
    %s29 = sphi 0, %s31
    %s32 = sphi 0, %s29
    %s33 = sphi 0, %s32
    %s49 = sphi 0, %s33
    %s55 = sphi 0, %s57
    %s58 = sphi 0, %s55
    %s59 = sphi 0, %s58
    %s75 = sphi 0, %s59
    %s79 = sphi 0, %s79
    %s81 = sphi 0, %s79
    %s82 = sphi 0, %s81
    %s96 = sphi 0, %s82
    %s100 = sphi 0, %s100
    %s102 = sphi 0, %s100
    %s103 = sphi 0, %s102
    %s117 = sphi 0, %s103
    %s121 = sphi 0, %s121
    %s123 = sphi 0, %s121
    %s124 = sphi 0, %s123
    %s138 = sphi 0, %s124
    %s142 = sphi 0, %s142
    %s144 = sphi 0, %s142
    %s145 = sphi 0, %s144
    %s159 = sphi 0, %s145
    %s163 = sphi 0, %s163
    %s165 = sphi 0, %s163
    %s166 = sphi 0, %s165
    %s180 = sphi 0, %s166
  $region4: #{_lambda_.1} parent=0 // loop_header_branch
    %22 = sbr.rel (%p20) target = $region8
  $region5: #{_lambda_.1} parent=0 // loop_body
    %s24 = ssub.s32 %s19, 1
    %s25 = ssub.s32 %s19, 2
    %s26 = sadd.s32 %s19, 1
    %s27 = ssub.s32 %s19, %s26
    %p28 = scmp.eq.s32.totalorder %s27, 0
    %s30 = sadd.s32 %s29, 1
    %s31 = scalar_select %p28, %s29, %s30
    %p34 = pneg %p28
    %p35 = scmp.eq.s32.totalorder %s19, 2
    %p36 = por %p34, %p35
    %p37 = scmp.ne.s32.totalorder %s29, %s32
    %p38 = scmp.eq.s32.totalorder %s19, 0
    %p39 = por %p37, %p38
    %p40 = scmp.ne.s32.totalorder %s29, %s32
    %p41 = scmp.eq.s32.totalorder %s24, 2
    %p42 = por %p40, %p41
    %p43 = scmp.ne.s32.totalorder %s32, %s33
    %p44 = scmp.eq.s32.totalorder %s24, 0
    %p45 = por %p43, %p44
    %p46 = scmp.ne.s32.totalorder %s32, %s33
    %p47 = scmp.eq.s32.totalorder %s25, 2
    %p48 = por %p46, %p47
    %p50 = scmp.ne.s32.totalorder %s33, %s49
    %p51 = scmp.eq.s32.totalorder %s25, 0
    %p52 = por %p50, %p51
    %s53 = ssub.s32 %s19, %s26
    %p54 = scmp.eq.s32.totalorder %s53, 0
    %s56 = sadd.s32 %s55, 1
    %s57 = scalar_select %p54, %s55, %s56
    %p60 = pneg %p54
    %p61 = scmp.eq.s32.totalorder %s19, 2
    %p62 = por %p60, %p61
    %p63 = scmp.ne.s32.totalorder %s55, %s58
    %p64 = scmp.eq.s32.totalorder %s19, 0
    %p65 = por %p63, %p64
    %p66 = scmp.ne.s32.totalorder %s55, %s58
    %p67 = scmp.eq.s32.totalorder %s24, 2
    %p68 = por %p66, %p67
    %p69 = scmp.ne.s32.totalorder %s58, %s59
    %p70 = scmp.eq.s32.totalorder %s24, 0
    %p71 = por %p69, %p70
    %p72 = scmp.ne.s32.totalorder %s58, %s59
    %p73 = scmp.eq.s32.totalorder %s25, 2
    %p74 = por %p72, %p73
    %p76 = scmp.ne.s32.totalorder %s59, %s75
    %p77 = scmp.eq.s32.totalorder %s25, 0
    %p78 = por %p76, %p77
    %s80 = sadd.s32 %s79, 1
    %p83 = scmp.eq.s32.totalorder %s19, 2
    %p84 = scmp.ne.s32.totalorder %s79, %s81
    %p85 = scmp.eq.s32.totalorder %s19, 0
    %p86 = por %p84, %p85
    %p87 = scmp.ne.s32.totalorder %s79, %s81
    %p88 = scmp.eq.s32.totalorder %s24, 2
    %p89 = por %p87, %p88
    %p90 = scmp.ne.s32.totalorder %s81, %s82
    %p91 = scmp.eq.s32.totalorder %s24, 0
    %p92 = por %p90, %p91
    %p93 = scmp.ne.s32.totalorder %s81, %s82
    %p94 = scmp.eq.s32.totalorder %s25, 2
    %p95 = por %p93, %p94
    %p97 = scmp.ne.s32.totalorder %s82, %s96
    %p98 = scmp.eq.s32.totalorder %s25, 0
    %p99 = por %p97, %p98
    %s101 = sadd.s32 %s100, 1
    %p104 = scmp.eq.s32.totalorder %s19, 2
    %p105 = scmp.ne.s32.totalorder %s100, %s102
    %p106 = scmp.eq.s32.totalorder %s19, 0
    %p107 = por %p105, %p106
    %p108 = scmp.ne.s32.totalorder %s100, %s102
    %p109 = scmp.eq.s32.totalorder %s24, 2
    %p110 = por %p108, %p109
    %p111 = scmp.ne.s32.totalorder %s102, %s103
    %p112 = scmp.eq.s32.totalorder %s24, 0
    %p113 = por %p111, %p112
    %p114 = scmp.ne.s32.totalorder %s102, %s103
    %p115 = scmp.eq.s32.totalorder %s25, 2
    %p116 = por %p114, %p115
    %p118 = scmp.ne.s32.totalorder %s103, %s117
    %p119 = scmp.eq.s32.totalorder %s25, 0
    %p120 = por %p118, %p119
    %s122 = sadd.s32 %s121, 1
    %p125 = scmp.eq.s32.totalorder %s19, 2
    %p126 = scmp.ne.s32.totalorder %s121, %s123
    %p127 = scmp.eq.s32.totalorder %s19, 0
    %p128 = por %p126, %p127
    %p129 = scmp.ne.s32.totalorder %s121, %s123
    %p130 = scmp.eq.s32.totalorder %s24, 2
    %p131 = por %p129, %p130
    %p132 = scmp.ne.s32.totalorder %s123, %s124
    %p133 = scmp.eq.s32.totalorder %s24, 0
    %p134 = por %p132, %p133
    %p135 = scmp.ne.s32.totalorder %s123, %s124
    %p136 = scmp.eq.s32.totalorder %s25, 2
    %p137 = por %p135, %p136
    %p139 = scmp.ne.s32.totalorder %s124, %s138
    %p140 = scmp.eq.s32.totalorder %s25, 0
    %p141 = por %p139, %p140
    %s143 = sadd.s32 %s142, 1
    %p146 = scmp.eq.s32.totalorder %s19, 2
    %p147 = scmp.ne.s32.totalorder %s142, %s144
    %p148 = scmp.eq.s32.totalorder %s19, 0
    %p149 = por %p147, %p148
    %p150 = scmp.ne.s32.totalorder %s142, %s144
    %p151 = scmp.eq.s32.totalorder %s24, 2
    %p152 = por %p150, %p151
    %p153 = scmp.ne.s32.totalorder %s144, %s145
    %p154 = scmp.eq.s32.totalorder %s24, 0
    %p155 = por %p153, %p154
    %p156 = scmp.ne.s32.totalorder %s144, %s145
    %p157 = scmp.eq.s32.totalorder %s25, 2
    %p158 = por %p156, %p157
    %p160 = scmp.ne.s32.totalorder %s145, %s159
    %p161 = scmp.eq.s32.totalorder %s25, 0
    %p162 = por %p160, %p161
    %s164 = sadd.s32 %s163, 1
    %p167 = scmp.eq.s32.totalorder %s19, 2
    %p168 = scmp.ne.s32.totalorder %s163, %s165
    %p169 = scmp.eq.s32.totalorder %s19, 0
    %p170 = por %p168, %p169
    %p171 = scmp.ne.s32.totalorder %s163, %s165
    %p172 = scmp.eq.s32.totalorder %s24, 2
    %p173 = por %p171, %p172
    %p174 = scmp.ne.s32.totalorder %s165, %s166
    %p175 = scmp.eq.s32.totalorder %s24, 0
    %p176 = por %p174, %p175
    %p177 = scmp.ne.s32.totalorder %s165, %s166
    %p178 = scmp.eq.s32.totalorder %s25, 2
    %p179 = por %p177, %p178
    %p181 = scmp.ne.s32.totalorder %s166, %s180
    %p182 = scmp.eq.s32.totalorder %s25, 0
    %p183 = por %p181, %p182
    %p184 = scmp.le.s32.totalorder 1, %s19
    %p185 = scmp.lt.s32.totalorder %s19, 4
    %p186 = pnand %p184, %p185
    %p187 = pneg %p186
    // Predicated region
    $region9: #{_lambda_.1} parent=5 // pred_check
      _
    $region10: #{_lambda_.1} parent=5 // pred_check_branch
      %189 = sbr.rel (%p186) target = $region12
    $region11: #{_lambda_.1} parent=5 // pred_region
      %s190 = ssub.s32 %s19, 1
      // Predicated region
      $region13: #{_lambda_.1} parent=11 // pred_check
        %p191 = pneg %p92
      $region14: #{_lambda_.1} parent=11 // pred_check_branch
        %193 = sbr.rel (%p191) target = $region16
      $region15: #{_lambda_.1} parent=11 // pred_region
        _
      $region16: #{_lambda_.1} parent=11 // pred_fallthru
        _
      // Predicated region
      $region17: #{_lambda_.1} parent=11 // pred_check
        %p194 = pneg %p113
      $region18: #{_lambda_.1} parent=11 // pred_check_branch
        %196 = sbr.rel (%p194) target = $region20
      $region19: #{_lambda_.1} parent=11 // pred_region
        _
      $region20: #{_lambda_.1} parent=11 // pred_fallthru
        _
      // Predicated region
      $region21: #{_lambda_.1} parent=11 // pred_check
        %p197 = pneg %p134
      $region22: #{_lambda_.1} parent=11 // pred_check_branch
        %199 = sbr.rel (%p197) target = $region24
      $region23: #{_lambda_.1} parent=11 // pred_region
        _
      $region24: #{_lambda_.1} parent=11 // pred_fallthru
        _
      // Predicated region
      $region25: #{_lambda_.1} parent=11 // pred_check
        %p200 = pneg %p155
      $region26: #{_lambda_.1} parent=11 // pred_check_branch
        %202 = sbr.rel (%p200) target = $region28
      $region27: #{_lambda_.1} parent=11 // pred_region
        _
      $region28: #{_lambda_.1} parent=11 // pred_fallthru
        _
    $region12: #{_lambda_.1} parent=5 // pred_fallthru
      _
    %p203 = scmp.lt.s32.totalorder %s19, 3
    // Predicated region
    $region29: #{_lambda_.1} parent=5 // pred_check
      %p204 = pneg %p203
    $region30: #{_lambda_.1} parent=5 // pred_check_branch
      %206 = sbr.rel (%p204) target = $region32
    $region31: #{_lambda_.1} parent=5 // pred_region
      // Predicated region
      $region33: #{_lambda_.1} parent=31 // pred_check
        %p207 = pneg %p39
      $region34: #{_lambda_.1} parent=31 // pred_check_branch
        %209 = sbr.rel (%p207) target = $region36
      $region35: #{_lambda_.1} parent=31 // pred_region
        %s210 = smul.u32 16, %s19
        %p211 = scmp.lt.s32.totalorder %s210, 47
        %s212 = scalar_select %p211, %s210, 47
        %s213 = smul.addr %s212, 8
        %s214 = scalar_lea.vmem %s1, %s213
        %s215 = smul.u32 16, %s19
      $region36: #{_lambda_.1} parent=31 // pred_fallthru
        _
      // Predicated region
      $region37: #{_lambda_.1} parent=31 // pred_check
        %p216 = pneg %p65
      $region38: #{_lambda_.1} parent=31 // pred_check_branch
        %218 = sbr.rel (%p216) target = $region40
      $region39: #{_lambda_.1} parent=31 // pred_region
        %s219 = smul.u32 16, %s19
        %p220 = scmp.lt.s32.totalorder %s219, 47
        %s221 = scalar_select %p220, %s219, 47
        %s222 = smul.addr %s221, 8
        %s223 = scalar_lea.vmem %s2, %s222
        %s224 = smul.u32 16, %s19
      $region40: #{_lambda_.1} parent=31 // pred_fallthru
        _
    $region32: #{_lambda_.1} parent=5 // pred_fallthru
      _
    %p225 = scmp.le.s32.totalorder 1, %s19
    %p226 = scmp.lt.s32.totalorder %s19, 4
    %p227 = pnand %p225, %p226
    %p228 = pneg %p227
    // Predicated region
    $region41: #{_lambda_.1} parent=5 // pred_check
      _
    $region42: #{_lambda_.1} parent=5 // pred_check_branch
      %230 = sbr.rel (%p227) target = $region44
    $region43: #{_lambda_.1} parent=5 // pred_region
      %s231 = ssub.s32 %s19, 1
      %s232 = smul.u32 16, %s24
      %p233 = scmp.lt.s32.totalorder %s232, 47
      %s234 = scalar_select %p233, %s232, 47
      %s235 = smul.addr %s234, 8
      %s236 = scalar_lea.vmem %s1, %s235
      %p237 = pneg %p45
      %p238 = pneg %p42
      %s239 = smul.u32 16, %s24
      %p240 = scmp.lt.s32.totalorder %s239, 47
      %s241 = scalar_select %p240, %s239, 47
      %s242 = smul.addr %s241, 8
      %s243 = scalar_lea.vmem %s2, %s242
      %p244 = pneg %p71
      %p245 = pneg %p68
      %p246 = pneg %p92
      %p247 = pneg %p89
      %p248 = pneg %p113
      %p249 = pneg %p110
      %p250 = pneg %p134
      %p251 = pneg %p131
      %p252 = pneg %p155
      %p253 = pneg %p152
      %p254 = pneg %p176
      %p255 = pneg %p173
      %s256 = smul.u32 16, %s24
      %p257 = scmp.lt.s32.totalorder %s256, 47
      %s258 = scalar_select %p257, %s256, 47
      %s259 = smul.addr %s258, 8
      %s260 = scalar_lea.vmem %s1, %s259
      %s261 = smul.u32 16, %s24
      %s262 = smul.u32 16, %s24
      %p263 = scmp.lt.s32.totalorder %s262, 47
      %s264 = scalar_select %p263, %s262, 47
      %s265 = smul.addr %s264, 8
      %s266 = scalar_lea.vmem %s2, %s265
      %s267 = smul.u32 16, %s24
      %s268 = sld [smem:[#allocation6]]
      %s269 = sld [smem:[#allocation6 + $0x1]]
      %s270 = sld [smem:[#allocation6 + $0x2]]
      %s271 = sld [smem:[#allocation6 + $0x3]]
      %s272 = sld [smem:[#allocation6 + $0x4]]
      %s273 = sld [smem:[#allocation6 + $0x5]]
      %s274 = sld [smem:[#allocation6 + $0x6]]
      %s275 = sld [smem:[#allocation6 + $0x7]]
      %p276 = scmp.eq.s32.totalorder %s24, 0
      // Predicated region
      $region45: #{_lambda_.1} parent=43 // pred_check
        %p277 = pneg %p276
      $region46: #{_lambda_.1} parent=43 // pred_check_branch
        %279 = sbr.rel (%p277) target = $region48
      $region47: #{_lambda_.1} parent=43 // pred_region
        %280 = vst [vmem:[#allocation2] sm:$0x1] 3e+37
        %281 = vst [vmem:[#allocation3] sm:$0x1] 0.0
        %282 = vst [vmem:[#allocation4] sm:$0xff] 0.0
      $region48: #{_lambda_.1} parent=43 // pred_fallthru
        _
      %v283 = vld [vmem:[%s260] sm:$0xff]
      %v284 = vld [vmem:[%s260 + $0x8] sm:$0xff]
      %v285 = vld [vmem:[%s260 + $0x10] sm:$0xff]
      %v286 = vld [vmem:[%s260 + $0x18] sm:$0xff]
      %v287 = vld [vmem:[%s260 + $0x20] sm:$0xff]
      %v288 = vld [vmem:[%s260 + $0x28] sm:$0xff]
      %v289 = vld [vmem:[%s260 + $0x30] sm:$0xff]
      %v290 = vld [vmem:[%s260 + $0x38] sm:$0xff]
      %v291 = vld [vmem:[%s260 + $0x40] sm:$0xff]
      %v292 = vld [vmem:[%s260 + $0x48] sm:$0xff]
      %v293 = vld [vmem:[%s260 + $0x50] sm:$0xff]
      %v294 = vld [vmem:[%s260 + $0x58] sm:$0xff]
      %v295 = vld [vmem:[%s260 + $0x60] sm:$0xff]
      %v296 = vld [vmem:[%s260 + $0x68] sm:$0xff]
      %v297 = vld [vmem:[%s260 + $0x70] sm:$0xff]
      %v298 = vld [vmem:[%s260 + $0x78] sm:$0xff]
      %v299 = vld [vmem:[%s266] sm:$0xff]
      %v300 = vld [vmem:[%s266 + $0x8] sm:$0xff]
      %v301 = vld [vmem:[%s266 + $0x10] sm:$0xff]
      %v302 = vld [vmem:[%s266 + $0x18] sm:$0xff]
      %v303 = vld [vmem:[%s266 + $0x20] sm:$0xff]
      %v304 = vld [vmem:[%s266 + $0x28] sm:$0xff]
      %v305 = vld [vmem:[%s266 + $0x30] sm:$0xff]
      %v306 = vld [vmem:[%s266 + $0x38] sm:$0xff]
      %v307 = vld [vmem:[%s266 + $0x40] sm:$0xff]
      %v308 = vld [vmem:[%s266 + $0x48] sm:$0xff]
      %v309 = vld [vmem:[%s266 + $0x50] sm:$0xff]
      %v310 = vld [vmem:[%s266 + $0x58] sm:$0xff]
      %v311 = vld [vmem:[%s266 + $0x60] sm:$0xff]
      %v312 = vld [vmem:[%s266 + $0x68] sm:$0xff]
      %v313 = vld [vmem:[%s266 + $0x70] sm:$0xff]
      %v314 = vld [vmem:[%s266 + $0x78] sm:$0xff]
      %v315 = vld [vmem:[%s3] sm:$0x7]
      %v316 = vld [vmem:[%s4] sm:$0x7]
      %v317 = vlaneseq
      %v318 = vand.u32 %v317, 127
      %vm319 = vcmp.lt.s32.totalorder %v318, 96
      %v320 = vsel %vm319, 1, 0
      %v321 = vcvt.s32.f32 %v320
      %v322 = vsub.f32 1.0, %v321
      %v323 = vmul.f32 %v322, 1e+30
      %v324 = vlaneseq
      %v325 = vshrl.u32 %v324, 7
      %v326 = vadd.s32 %v325, 8
      %v327 = vadd.s32 %v325, 16
      %v328 = vadd.s32 %v325, 24
      %v329 = vadd.s32 %v325, 32
      %v330 = vadd.s32 %v325, 40
      %v331 = vadd.s32 %v325, 48
      %v332 = vadd.s32 %v325, 56
      %v333 = vadd.s32 %v325, 64
      %v334 = vadd.s32 %v325, 72
      %v335 = vadd.s32 %v325, 80
      %v336 = vadd.s32 %v325, 88
      %v337 = vadd.s32 %v325, 96
      %v338 = vadd.s32 %v325, 104
      %v339 = vadd.s32 %v325, 112
      %v340 = vadd.s32 %v325, 120
      %s341 = smul.u32 %s24, 128
      %v342 = vstv %s341
      %v343 = vadd.s32 %v325, %v342
      %v344 = vadd.s32 %v326, %v342
      %v345 = vadd.s32 %v327, %v342
      %v346 = vadd.s32 %v328, %v342
      %v347 = vadd.s32 %v329, %v342
      %v348 = vadd.s32 %v330, %v342
      %v349 = vadd.s32 %v331, %v342
      %v350 = vadd.s32 %v332, %v342
      %v351 = vadd.s32 %v333, %v342
      %v352 = vadd.s32 %v334, %v342
      %v353 = vadd.s32 %v335, %v342
      %v354 = vadd.s32 %v336, %v342
      %v355 = vadd.s32 %v337, %v342
      %v356 = vadd.s32 %v338, %v342
      %v357 = vadd.s32 %v339, %v342
      %v358 = vadd.s32 %v340, %v342
      %vm359 = vcmp.lt.s32.totalorder %v343, 320
      %vm360 = vcmp.lt.s32.totalorder %v344, 320
      %vm361 = vcmp.lt.s32.totalorder %v345, 320
      %vm362 = vcmp.lt.s32.totalorder %v346, 320
      %vm363 = vcmp.lt.s32.totalorder %v347, 320
      %vm364 = vcmp.lt.s32.totalorder %v348, 320
      %vm365 = vcmp.lt.s32.totalorder %v349, 320
      %vm366 = vcmp.lt.s32.totalorder %v350, 320
      %vm367 = vcmp.lt.s32.totalorder %v351, 320
      %vm368 = vcmp.lt.s32.totalorder %v352, 320
      %vm369 = vcmp.lt.s32.totalorder %v353, 320
      %vm370 = vcmp.lt.s32.totalorder %v354, 320
      %vm371 = vcmp.lt.s32.totalorder %v355, 320
      %vm372 = vcmp.lt.s32.totalorder %v356, 320
      %vm373 = vcmp.lt.s32.totalorder %v357, 320
      %vm374 = vcmp.lt.s32.totalorder %v358, 320
      %v375 = vsel %vm359, 1, 0
      %v376 = vsel %vm360, 1, 0
      %v377 = vsel %vm361, 1, 0
      %v378 = vsel %vm362, 1, 0
      %v379 = vsel %vm363, 1, 0
      %v380 = vsel %vm364, 1, 0
      %v381 = vsel %vm365, 1, 0
      %v382 = vsel %vm366, 1, 0
      %v383 = vsel %vm367, 1, 0
      %v384 = vsel %vm368, 1, 0
      %v385 = vsel %vm369, 1, 0
      %v386 = vsel %vm370, 1, 0
      %v387 = vsel %vm371, 1, 0
      %v388 = vsel %vm372, 1, 0
      %v389 = vsel %vm373, 1, 0
      %v390 = vsel %vm374, 1, 0
      %v391 = vcvt.s32.f32 %v375
      %v392 = vcvt.s32.f32 %v376
      %v393 = vcvt.s32.f32 %v377
      %v394 = vcvt.s32.f32 %v378
      %v395 = vcvt.s32.f32 %v379
      %v396 = vcvt.s32.f32 %v380
      %v397 = vcvt.s32.f32 %v381
      %v398 = vcvt.s32.f32 %v382
      %v399 = vcvt.s32.f32 %v383
      %v400 = vcvt.s32.f32 %v384
      %v401 = vcvt.s32.f32 %v385
      %v402 = vcvt.s32.f32 %v386
      %v403 = vcvt.s32.f32 %v387
      %v404 = vcvt.s32.f32 %v388
      %v405 = vcvt.s32.f32 %v389
      %v406 = vcvt.s32.f32 %v390
      %v407 = vstv %s268
      %v408 = vmul.f32 %v283, %v407
      %v409 = vmul.f32 %v284, %v407
      %v410 = vmul.f32 %v285, %v407
      %v411 = vmul.f32 %v286, %v407
      %v412 = vmul.f32 %v287, %v407
      %v413 = vmul.f32 %v288, %v407
      %v414 = vmul.f32 %v289, %v407
      %v415 = vmul.f32 %v290, %v407
      %v416 = vmul.f32 %v291, %v407
      %v417 = vmul.f32 %v292, %v407
      %v418 = vmul.f32 %v293, %v407
      %v419 = vmul.f32 %v294, %v407
      %v420 = vmul.f32 %v295, %v407
      %v421 = vmul.f32 %v296, %v407
      %v422 = vmul.f32 %v297, %v407
      %v423 = vmul.f32 %v298, %v407
      %v424 = vstv %s269
      %v425 = vmul.f32 %v283, %v424
      %v426 = vmul.f32 %v284, %v424
      %v427 = vmul.f32 %v285, %v424
      %v428 = vmul.f32 %v286, %v424
      %v429 = vmul.f32 %v287, %v424
      %v430 = vmul.f32 %v288, %v424
      %v431 = vmul.f32 %v289, %v424
      %v432 = vmul.f32 %v290, %v424
      %v433 = vmul.f32 %v291, %v424
      %v434 = vmul.f32 %v292, %v424
      %v435 = vmul.f32 %v293, %v424
      %v436 = vmul.f32 %v294, %v424
      %v437 = vmul.f32 %v295, %v424
      %v438 = vmul.f32 %v296, %v424
      %v439 = vmul.f32 %v297, %v424
      %v440 = vmul.f32 %v298, %v424
      %457 = vrot.lane.b32.xlu0 %v425, 127
      %v458 = vpop.permute.xlu0 %457
      %459 = vrot.lane.b32.xlu0 %v426, 127
      %v460 = vpop.permute.xlu0 %459
      %461 = vrot.lane.b32.xlu0 %v427, 127
      %v462 = vpop.permute.xlu0 %461
      %463 = vrot.lane.b32.xlu0 %v428, 127
      %v464 = vpop.permute.xlu0 %463
      %465 = vrot.lane.b32.xlu0 %v429, 127
      %v466 = vpop.permute.xlu0 %465
      %467 = vrot.lane.b32.xlu0 %v430, 127
      %v468 = vpop.permute.xlu0 %467
      %469 = vrot.lane.b32.xlu0 %v431, 127
      %v470 = vpop.permute.xlu0 %469
      %471 = vrot.lane.b32.xlu0 %v432, 127
      %v472 = vpop.permute.xlu0 %471
      %473 = vrot.lane.b32.xlu0 %v433, 127
      %v474 = vpop.permute.xlu0 %473
      %475 = vrot.lane.b32.xlu0 %v434, 127
      %v476 = vpop.permute.xlu0 %475
      %477 = vrot.lane.b32.xlu0 %v435, 127
      %v478 = vpop.permute.xlu0 %477
      %479 = vrot.lane.b32.xlu0 %v436, 127
      %v480 = vpop.permute.xlu0 %479
      %481 = vrot.lane.b32.xlu0 %v437, 127
      %v482 = vpop.permute.xlu0 %481
      %483 = vrot.lane.b32.xlu0 %v438, 127
      %v484 = vpop.permute.xlu0 %483
      %485 = vrot.lane.b32.xlu0 %v439, 127
      %v486 = vpop.permute.xlu0 %485
      %487 = vrot.lane.b32.xlu0 %v440, 127
      %v488 = vpop.permute.xlu0 %487
      %v505 = vadd.f32 %v408, %v458
      %v506 = vadd.f32 %v409, %v460
      %v507 = vadd.f32 %v410, %v462
      %v508 = vadd.f32 %v411, %v464
      %v509 = vadd.f32 %v412, %v466
      %v510 = vadd.f32 %v413, %v468
      %v511 = vadd.f32 %v414, %v470
      %v512 = vadd.f32 %v415, %v472
      %v513 = vadd.f32 %v416, %v474
      %v514 = vadd.f32 %v417, %v476
      %v515 = vadd.f32 %v418, %v478
      %v516 = vadd.f32 %v419, %v480
      %v517 = vadd.f32 %v420, %v482
      %v518 = vadd.f32 %v421, %v484
      %v519 = vadd.f32 %v422, %v486
      %v520 = vadd.f32 %v423, %v488
      %v521 = vstv %s270
      %v522 = vmul.f32 %v283, %v521
      %v523 = vmul.f32 %v284, %v521
      %v524 = vmul.f32 %v285, %v521
      %v525 = vmul.f32 %v286, %v521
      %v526 = vmul.f32 %v287, %v521
      %v527 = vmul.f32 %v288, %v521
      %v528 = vmul.f32 %v289, %v521
      %v529 = vmul.f32 %v290, %v521
      %v530 = vmul.f32 %v291, %v521
      %v531 = vmul.f32 %v292, %v521
      %v532 = vmul.f32 %v293, %v521
      %v533 = vmul.f32 %v294, %v521
      %v534 = vmul.f32 %v295, %v521
      %v535 = vmul.f32 %v296, %v521
      %v536 = vmul.f32 %v297, %v521
      %v537 = vmul.f32 %v298, %v521
      %554 = vrot.lane.b32.xlu0 %v522, 126
      %v555 = vpop.permute.xlu0 %554
      %556 = vrot.lane.b32.xlu0 %v523, 126
      %v557 = vpop.permute.xlu0 %556
      %558 = vrot.lane.b32.xlu0 %v524, 126
      %v559 = vpop.permute.xlu0 %558
      %560 = vrot.lane.b32.xlu0 %v525, 126
      %v561 = vpop.permute.xlu0 %560
      %562 = vrot.lane.b32.xlu0 %v526, 126
      %v563 = vpop.permute.xlu0 %562
      %564 = vrot.lane.b32.xlu0 %v527, 126
      %v565 = vpop.permute.xlu0 %564
      %566 = vrot.lane.b32.xlu0 %v528, 126
      %v567 = vpop.permute.xlu0 %566
      %568 = vrot.lane.b32.xlu0 %v529, 126
      %v569 = vpop.permute.xlu0 %568
      %570 = vrot.lane.b32.xlu0 %v530, 126
      %v571 = vpop.permute.xlu0 %570
      %572 = vrot.lane.b32.xlu0 %v531, 126
      %v573 = vpop.permute.xlu0 %572
      %574 = vrot.lane.b32.xlu0 %v532, 126
      %v575 = vpop.permute.xlu0 %574
      %576 = vrot.lane.b32.xlu0 %v533, 126
      %v577 = vpop.permute.xlu0 %576
      %578 = vrot.lane.b32.xlu0 %v534, 126
      %v579 = vpop.permute.xlu0 %578
      %580 = vrot.lane.b32.xlu0 %v535, 126
      %v581 = vpop.permute.xlu0 %580
      %582 = vrot.lane.b32.xlu0 %v536, 126
      %v583 = vpop.permute.xlu0 %582
      %584 = vrot.lane.b32.xlu0 %v537, 126
      %v585 = vpop.permute.xlu0 %584
      %v602 = vadd.f32 %v505, %v555
      %v603 = vadd.f32 %v506, %v557
      %v604 = vadd.f32 %v507, %v559
      %v605 = vadd.f32 %v508, %v561
      %v606 = vadd.f32 %v509, %v563
      %v607 = vadd.f32 %v510, %v565
      %v608 = vadd.f32 %v511, %v567
      %v609 = vadd.f32 %v512, %v569
      %v610 = vadd.f32 %v513, %v571
      %v611 = vadd.f32 %v514, %v573
      %v612 = vadd.f32 %v515, %v575
      %v613 = vadd.f32 %v516, %v577
      %v614 = vadd.f32 %v517, %v579
      %v615 = vadd.f32 %v518, %v581
      %v616 = vadd.f32 %v519, %v583
      %v617 = vadd.f32 %v520, %v585
      %v618 = vstv %s275
      %v619 = vsub.f32 %v602, %v618
      %v620 = vsub.f32 %v603, %v618
      %v621 = vsub.f32 %v604, %v618
      %v622 = vsub.f32 %v605, %v618
      %v623 = vsub.f32 %v606, %v618
      %v624 = vsub.f32 %v607, %v618
      %v625 = vsub.f32 %v608, %v618
      %v626 = vsub.f32 %v609, %v618
      %v627 = vsub.f32 %v610, %v618
      %v628 = vsub.f32 %v611, %v618
      %v629 = vsub.f32 %v612, %v618
      %v630 = vsub.f32 %v613, %v618
      %v631 = vsub.f32 %v614, %v618
      %v632 = vsub.f32 %v615, %v618
      %v633 = vsub.f32 %v616, %v618
      %v634 = vsub.f32 %v617, %v618
      %v635 = vstv %s273
      %vm636 = vcmp.ge.f32.partialorder %v619, %v635
      %vm637 = vcmp.ge.f32.partialorder %v620, %v635
      %vm638 = vcmp.ge.f32.partialorder %v621, %v635
      %vm639 = vcmp.ge.f32.partialorder %v622, %v635
      %vm640 = vcmp.ge.f32.partialorder %v623, %v635
      %vm641 = vcmp.ge.f32.partialorder %v624, %v635
      %vm642 = vcmp.ge.f32.partialorder %v625, %v635
      %vm643 = vcmp.ge.f32.partialorder %v626, %v635
      %vm644 = vcmp.ge.f32.partialorder %v627, %v635
      %vm645 = vcmp.ge.f32.partialorder %v628, %v635
      %vm646 = vcmp.ge.f32.partialorder %v629, %v635
      %vm647 = vcmp.ge.f32.partialorder %v630, %v635
      %vm648 = vcmp.ge.f32.partialorder %v631, %v635
      %vm649 = vcmp.ge.f32.partialorder %v632, %v635
      %vm650 = vcmp.ge.f32.partialorder %v633, %v635
      %vm651 = vcmp.ge.f32.partialorder %v634, %v635
      %v652 = vstv %s274
      %vm653 = vcmp.le.f32.partialorder %v619, %v652
      %vm654 = vcmp.le.f32.partialorder %v620, %v652
      %vm655 = vcmp.le.f32.partialorder %v621, %v652
      %vm656 = vcmp.le.f32.partialorder %v622, %v652
      %vm657 = vcmp.le.f32.partialorder %v623, %v652
      %vm658 = vcmp.le.f32.partialorder %v624, %v652
      %vm659 = vcmp.le.f32.partialorder %v625, %v652
      %vm660 = vcmp.le.f32.partialorder %v626, %v652
      %vm661 = vcmp.le.f32.partialorder %v627, %v652
      %vm662 = vcmp.le.f32.partialorder %v628, %v652
      %vm663 = vcmp.le.f32.partialorder %v629, %v652
      %vm664 = vcmp.le.f32.partialorder %v630, %v652
      %vm665 = vcmp.le.f32.partialorder %v631, %v652
      %vm666 = vcmp.le.f32.partialorder %v632, %v652
      %vm667 = vcmp.le.f32.partialorder %v633, %v652
      %vm668 = vcmp.le.f32.partialorder %v634, %v652
      %vm669 = vmand %vm636, %vm653
      %vm670 = vmand %vm637, %vm654
      %vm671 = vmand %vm638, %vm655
      %vm672 = vmand %vm639, %vm656
      %vm673 = vmand %vm640, %vm657
      %vm674 = vmand %vm641, %vm658
      %vm675 = vmand %vm642, %vm659
      %vm676 = vmand %vm643, %vm660
      %vm677 = vmand %vm644, %vm661
      %vm678 = vmand %vm645, %vm662
      %vm679 = vmand %vm646, %vm663
      %vm680 = vmand %vm647, %vm664
      %vm681 = vmand %vm648, %vm665
      %vm682 = vmand %vm649, %vm666
      %vm683 = vmand %vm650, %vm667
      %vm684 = vmand %vm651, %vm668
      %v685 = vsel %vm669, 1, 0
      %v686 = vsel %vm670, 1, 0
      %v687 = vsel %vm671, 1, 0
      %v688 = vsel %vm672, 1, 0
      %v689 = vsel %vm673, 1, 0
      %v690 = vsel %vm674, 1, 0
      %v691 = vsel %vm675, 1, 0
      %v692 = vsel %vm676, 1, 0
      %v693 = vsel %vm677, 1, 0
      %v694 = vsel %vm678, 1, 0
      %v695 = vsel %vm679, 1, 0
      %v696 = vsel %vm680, 1, 0
      %v697 = vsel %vm681, 1, 0
      %v698 = vsel %vm682, 1, 0
      %v699 = vsel %vm683, 1, 0
      %v700 = vsel %vm684, 1, 0
      %v701 = vcvt.s32.f32 %v685
      %v702 = vcvt.s32.f32 %v686
      %v703 = vcvt.s32.f32 %v687
      %v704 = vcvt.s32.f32 %v688
      %v705 = vcvt.s32.f32 %v689
      %v706 = vcvt.s32.f32 %v690
      %v707 = vcvt.s32.f32 %v691
      %v708 = vcvt.s32.f32 %v692
      %v709 = vcvt.s32.f32 %v693
      %v710 = vcvt.s32.f32 %v694
      %v711 = vcvt.s32.f32 %v695
      %v712 = vcvt.s32.f32 %v696
      %v713 = vcvt.s32.f32 %v697
      %v714 = vcvt.s32.f32 %v698
      %v715 = vcvt.s32.f32 %v699
      %v716 = vcvt.s32.f32 %v700
      %v717 = vmul.f32 %v701, %v391
      %v718 = vmul.f32 %v702, %v392
      %v719 = vmul.f32 %v703, %v393
      %v720 = vmul.f32 %v704, %v394
      %v721 = vmul.f32 %v705, %v395
      %v722 = vmul.f32 %v706, %v396
      %v723 = vmul.f32 %v707, %v397
      %v724 = vmul.f32 %v708, %v398
      %v725 = vmul.f32 %v709, %v399
      %v726 = vmul.f32 %v710, %v400
      %v727 = vmul.f32 %v711, %v401
      %v728 = vmul.f32 %v712, %v402
      %v729 = vmul.f32 %v713, %v403
      %v730 = vmul.f32 %v714, %v404
      %v731 = vmul.f32 %v715, %v405
      %v732 = vmul.f32 %v716, %v406
      %v733 = vsub.f32 1.0, %v717
      %v734 = vsub.f32 1.0, %v718
      %v735 = vsub.f32 1.0, %v719
      %v736 = vsub.f32 1.0, %v720
      %v737 = vsub.f32 1.0, %v721
      %v738 = vsub.f32 1.0, %v722
      %v739 = vsub.f32 1.0, %v723
      %v740 = vsub.f32 1.0, %v724
      %v741 = vsub.f32 1.0, %v725
      %v742 = vsub.f32 1.0, %v726
      %v743 = vsub.f32 1.0, %v727
      %v744 = vsub.f32 1.0, %v728
      %v745 = vsub.f32 1.0, %v729
      %v746 = vsub.f32 1.0, %v730
      %v747 = vsub.f32 1.0, %v731
      %v748 = vsub.f32 1.0, %v732
      %v749 = vmul.f32 %v733, 1e+30
      %v750 = vmul.f32 %v734, 1e+30
      %v751 = vmul.f32 %v735, 1e+30
      %v752 = vmul.f32 %v736, 1e+30
      %v753 = vmul.f32 %v737, 1e+30
      %v754 = vmul.f32 %v738, 1e+30
      %v755 = vmul.f32 %v739, 1e+30
      %v756 = vmul.f32 %v740, 1e+30
      %v757 = vmul.f32 %v741, 1e+30
      %v758 = vmul.f32 %v742, 1e+30
      %v759 = vmul.f32 %v743, 1e+30
      %v760 = vmul.f32 %v744, 1e+30
      %v761 = vmul.f32 %v745, 1e+30
      %v762 = vmul.f32 %v746, 1e+30
      %v763 = vmul.f32 %v747, 1e+30
      %v764 = vmul.f32 %v748, 1e+30
      %v765 = vmul.f32 %v283, %v283
      %v766 = vmul.f32 %v284, %v284
      %v767 = vmul.f32 %v285, %v285
      %v768 = vmul.f32 %v286, %v286
      %v769 = vmul.f32 %v287, %v287
      %v770 = vmul.f32 %v288, %v288
      %v771 = vmul.f32 %v289, %v289
      %v772 = vmul.f32 %v290, %v290
      %v773 = vmul.f32 %v291, %v291
      %v774 = vmul.f32 %v292, %v292
      %v775 = vmul.f32 %v293, %v293
      %v776 = vmul.f32 %v294, %v294
      %v777 = vmul.f32 %v295, %v295
      %v778 = vmul.f32 %v296, %v296
      %v779 = vmul.f32 %v297, %v297
      %v780 = vmul.f32 %v298, %v298
      %797 = vrot.lane.b32.xlu0 %v765, 127
      %v798 = vpop.permute.xlu0 %797
      %799 = vrot.lane.b32.xlu0 %v766, 127
      %v800 = vpop.permute.xlu0 %799
      %801 = vrot.lane.b32.xlu0 %v767, 127
      %v802 = vpop.permute.xlu0 %801
      %803 = vrot.lane.b32.xlu0 %v768, 127
      %v804 = vpop.permute.xlu0 %803
      %805 = vrot.lane.b32.xlu0 %v769, 127
      %v806 = vpop.permute.xlu0 %805
      %807 = vrot.lane.b32.xlu0 %v770, 127
      %v808 = vpop.permute.xlu0 %807
      %809 = vrot.lane.b32.xlu0 %v771, 127
      %v810 = vpop.permute.xlu0 %809
      %811 = vrot.lane.b32.xlu0 %v772, 127
      %v812 = vpop.permute.xlu0 %811
      %813 = vrot.lane.b32.xlu0 %v773, 127
      %v814 = vpop.permute.xlu0 %813
      %815 = vrot.lane.b32.xlu0 %v774, 127
      %v816 = vpop.permute.xlu0 %815
      %817 = vrot.lane.b32.xlu0 %v775, 127
      %v818 = vpop.permute.xlu0 %817
      %819 = vrot.lane.b32.xlu0 %v776, 127
      %v820 = vpop.permute.xlu0 %819
      %821 = vrot.lane.b32.xlu0 %v777, 127
      %v822 = vpop.permute.xlu0 %821
      %823 = vrot.lane.b32.xlu0 %v778, 127
      %v824 = vpop.permute.xlu0 %823
      %825 = vrot.lane.b32.xlu0 %v779, 127
      %v826 = vpop.permute.xlu0 %825
      %827 = vrot.lane.b32.xlu0 %v780, 127
      %v828 = vpop.permute.xlu0 %827
      %v845 = vadd.f32 %v765, %v798
      %v846 = vadd.f32 %v766, %v800
      %v847 = vadd.f32 %v767, %v802
      %v848 = vadd.f32 %v768, %v804
      %v849 = vadd.f32 %v769, %v806
      %v850 = vadd.f32 %v770, %v808
      %v851 = vadd.f32 %v771, %v810
      %v852 = vadd.f32 %v772, %v812
      %v853 = vadd.f32 %v773, %v814
      %v854 = vadd.f32 %v774, %v816
      %v855 = vadd.f32 %v775, %v818
      %v856 = vadd.f32 %v776, %v820
      %v857 = vadd.f32 %v777, %v822
      %v858 = vadd.f32 %v778, %v824
      %v859 = vadd.f32 %v779, %v826
      %v860 = vadd.f32 %v780, %v828
      %861 = vrot.lane.b32.xlu0 %v765, 126
      %v862 = vpop.permute.xlu0 %861
      %863 = vrot.lane.b32.xlu0 %v766, 126
      %v864 = vpop.permute.xlu0 %863
      %865 = vrot.lane.b32.xlu0 %v767, 126
      %v866 = vpop.permute.xlu0 %865
      %867 = vrot.lane.b32.xlu0 %v768, 126
      %v868 = vpop.permute.xlu0 %867
      %869 = vrot.lane.b32.xlu0 %v769, 126
      %v870 = vpop.permute.xlu0 %869
      %871 = vrot.lane.b32.xlu0 %v770, 126
      %v872 = vpop.permute.xlu0 %871
      %873 = vrot.lane.b32.xlu0 %v771, 126
      %v874 = vpop.permute.xlu0 %873
      %875 = vrot.lane.b32.xlu0 %v772, 126
      %v876 = vpop.permute.xlu0 %875
      %877 = vrot.lane.b32.xlu0 %v773, 126
      %v878 = vpop.permute.xlu0 %877
      %879 = vrot.lane.b32.xlu0 %v774, 126
      %v880 = vpop.permute.xlu0 %879
      %881 = vrot.lane.b32.xlu0 %v775, 126
      %v882 = vpop.permute.xlu0 %881
      %883 = vrot.lane.b32.xlu0 %v776, 126
      %v884 = vpop.permute.xlu0 %883
      %885 = vrot.lane.b32.xlu0 %v777, 126
      %v886 = vpop.permute.xlu0 %885
      %887 = vrot.lane.b32.xlu0 %v778, 126
      %v888 = vpop.permute.xlu0 %887
      %889 = vrot.lane.b32.xlu0 %v779, 126
      %v890 = vpop.permute.xlu0 %889
      %891 = vrot.lane.b32.xlu0 %v780, 126
      %v892 = vpop.permute.xlu0 %891
      %v909 = vadd.f32 %v845, %v862
      %v910 = vadd.f32 %v846, %v864
      %v911 = vadd.f32 %v847, %v866
      %v912 = vadd.f32 %v848, %v868
      %v913 = vadd.f32 %v849, %v870
      %v914 = vadd.f32 %v850, %v872
      %v915 = vadd.f32 %v851, %v874
      %v916 = vadd.f32 %v852, %v876
      %v917 = vadd.f32 %v853, %v878
      %v918 = vadd.f32 %v854, %v880
      %v919 = vadd.f32 %v855, %v882
      %v920 = vadd.f32 %v856, %v884
      %v921 = vadd.f32 %v857, %v886
      %v922 = vadd.f32 %v858, %v888
      %v923 = vadd.f32 %v859, %v890
      %v924 = vadd.f32 %v860, %v892
      %v925 = vmul.f32 %v315, %v315
      %v927 = vrot.slane %v925, 1
      %v929 = vadd.f32 %v925, %v927
      %v930 = vrot.slane %v925, 2
      %v932 = vadd.f32 %v929, %v930
      %934 = vset.pattern.permute.xlu0 0
      %935 = vperm.xlu0 %934, %v283
      %v936 = vpop.permute.xlu0 %935
      %939 = vset.pattern.permute.xlu0 0
      %940 = vperm.xlu0 %939, %v284
      %v941 = vpop.permute.xlu0 %940
      %944 = vset.pattern.permute.xlu0 0
      %945 = vperm.xlu0 %944, %v285
      %v946 = vpop.permute.xlu0 %945
      %949 = vset.pattern.permute.xlu0 0
      %950 = vperm.xlu0 %949, %v286
      %v951 = vpop.permute.xlu0 %950
      %954 = vset.pattern.permute.xlu0 0
      %955 = vperm.xlu0 %954, %v287
      %v956 = vpop.permute.xlu0 %955
      %959 = vset.pattern.permute.xlu0 0
      %960 = vperm.xlu0 %959, %v288
      %v961 = vpop.permute.xlu0 %960
      %964 = vset.pattern.permute.xlu0 0
      %965 = vperm.xlu0 %964, %v289
      %v966 = vpop.permute.xlu0 %965
      %969 = vset.pattern.permute.xlu0 0
      %970 = vperm.xlu0 %969, %v290
      %v971 = vpop.permute.xlu0 %970
      %974 = vset.pattern.permute.xlu0 0
      %975 = vperm.xlu0 %974, %v291
      %v976 = vpop.permute.xlu0 %975
      %979 = vset.pattern.permute.xlu0 0
      %980 = vperm.xlu0 %979, %v292
      %v981 = vpop.permute.xlu0 %980
      %984 = vset.pattern.permute.xlu0 0
      %985 = vperm.xlu0 %984, %v293
      %v986 = vpop.permute.xlu0 %985
      %989 = vset.pattern.permute.xlu0 0
      %990 = vperm.xlu0 %989, %v294
      %v991 = vpop.permute.xlu0 %990
      %994 = vset.pattern.permute.xlu0 0
      %995 = vperm.xlu0 %994, %v295
      %v996 = vpop.permute.xlu0 %995
      %999 = vset.pattern.permute.xlu0 0
      %1000 = vperm.xlu0 %999, %v296
      %v1001 = vpop.permute.xlu0 %1000
      %1004 = vset.pattern.permute.xlu0 0
      %1005 = vperm.xlu0 %1004, %v297
      %v1006 = vpop.permute.xlu0 %1005
      %1009 = vset.pattern.permute.xlu0 0
      %1010 = vperm.xlu0 %1009, %v298
      %v1011 = vpop.permute.xlu0 %1010
      %v1013 = vlaneseq
      %v1014 = vshrl.u32 %v1013, 7
      %v1015 = vsub.s32 0, %v1014
      %v1016 = vrot.slane %v315, %v1015
      %v1017 = vmul.f32 %v936, %v1016
      %v1018 = vmul.f32 %v941, %v1016
      %v1019 = vmul.f32 %v946, %v1016
      %v1020 = vmul.f32 %v951, %v1016
      %v1021 = vmul.f32 %v956, %v1016
      %v1022 = vmul.f32 %v961, %v1016
      %v1023 = vmul.f32 %v966, %v1016
      %v1024 = vmul.f32 %v971, %v1016
      %v1025 = vmul.f32 %v976, %v1016
      %v1026 = vmul.f32 %v981, %v1016
      %v1027 = vmul.f32 %v986, %v1016
      %v1028 = vmul.f32 %v991, %v1016
      %v1029 = vmul.f32 %v996, %v1016
      %v1030 = vmul.f32 %v1001, %v1016
      %v1031 = vmul.f32 %v1006, %v1016
      %v1032 = vmul.f32 %v1011, %v1016
      %1033 = vset.pattern.permute.xlu0 1
      %1034 = vperm.xlu0 %1033, %v283
      %v1035 = vpop.permute.xlu0 %1034
      %1037 = vset.pattern.permute.xlu0 1
      %1038 = vperm.xlu0 %1037, %v284
      %v1039 = vpop.permute.xlu0 %1038
      %1041 = vset.pattern.permute.xlu0 1
      %1042 = vperm.xlu0 %1041, %v285
      %v1043 = vpop.permute.xlu0 %1042
      %1045 = vset.pattern.permute.xlu0 1
      %1046 = vperm.xlu0 %1045, %v286
      %v1047 = vpop.permute.xlu0 %1046
      %1049 = vset.pattern.permute.xlu0 1
      %1050 = vperm.xlu0 %1049, %v287
      %v1051 = vpop.permute.xlu0 %1050
      %1053 = vset.pattern.permute.xlu0 1
      %1054 = vperm.xlu0 %1053, %v288
      %v1055 = vpop.permute.xlu0 %1054
      %1057 = vset.pattern.permute.xlu0 1
      %1058 = vperm.xlu0 %1057, %v289
      %v1059 = vpop.permute.xlu0 %1058
      %1061 = vset.pattern.permute.xlu0 1
      %1062 = vperm.xlu0 %1061, %v290
      %v1063 = vpop.permute.xlu0 %1062
      %1065 = vset.pattern.permute.xlu0 1
      %1066 = vperm.xlu0 %1065, %v291
      %v1067 = vpop.permute.xlu0 %1066
      %1069 = vset.pattern.permute.xlu0 1
      %1070 = vperm.xlu0 %1069, %v292
      %v1071 = vpop.permute.xlu0 %1070
      %1073 = vset.pattern.permute.xlu0 1
      %1074 = vperm.xlu0 %1073, %v293
      %v1075 = vpop.permute.xlu0 %1074
      %1077 = vset.pattern.permute.xlu0 1
      %1078 = vperm.xlu0 %1077, %v294
      %v1079 = vpop.permute.xlu0 %1078
      %1081 = vset.pattern.permute.xlu0 1
      %1082 = vperm.xlu0 %1081, %v295
      %v1083 = vpop.permute.xlu0 %1082
      %1085 = vset.pattern.permute.xlu0 1
      %1086 = vperm.xlu0 %1085, %v296
      %v1087 = vpop.permute.xlu0 %1086
      %1089 = vset.pattern.permute.xlu0 1
      %1090 = vperm.xlu0 %1089, %v297
      %v1091 = vpop.permute.xlu0 %1090
      %1093 = vset.pattern.permute.xlu0 1
      %1094 = vperm.xlu0 %1093, %v298
      %v1095 = vpop.permute.xlu0 %1094
      %v1097 = vlaneseq
      %v1098 = vshrl.u32 %v1097, 7
      %v1099 = vsub.s32 1, %v1098
      %v1100 = vrot.slane %v315, %v1099
      %v1101 = vmul.f32 %v1035, %v1100
      %v1102 = vmul.f32 %v1039, %v1100
      %v1103 = vmul.f32 %v1043, %v1100
      %v1104 = vmul.f32 %v1047, %v1100
      %v1105 = vmul.f32 %v1051, %v1100
      %v1106 = vmul.f32 %v1055, %v1100
      %v1107 = vmul.f32 %v1059, %v1100
      %v1108 = vmul.f32 %v1063, %v1100
      %v1109 = vmul.f32 %v1067, %v1100
      %v1110 = vmul.f32 %v1071, %v1100
      %v1111 = vmul.f32 %v1075, %v1100
      %v1112 = vmul.f32 %v1079, %v1100
      %v1113 = vmul.f32 %v1083, %v1100
      %v1114 = vmul.f32 %v1087, %v1100
      %v1115 = vmul.f32 %v1091, %v1100
      %v1116 = vmul.f32 %v1095, %v1100
      %v1117 = vadd.f32 %v1017, %v1101
      %v1118 = vadd.f32 %v1018, %v1102
      %v1119 = vadd.f32 %v1019, %v1103
      %v1120 = vadd.f32 %v1020, %v1104
      %v1121 = vadd.f32 %v1021, %v1105
      %v1122 = vadd.f32 %v1022, %v1106
      %v1123 = vadd.f32 %v1023, %v1107
      %v1124 = vadd.f32 %v1024, %v1108
      %v1125 = vadd.f32 %v1025, %v1109
      %v1126 = vadd.f32 %v1026, %v1110
      %v1127 = vadd.f32 %v1027, %v1111
      %v1128 = vadd.f32 %v1028, %v1112
      %v1129 = vadd.f32 %v1029, %v1113
      %v1130 = vadd.f32 %v1030, %v1114
      %v1131 = vadd.f32 %v1031, %v1115
      %v1132 = vadd.f32 %v1032, %v1116
      %1133 = vset.pattern.permute.xlu0 2
      %1134 = vperm.xlu0 %1133, %v283
      %v1135 = vpop.permute.xlu0 %1134
      %1137 = vset.pattern.permute.xlu0 2
      %1138 = vperm.xlu0 %1137, %v284
      %v1139 = vpop.permute.xlu0 %1138
      %1141 = vset.pattern.permute.xlu0 2
      %1142 = vperm.xlu0 %1141, %v285
      %v1143 = vpop.permute.xlu0 %1142
      %1145 = vset.pattern.permute.xlu0 2
      %1146 = vperm.xlu0 %1145, %v286
      %v1147 = vpop.permute.xlu0 %1146
      %1149 = vset.pattern.permute.xlu0 2
      %1150 = vperm.xlu0 %1149, %v287
      %v1151 = vpop.permute.xlu0 %1150
      %1153 = vset.pattern.permute.xlu0 2
      %1154 = vperm.xlu0 %1153, %v288
      %v1155 = vpop.permute.xlu0 %1154
      %1157 = vset.pattern.permute.xlu0 2
      %1158 = vperm.xlu0 %1157, %v289
      %v1159 = vpop.permute.xlu0 %1158
      %1161 = vset.pattern.permute.xlu0 2
      %1162 = vperm.xlu0 %1161, %v290
      %v1163 = vpop.permute.xlu0 %1162
      %1165 = vset.pattern.permute.xlu0 2
      %1166 = vperm.xlu0 %1165, %v291
      %v1167 = vpop.permute.xlu0 %1166
      %1169 = vset.pattern.permute.xlu0 2
      %1170 = vperm.xlu0 %1169, %v292
      %v1171 = vpop.permute.xlu0 %1170
      %1173 = vset.pattern.permute.xlu0 2
      %1174 = vperm.xlu0 %1173, %v293
      %v1175 = vpop.permute.xlu0 %1174
      %1177 = vset.pattern.permute.xlu0 2
      %1178 = vperm.xlu0 %1177, %v294
      %v1179 = vpop.permute.xlu0 %1178
      %1181 = vset.pattern.permute.xlu0 2
      %1182 = vperm.xlu0 %1181, %v295
      %v1183 = vpop.permute.xlu0 %1182
      %1185 = vset.pattern.permute.xlu0 2
      %1186 = vperm.xlu0 %1185, %v296
      %v1187 = vpop.permute.xlu0 %1186
      %1189 = vset.pattern.permute.xlu0 2
      %1190 = vperm.xlu0 %1189, %v297
      %v1191 = vpop.permute.xlu0 %1190
      %1193 = vset.pattern.permute.xlu0 2
      %1194 = vperm.xlu0 %1193, %v298
      %v1195 = vpop.permute.xlu0 %1194
      %v1197 = vlaneseq
      %v1198 = vshrl.u32 %v1197, 7
      %v1199 = vsub.s32 2, %v1198
      %v1200 = vrot.slane %v315, %v1199
      %v1201 = vmul.f32 %v1135, %v1200
      %v1202 = vmul.f32 %v1139, %v1200
      %v1203 = vmul.f32 %v1143, %v1200
      %v1204 = vmul.f32 %v1147, %v1200
      %v1205 = vmul.f32 %v1151, %v1200
      %v1206 = vmul.f32 %v1155, %v1200
      %v1207 = vmul.f32 %v1159, %v1200
      %v1208 = vmul.f32 %v1163, %v1200
      %v1209 = vmul.f32 %v1167, %v1200
      %v1210 = vmul.f32 %v1171, %v1200
      %v1211 = vmul.f32 %v1175, %v1200
      %v1212 = vmul.f32 %v1179, %v1200
      %v1213 = vmul.f32 %v1183, %v1200
      %v1214 = vmul.f32 %v1187, %v1200
      %v1215 = vmul.f32 %v1191, %v1200
      %v1216 = vmul.f32 %v1195, %v1200
      %v1217 = vadd.f32 %v1117, %v1201
      %v1218 = vadd.f32 %v1118, %v1202
      %v1219 = vadd.f32 %v1119, %v1203
      %v1220 = vadd.f32 %v1120, %v1204
      %v1221 = vadd.f32 %v1121, %v1205
      %v1222 = vadd.f32 %v1122, %v1206
      %v1223 = vadd.f32 %v1123, %v1207
      %v1224 = vadd.f32 %v1124, %v1208
      %v1225 = vadd.f32 %v1125, %v1209
      %v1226 = vadd.f32 %v1126, %v1210
      %v1227 = vadd.f32 %v1127, %v1211
      %v1228 = vadd.f32 %v1128, %v1212
      %v1229 = vadd.f32 %v1129, %v1213
      %v1230 = vadd.f32 %v1130, %v1214
      %v1231 = vadd.f32 %v1131, %v1215
      %v1232 = vadd.f32 %v1132, %v1216
      %1234 = vset.pattern.permute.xlu0 0
      %1235 = vperm.xlu0 %1234, %v909
      %v1236 = vpop.permute.xlu0 %1235
      %1239 = vset.pattern.permute.xlu0 0
      %1240 = vperm.xlu0 %1239, %v910
      %v1241 = vpop.permute.xlu0 %1240
      %1244 = vset.pattern.permute.xlu0 0
      %1245 = vperm.xlu0 %1244, %v911
      %v1246 = vpop.permute.xlu0 %1245
      %1249 = vset.pattern.permute.xlu0 0
      %1250 = vperm.xlu0 %1249, %v912
      %v1251 = vpop.permute.xlu0 %1250
      %1254 = vset.pattern.permute.xlu0 0
      %1255 = vperm.xlu0 %1254, %v913
      %v1256 = vpop.permute.xlu0 %1255
      %1259 = vset.pattern.permute.xlu0 0
      %1260 = vperm.xlu0 %1259, %v914
      %v1261 = vpop.permute.xlu0 %1260
      %1264 = vset.pattern.permute.xlu0 0
      %1265 = vperm.xlu0 %1264, %v915
      %v1266 = vpop.permute.xlu0 %1265
      %1269 = vset.pattern.permute.xlu0 0
      %1270 = vperm.xlu0 %1269, %v916
      %v1271 = vpop.permute.xlu0 %1270
      %1274 = vset.pattern.permute.xlu0 0
      %1275 = vperm.xlu0 %1274, %v917
      %v1276 = vpop.permute.xlu0 %1275
      %1279 = vset.pattern.permute.xlu0 0
      %1280 = vperm.xlu0 %1279, %v918
      %v1281 = vpop.permute.xlu0 %1280
      %1284 = vset.pattern.permute.xlu0 0
      %1285 = vperm.xlu0 %1284, %v919
      %v1286 = vpop.permute.xlu0 %1285
      %1289 = vset.pattern.permute.xlu0 0
      %1290 = vperm.xlu0 %1289, %v920
      %v1291 = vpop.permute.xlu0 %1290
      %1294 = vset.pattern.permute.xlu0 0
      %1295 = vperm.xlu0 %1294, %v921
      %v1296 = vpop.permute.xlu0 %1295
      %1299 = vset.pattern.permute.xlu0 0
      %1300 = vperm.xlu0 %1299, %v922
      %v1301 = vpop.permute.xlu0 %1300
      %1304 = vset.pattern.permute.xlu0 0
      %1305 = vperm.xlu0 %1304, %v923
      %v1306 = vpop.permute.xlu0 %1305
      %1309 = vset.pattern.permute.xlu0 0
      %1310 = vperm.xlu0 %1309, %v924
      %v1311 = vpop.permute.xlu0 %1310
      %v1313 = vlaneseq
      %v1314 = vshrl.u32 %v1313, 7
      %v1315 = vsub.s32 0, %v1314
      %v1316 = vrot.slane %v932, %v1315
      %v1317 = vadd.f32 %v1236, %v1316
      %v1318 = vadd.f32 %v1241, %v1316
      %v1319 = vadd.f32 %v1246, %v1316
      %v1320 = vadd.f32 %v1251, %v1316
      %v1321 = vadd.f32 %v1256, %v1316
      %v1322 = vadd.f32 %v1261, %v1316
      %v1323 = vadd.f32 %v1266, %v1316
      %v1324 = vadd.f32 %v1271, %v1316
      %v1325 = vadd.f32 %v1276, %v1316
      %v1326 = vadd.f32 %v1281, %v1316
      %v1327 = vadd.f32 %v1286, %v1316
      %v1328 = vadd.f32 %v1291, %v1316
      %v1329 = vadd.f32 %v1296, %v1316
      %v1330 = vadd.f32 %v1301, %v1316
      %v1331 = vadd.f32 %v1306, %v1316
      %v1332 = vadd.f32 %v1311, %v1316
      %v1333 = vmul.f32 %v1217, 2.0
      %v1334 = vmul.f32 %v1218, 2.0
      %v1335 = vmul.f32 %v1219, 2.0
      %v1336 = vmul.f32 %v1220, 2.0
      %v1337 = vmul.f32 %v1221, 2.0
      %v1338 = vmul.f32 %v1222, 2.0
      %v1339 = vmul.f32 %v1223, 2.0
      %v1340 = vmul.f32 %v1224, 2.0
      %v1341 = vmul.f32 %v1225, 2.0
      %v1342 = vmul.f32 %v1226, 2.0
      %v1343 = vmul.f32 %v1227, 2.0
      %v1344 = vmul.f32 %v1228, 2.0
      %v1345 = vmul.f32 %v1229, 2.0
      %v1346 = vmul.f32 %v1230, 2.0
      %v1347 = vmul.f32 %v1231, 2.0
      %v1348 = vmul.f32 %v1232, 2.0
      %v1349 = vsub.f32 %v1317, %v1333
      %v1350 = vsub.f32 %v1318, %v1334
      %v1351 = vsub.f32 %v1319, %v1335
      %v1352 = vsub.f32 %v1320, %v1336
      %v1353 = vsub.f32 %v1321, %v1337
      %v1354 = vsub.f32 %v1322, %v1338
      %v1355 = vsub.f32 %v1323, %v1339
      %v1356 = vsub.f32 %v1324, %v1340
      %v1357 = vsub.f32 %v1325, %v1341
      %v1358 = vsub.f32 %v1326, %v1342
      %v1359 = vsub.f32 %v1327, %v1343
      %v1360 = vsub.f32 %v1328, %v1344
      %v1361 = vsub.f32 %v1329, %v1345
      %v1362 = vsub.f32 %v1330, %v1346
      %v1363 = vsub.f32 %v1331, %v1347
      %v1364 = vsub.f32 %v1332, %v1348
      %v1365 = vmax.f32 %v1349, 0.0
      %v1366 = vmax.f32 %v1350, 0.0
      %v1367 = vmax.f32 %v1351, 0.0
      %v1368 = vmax.f32 %v1352, 0.0
      %v1369 = vmax.f32 %v1353, 0.0
      %v1370 = vmax.f32 %v1354, 0.0
      %v1371 = vmax.f32 %v1355, 0.0
      %v1372 = vmax.f32 %v1356, 0.0
      %v1373 = vmax.f32 %v1357, 0.0
      %v1374 = vmax.f32 %v1358, 0.0
      %v1375 = vmax.f32 %v1359, 0.0
      %v1376 = vmax.f32 %v1360, 0.0
      %v1377 = vmax.f32 %v1361, 0.0
      %v1378 = vmax.f32 %v1362, 0.0
      %v1379 = vmax.f32 %v1363, 0.0
      %v1380 = vmax.f32 %v1364, 0.0
      %1382 = vset.pattern.permute.xlu0 0
      %1383 = vperm.xlu0 %1382, %v749
      %v1384 = vpop.permute.xlu0 %1383
      %1387 = vset.pattern.permute.xlu0 0
      %1388 = vperm.xlu0 %1387, %v750
      %v1389 = vpop.permute.xlu0 %1388
      %1392 = vset.pattern.permute.xlu0 0
      %1393 = vperm.xlu0 %1392, %v751
      %v1394 = vpop.permute.xlu0 %1393
      %1397 = vset.pattern.permute.xlu0 0
      %1398 = vperm.xlu0 %1397, %v752
      %v1399 = vpop.permute.xlu0 %1398
      %1402 = vset.pattern.permute.xlu0 0
      %1403 = vperm.xlu0 %1402, %v753
      %v1404 = vpop.permute.xlu0 %1403
      %1407 = vset.pattern.permute.xlu0 0
      %1408 = vperm.xlu0 %1407, %v754
      %v1409 = vpop.permute.xlu0 %1408
      %1412 = vset.pattern.permute.xlu0 0
      %1413 = vperm.xlu0 %1412, %v755
      %v1414 = vpop.permute.xlu0 %1413
      %1417 = vset.pattern.permute.xlu0 0
      %1418 = vperm.xlu0 %1417, %v756
      %v1419 = vpop.permute.xlu0 %1418
      %1422 = vset.pattern.permute.xlu0 0
      %1423 = vperm.xlu0 %1422, %v757
      %v1424 = vpop.permute.xlu0 %1423
      %1427 = vset.pattern.permute.xlu0 0
      %1428 = vperm.xlu0 %1427, %v758
      %v1429 = vpop.permute.xlu0 %1428
      %1432 = vset.pattern.permute.xlu0 0
      %1433 = vperm.xlu0 %1432, %v759
      %v1434 = vpop.permute.xlu0 %1433
      %1437 = vset.pattern.permute.xlu0 0
      %1438 = vperm.xlu0 %1437, %v760
      %v1439 = vpop.permute.xlu0 %1438
      %1442 = vset.pattern.permute.xlu0 0
      %1443 = vperm.xlu0 %1442, %v761
      %v1444 = vpop.permute.xlu0 %1443
      %1447 = vset.pattern.permute.xlu0 0
      %1448 = vperm.xlu0 %1447, %v762
      %v1449 = vpop.permute.xlu0 %1448
      %1452 = vset.pattern.permute.xlu0 0
      %1453 = vperm.xlu0 %1452, %v763
      %v1454 = vpop.permute.xlu0 %1453
      %1457 = vset.pattern.permute.xlu0 0
      %1458 = vperm.xlu0 %1457, %v764
      %v1459 = vpop.permute.xlu0 %1458
      %v1461 = vadd.f32 %v1365, %v1384
      %v1462 = vadd.f32 %v1366, %v1389
      %v1463 = vadd.f32 %v1367, %v1394
      %v1464 = vadd.f32 %v1368, %v1399
      %v1465 = vadd.f32 %v1369, %v1404
      %v1466 = vadd.f32 %v1370, %v1409
      %v1467 = vadd.f32 %v1371, %v1414
      %v1468 = vadd.f32 %v1372, %v1419
      %v1469 = vadd.f32 %v1373, %v1424
      %v1470 = vadd.f32 %v1374, %v1429
      %v1471 = vadd.f32 %v1375, %v1434
      %v1472 = vadd.f32 %v1376, %v1439
      %v1473 = vadd.f32 %v1377, %v1444
      %v1474 = vadd.f32 %v1378, %v1449
      %v1475 = vadd.f32 %v1379, %v1454
      %v1476 = vadd.f32 %v1380, %v1459
      %v1477 = vadd.f32 %v1461, %v323
      %v1478 = vadd.f32 %v1462, %v323
      %v1479 = vadd.f32 %v1463, %v323
      %v1480 = vadd.f32 %v1464, %v323
      %v1481 = vadd.f32 %v1465, %v323
      %v1482 = vadd.f32 %v1466, %v323
      %v1483 = vadd.f32 %v1467, %v323
      %v1484 = vadd.f32 %v1468, %v323
      %v1485 = vadd.f32 %v1469, %v323
      %v1486 = vadd.f32 %v1470, %v323
      %v1487 = vadd.f32 %v1471, %v323
      %v1488 = vadd.f32 %v1472, %v323
      %v1489 = vadd.f32 %v1473, %v323
      %v1490 = vadd.f32 %v1474, %v323
      %v1491 = vadd.f32 %v1475, %v323
      %v1492 = vadd.f32 %v1476, %v323
      %v1493 = vmul.f32 %v299, %v299
      %v1494 = vmul.f32 %v300, %v300
      %v1495 = vmul.f32 %v301, %v301
      %v1496 = vmul.f32 %v302, %v302
      %v1497 = vmul.f32 %v303, %v303
      %v1498 = vmul.f32 %v304, %v304
      %v1499 = vmul.f32 %v305, %v305
      %v1500 = vmul.f32 %v306, %v306
      %v1501 = vmul.f32 %v307, %v307
      %v1502 = vmul.f32 %v308, %v308
      %v1503 = vmul.f32 %v309, %v309
      %v1504 = vmul.f32 %v310, %v310
      %v1505 = vmul.f32 %v311, %v311
      %v1506 = vmul.f32 %v312, %v312
      %v1507 = vmul.f32 %v313, %v313
      %v1508 = vmul.f32 %v314, %v314
      %1525 = vrot.lane.b32.xlu0 %v1493, 127
      %v1526 = vpop.permute.xlu0 %1525
      %1527 = vrot.lane.b32.xlu0 %v1494, 127
      %v1528 = vpop.permute.xlu0 %1527
      %1529 = vrot.lane.b32.xlu0 %v1495, 127
      %v1530 = vpop.permute.xlu0 %1529
      %1531 = vrot.lane.b32.xlu0 %v1496, 127
      %v1532 = vpop.permute.xlu0 %1531
      %1533 = vrot.lane.b32.xlu0 %v1497, 127
      %v1534 = vpop.permute.xlu0 %1533
      %1535 = vrot.lane.b32.xlu0 %v1498, 127
      %v1536 = vpop.permute.xlu0 %1535
      %1537 = vrot.lane.b32.xlu0 %v1499, 127
      %v1538 = vpop.permute.xlu0 %1537
      %1539 = vrot.lane.b32.xlu0 %v1500, 127
      %v1540 = vpop.permute.xlu0 %1539
      %1541 = vrot.lane.b32.xlu0 %v1501, 127
      %v1542 = vpop.permute.xlu0 %1541
      %1543 = vrot.lane.b32.xlu0 %v1502, 127
      %v1544 = vpop.permute.xlu0 %1543
      %1545 = vrot.lane.b32.xlu0 %v1503, 127
      %v1546 = vpop.permute.xlu0 %1545
      %1547 = vrot.lane.b32.xlu0 %v1504, 127
      %v1548 = vpop.permute.xlu0 %1547
      %1549 = vrot.lane.b32.xlu0 %v1505, 127
      %v1550 = vpop.permute.xlu0 %1549
      %1551 = vrot.lane.b32.xlu0 %v1506, 127
      %v1552 = vpop.permute.xlu0 %1551
      %1553 = vrot.lane.b32.xlu0 %v1507, 127
      %v1554 = vpop.permute.xlu0 %1553
      %1555 = vrot.lane.b32.xlu0 %v1508, 127
      %v1556 = vpop.permute.xlu0 %1555
      %v1573 = vadd.f32 %v1493, %v1526
      %v1574 = vadd.f32 %v1494, %v1528
      %v1575 = vadd.f32 %v1495, %v1530
      %v1576 = vadd.f32 %v1496, %v1532
      %v1577 = vadd.f32 %v1497, %v1534
      %v1578 = vadd.f32 %v1498, %v1536
      %v1579 = vadd.f32 %v1499, %v1538
      %v1580 = vadd.f32 %v1500, %v1540
      %v1581 = vadd.f32 %v1501, %v1542
      %v1582 = vadd.f32 %v1502, %v1544
      %v1583 = vadd.f32 %v1503, %v1546
      %v1584 = vadd.f32 %v1504, %v1548
      %v1585 = vadd.f32 %v1505, %v1550
      %v1586 = vadd.f32 %v1506, %v1552
      %v1587 = vadd.f32 %v1507, %v1554
      %v1588 = vadd.f32 %v1508, %v1556
      %1589 = vrot.lane.b32.xlu0 %v1493, 126
      %v1590 = vpop.permute.xlu0 %1589
      %1591 = vrot.lane.b32.xlu0 %v1494, 126
      %v1592 = vpop.permute.xlu0 %1591
      %1593 = vrot.lane.b32.xlu0 %v1495, 126
      %v1594 = vpop.permute.xlu0 %1593
      %1595 = vrot.lane.b32.xlu0 %v1496, 126
      %v1596 = vpop.permute.xlu0 %1595
      %1597 = vrot.lane.b32.xlu0 %v1497, 126
      %v1598 = vpop.permute.xlu0 %1597
      %1599 = vrot.lane.b32.xlu0 %v1498, 126
      %v1600 = vpop.permute.xlu0 %1599
      %1601 = vrot.lane.b32.xlu0 %v1499, 126
      %v1602 = vpop.permute.xlu0 %1601
      %1603 = vrot.lane.b32.xlu0 %v1500, 126
      %v1604 = vpop.permute.xlu0 %1603
      %1605 = vrot.lane.b32.xlu0 %v1501, 126
      %v1606 = vpop.permute.xlu0 %1605
      %1607 = vrot.lane.b32.xlu0 %v1502, 126
      %v1608 = vpop.permute.xlu0 %1607
      %1609 = vrot.lane.b32.xlu0 %v1503, 126
      %v1610 = vpop.permute.xlu0 %1609
      %1611 = vrot.lane.b32.xlu0 %v1504, 126
      %v1612 = vpop.permute.xlu0 %1611
      %1613 = vrot.lane.b32.xlu0 %v1505, 126
      %v1614 = vpop.permute.xlu0 %1613
      %1615 = vrot.lane.b32.xlu0 %v1506, 126
      %v1616 = vpop.permute.xlu0 %1615
      %1617 = vrot.lane.b32.xlu0 %v1507, 126
      %v1618 = vpop.permute.xlu0 %1617
      %1619 = vrot.lane.b32.xlu0 %v1508, 126
      %v1620 = vpop.permute.xlu0 %1619
      %v1637 = vadd.f32 %v1573, %v1590
      %v1638 = vadd.f32 %v1574, %v1592
      %v1639 = vadd.f32 %v1575, %v1594
      %v1640 = vadd.f32 %v1576, %v1596
      %v1641 = vadd.f32 %v1577, %v1598
      %v1642 = vadd.f32 %v1578, %v1600
      %v1643 = vadd.f32 %v1579, %v1602
      %v1644 = vadd.f32 %v1580, %v1604
      %v1645 = vadd.f32 %v1581, %v1606
      %v1646 = vadd.f32 %v1582, %v1608
      %v1647 = vadd.f32 %v1583, %v1610
      %v1648 = vadd.f32 %v1584, %v1612
      %v1649 = vadd.f32 %v1585, %v1614
      %v1650 = vadd.f32 %v1586, %v1616
      %v1651 = vadd.f32 %v1587, %v1618
      %v1652 = vadd.f32 %v1588, %v1620
      %v1653 = vmax.f32 %v1637, 1e-12
      %v1654 = vmax.f32 %v1638, 1e-12
      %v1655 = vmax.f32 %v1639, 1e-12
      %v1656 = vmax.f32 %v1640, 1e-12
      %v1657 = vmax.f32 %v1641, 1e-12
      %v1658 = vmax.f32 %v1642, 1e-12
      %v1659 = vmax.f32 %v1643, 1e-12
      %v1660 = vmax.f32 %v1644, 1e-12
      %v1661 = vmax.f32 %v1645, 1e-12
      %v1662 = vmax.f32 %v1646, 1e-12
      %v1663 = vmax.f32 %v1647, 1e-12
      %v1664 = vmax.f32 %v1648, 1e-12
      %v1665 = vmax.f32 %v1649, 1e-12
      %v1666 = vmax.f32 %v1650, 1e-12
      %v1667 = vmax.f32 %v1651, 1e-12
      %v1668 = vmax.f32 %v1652, 1e-12
      %v1669 = vrsqrt.pop %v1653
      %v1670 = vrsqrt.pop %v1654
      %v1671 = vrsqrt.pop %v1655
      %v1672 = vrsqrt.pop %v1656
      %v1673 = vrsqrt.pop %v1657
      %v1674 = vrsqrt.pop %v1658
      %v1675 = vrsqrt.pop %v1659
      %v1676 = vrsqrt.pop %v1660
      %v1677 = vrsqrt.pop %v1661
      %v1678 = vrsqrt.pop %v1662
      %v1679 = vrsqrt.pop %v1663
      %v1680 = vrsqrt.pop %v1664
      %v1681 = vrsqrt.pop %v1665
      %v1682 = vrsqrt.pop %v1666
      %v1683 = vrsqrt.pop %v1667
      %v1684 = vrsqrt.pop %v1668
      %v1685 = vmul.f32 %v316, %v316
      %v1687 = vrot.slane %v1685, 1
      %v1689 = vadd.f32 %v1685, %v1687
      %v1690 = vrot.slane %v1685, 2
      %v1692 = vadd.f32 %v1689, %v1690
      %v1693 = vmax.f32 %v1692, 1e-12
      %v1694 = vrsqrt.pop %v1693
      %1696 = vset.pattern.permute.xlu0 0
      %1697 = vperm.xlu0 %1696, %v299
      %v1698 = vpop.permute.xlu0 %1697
      %1701 = vset.pattern.permute.xlu0 0
      %1702 = vperm.xlu0 %1701, %v300
      %v1703 = vpop.permute.xlu0 %1702
      %1706 = vset.pattern.permute.xlu0 0
      %1707 = vperm.xlu0 %1706, %v301
      %v1708 = vpop.permute.xlu0 %1707
      %1711 = vset.pattern.permute.xlu0 0
      %1712 = vperm.xlu0 %1711, %v302
      %v1713 = vpop.permute.xlu0 %1712
      %1716 = vset.pattern.permute.xlu0 0
      %1717 = vperm.xlu0 %1716, %v303
      %v1718 = vpop.permute.xlu0 %1717
      %1721 = vset.pattern.permute.xlu0 0
      %1722 = vperm.xlu0 %1721, %v304
      %v1723 = vpop.permute.xlu0 %1722
      %1726 = vset.pattern.permute.xlu0 0
      %1727 = vperm.xlu0 %1726, %v305
      %v1728 = vpop.permute.xlu0 %1727
      %1731 = vset.pattern.permute.xlu0 0
      %1732 = vperm.xlu0 %1731, %v306
      %v1733 = vpop.permute.xlu0 %1732
      %1736 = vset.pattern.permute.xlu0 0
      %1737 = vperm.xlu0 %1736, %v307
      %v1738 = vpop.permute.xlu0 %1737
      %1741 = vset.pattern.permute.xlu0 0
      %1742 = vperm.xlu0 %1741, %v308
      %v1743 = vpop.permute.xlu0 %1742
      %1746 = vset.pattern.permute.xlu0 0
      %1747 = vperm.xlu0 %1746, %v309
      %v1748 = vpop.permute.xlu0 %1747
      %1751 = vset.pattern.permute.xlu0 0
      %1752 = vperm.xlu0 %1751, %v310
      %v1753 = vpop.permute.xlu0 %1752
      %1756 = vset.pattern.permute.xlu0 0
      %1757 = vperm.xlu0 %1756, %v311
      %v1758 = vpop.permute.xlu0 %1757
      %1761 = vset.pattern.permute.xlu0 0
      %1762 = vperm.xlu0 %1761, %v312
      %v1763 = vpop.permute.xlu0 %1762
      %1766 = vset.pattern.permute.xlu0 0
      %1767 = vperm.xlu0 %1766, %v313
      %v1768 = vpop.permute.xlu0 %1767
      %1771 = vset.pattern.permute.xlu0 0
      %1772 = vperm.xlu0 %1771, %v314
      %v1773 = vpop.permute.xlu0 %1772
      %v1775 = vlaneseq
      %v1776 = vshrl.u32 %v1775, 7
      %v1777 = vsub.s32 0, %v1776
      %v1778 = vrot.slane %v316, %v1777
      %v1779 = vmul.f32 %v1698, %v1778
      %v1780 = vmul.f32 %v1703, %v1778
      %v1781 = vmul.f32 %v1708, %v1778
      %v1782 = vmul.f32 %v1713, %v1778
      %v1783 = vmul.f32 %v1718, %v1778
      %v1784 = vmul.f32 %v1723, %v1778
      %v1785 = vmul.f32 %v1728, %v1778
      %v1786 = vmul.f32 %v1733, %v1778
      %v1787 = vmul.f32 %v1738, %v1778
      %v1788 = vmul.f32 %v1743, %v1778
      %v1789 = vmul.f32 %v1748, %v1778
      %v1790 = vmul.f32 %v1753, %v1778
      %v1791 = vmul.f32 %v1758, %v1778
      %v1792 = vmul.f32 %v1763, %v1778
      %v1793 = vmul.f32 %v1768, %v1778
      %v1794 = vmul.f32 %v1773, %v1778
      %1795 = vset.pattern.permute.xlu0 1
      %1796 = vperm.xlu0 %1795, %v299
      %v1797 = vpop.permute.xlu0 %1796
      %1799 = vset.pattern.permute.xlu0 1
      %1800 = vperm.xlu0 %1799, %v300
      %v1801 = vpop.permute.xlu0 %1800
      %1803 = vset.pattern.permute.xlu0 1
      %1804 = vperm.xlu0 %1803, %v301
      %v1805 = vpop.permute.xlu0 %1804
      %1807 = vset.pattern.permute.xlu0 1
      %1808 = vperm.xlu0 %1807, %v302
      %v1809 = vpop.permute.xlu0 %1808
      %1811 = vset.pattern.permute.xlu0 1
      %1812 = vperm.xlu0 %1811, %v303
      %v1813 = vpop.permute.xlu0 %1812
      %1815 = vset.pattern.permute.xlu0 1
      %1816 = vperm.xlu0 %1815, %v304
      %v1817 = vpop.permute.xlu0 %1816
      %1819 = vset.pattern.permute.xlu0 1
      %1820 = vperm.xlu0 %1819, %v305
      %v1821 = vpop.permute.xlu0 %1820
      %1823 = vset.pattern.permute.xlu0 1
      %1824 = vperm.xlu0 %1823, %v306
      %v1825 = vpop.permute.xlu0 %1824
      %1827 = vset.pattern.permute.xlu0 1
      %1828 = vperm.xlu0 %1827, %v307
      %v1829 = vpop.permute.xlu0 %1828
      %1831 = vset.pattern.permute.xlu0 1
      %1832 = vperm.xlu0 %1831, %v308
      %v1833 = vpop.permute.xlu0 %1832
      %1835 = vset.pattern.permute.xlu0 1
      %1836 = vperm.xlu0 %1835, %v309
      %v1837 = vpop.permute.xlu0 %1836
      %1839 = vset.pattern.permute.xlu0 1
      %1840 = vperm.xlu0 %1839, %v310
      %v1841 = vpop.permute.xlu0 %1840
      %1843 = vset.pattern.permute.xlu0 1
      %1844 = vperm.xlu0 %1843, %v311
      %v1845 = vpop.permute.xlu0 %1844
      %1847 = vset.pattern.permute.xlu0 1
      %1848 = vperm.xlu0 %1847, %v312
      %v1849 = vpop.permute.xlu0 %1848
      %1851 = vset.pattern.permute.xlu0 1
      %1852 = vperm.xlu0 %1851, %v313
      %v1853 = vpop.permute.xlu0 %1852
      %1855 = vset.pattern.permute.xlu0 1
      %1856 = vperm.xlu0 %1855, %v314
      %v1857 = vpop.permute.xlu0 %1856
      %v1859 = vlaneseq
      %v1860 = vshrl.u32 %v1859, 7
      %v1861 = vsub.s32 1, %v1860
      %v1862 = vrot.slane %v316, %v1861
      %v1863 = vmul.f32 %v1797, %v1862
      %v1864 = vmul.f32 %v1801, %v1862
      %v1865 = vmul.f32 %v1805, %v1862
      %v1866 = vmul.f32 %v1809, %v1862
      %v1867 = vmul.f32 %v1813, %v1862
      %v1868 = vmul.f32 %v1817, %v1862
      %v1869 = vmul.f32 %v1821, %v1862
      %v1870 = vmul.f32 %v1825, %v1862
      %v1871 = vmul.f32 %v1829, %v1862
      %v1872 = vmul.f32 %v1833, %v1862
      %v1873 = vmul.f32 %v1837, %v1862
      %v1874 = vmul.f32 %v1841, %v1862
      %v1875 = vmul.f32 %v1845, %v1862
      %v1876 = vmul.f32 %v1849, %v1862
      %v1877 = vmul.f32 %v1853, %v1862
      %v1878 = vmul.f32 %v1857, %v1862
      %v1879 = vadd.f32 %v1779, %v1863
      %v1880 = vadd.f32 %v1780, %v1864
      %v1881 = vadd.f32 %v1781, %v1865
      %v1882 = vadd.f32 %v1782, %v1866
      %v1883 = vadd.f32 %v1783, %v1867
      %v1884 = vadd.f32 %v1784, %v1868
      %v1885 = vadd.f32 %v1785, %v1869
      %v1886 = vadd.f32 %v1786, %v1870
      %v1887 = vadd.f32 %v1787, %v1871
      %v1888 = vadd.f32 %v1788, %v1872
      %v1889 = vadd.f32 %v1789, %v1873
      %v1890 = vadd.f32 %v1790, %v1874
      %v1891 = vadd.f32 %v1791, %v1875
      %v1892 = vadd.f32 %v1792, %v1876
      %v1893 = vadd.f32 %v1793, %v1877
      %v1894 = vadd.f32 %v1794, %v1878
      %1895 = vset.pattern.permute.xlu0 2
      %1896 = vperm.xlu0 %1895, %v299
      %v1897 = vpop.permute.xlu0 %1896
      %1899 = vset.pattern.permute.xlu0 2
      %1900 = vperm.xlu0 %1899, %v300
      %v1901 = vpop.permute.xlu0 %1900
      %1903 = vset.pattern.permute.xlu0 2
      %1904 = vperm.xlu0 %1903, %v301
      %v1905 = vpop.permute.xlu0 %1904
      %1907 = vset.pattern.permute.xlu0 2
      %1908 = vperm.xlu0 %1907, %v302
      %v1909 = vpop.permute.xlu0 %1908
      %1911 = vset.pattern.permute.xlu0 2
      %1912 = vperm.xlu0 %1911, %v303
      %v1913 = vpop.permute.xlu0 %1912
      %1915 = vset.pattern.permute.xlu0 2
      %1916 = vperm.xlu0 %1915, %v304
      %v1917 = vpop.permute.xlu0 %1916
      %1919 = vset.pattern.permute.xlu0 2
      %1920 = vperm.xlu0 %1919, %v305
      %v1921 = vpop.permute.xlu0 %1920
      %1923 = vset.pattern.permute.xlu0 2
      %1924 = vperm.xlu0 %1923, %v306
      %v1925 = vpop.permute.xlu0 %1924
      %1927 = vset.pattern.permute.xlu0 2
      %1928 = vperm.xlu0 %1927, %v307
      %v1929 = vpop.permute.xlu0 %1928
      %1931 = vset.pattern.permute.xlu0 2
      %1932 = vperm.xlu0 %1931, %v308
      %v1933 = vpop.permute.xlu0 %1932
      %1935 = vset.pattern.permute.xlu0 2
      %1936 = vperm.xlu0 %1935, %v309
      %v1937 = vpop.permute.xlu0 %1936
      %1939 = vset.pattern.permute.xlu0 2
      %1940 = vperm.xlu0 %1939, %v310
      %v1941 = vpop.permute.xlu0 %1940
      %1943 = vset.pattern.permute.xlu0 2
      %1944 = vperm.xlu0 %1943, %v311
      %v1945 = vpop.permute.xlu0 %1944
      %1947 = vset.pattern.permute.xlu0 2
      %1948 = vperm.xlu0 %1947, %v312
      %v1949 = vpop.permute.xlu0 %1948
      %1951 = vset.pattern.permute.xlu0 2
      %1952 = vperm.xlu0 %1951, %v313
      %v1953 = vpop.permute.xlu0 %1952
      %1955 = vset.pattern.permute.xlu0 2
      %1956 = vperm.xlu0 %1955, %v314
      %v1957 = vpop.permute.xlu0 %1956
      %v1959 = vlaneseq
      %v1960 = vshrl.u32 %v1959, 7
      %v1961 = vsub.s32 2, %v1960
      %v1962 = vrot.slane %v316, %v1961
      %v1963 = vmul.f32 %v1897, %v1962
      %v1964 = vmul.f32 %v1901, %v1962
      %v1965 = vmul.f32 %v1905, %v1962
      %v1966 = vmul.f32 %v1909, %v1962
      %v1967 = vmul.f32 %v1913, %v1962
      %v1968 = vmul.f32 %v1917, %v1962
      %v1969 = vmul.f32 %v1921, %v1962
      %v1970 = vmul.f32 %v1925, %v1962
      %v1971 = vmul.f32 %v1929, %v1962
      %v1972 = vmul.f32 %v1933, %v1962
      %v1973 = vmul.f32 %v1937, %v1962
      %v1974 = vmul.f32 %v1941, %v1962
      %v1975 = vmul.f32 %v1945, %v1962
      %v1976 = vmul.f32 %v1949, %v1962
      %v1977 = vmul.f32 %v1953, %v1962
      %v1978 = vmul.f32 %v1957, %v1962
      %v1979 = vadd.f32 %v1879, %v1963
      %v1980 = vadd.f32 %v1880, %v1964
      %v1981 = vadd.f32 %v1881, %v1965
      %v1982 = vadd.f32 %v1882, %v1966
      %v1983 = vadd.f32 %v1883, %v1967
      %v1984 = vadd.f32 %v1884, %v1968
      %v1985 = vadd.f32 %v1885, %v1969
      %v1986 = vadd.f32 %v1886, %v1970
      %v1987 = vadd.f32 %v1887, %v1971
      %v1988 = vadd.f32 %v1888, %v1972
      %v1989 = vadd.f32 %v1889, %v1973
      %v1990 = vadd.f32 %v1890, %v1974
      %v1991 = vadd.f32 %v1891, %v1975
      %v1992 = vadd.f32 %v1892, %v1976
      %v1993 = vadd.f32 %v1893, %v1977
      %v1994 = vadd.f32 %v1894, %v1978
      %v1995 = vand.u32 2147483647, %v1979
      %v1996 = vand.u32 2147483647, %v1980
      %v1997 = vand.u32 2147483647, %v1981
      %v1998 = vand.u32 2147483647, %v1982
      %v1999 = vand.u32 2147483647, %v1983
      %v2000 = vand.u32 2147483647, %v1984
      %v2001 = vand.u32 2147483647, %v1985
      %v2002 = vand.u32 2147483647, %v1986
      %v2003 = vand.u32 2147483647, %v1987
      %v2004 = vand.u32 2147483647, %v1988
      %v2005 = vand.u32 2147483647, %v1989
      %v2006 = vand.u32 2147483647, %v1990
      %v2007 = vand.u32 2147483647, %v1991
      %v2008 = vand.u32 2147483647, %v1992
      %v2009 = vand.u32 2147483647, %v1993
      %v2010 = vand.u32 2147483647, %v1994
      %2012 = vset.pattern.permute.xlu0 0
      %2013 = vperm.xlu0 %2012, %v1669
      %v2014 = vpop.permute.xlu0 %2013
      %2017 = vset.pattern.permute.xlu0 0
      %2018 = vperm.xlu0 %2017, %v1670
      %v2019 = vpop.permute.xlu0 %2018
      %2022 = vset.pattern.permute.xlu0 0
      %2023 = vperm.xlu0 %2022, %v1671
      %v2024 = vpop.permute.xlu0 %2023
      %2027 = vset.pattern.permute.xlu0 0
      %2028 = vperm.xlu0 %2027, %v1672
      %v2029 = vpop.permute.xlu0 %2028
      %2032 = vset.pattern.permute.xlu0 0
      %2033 = vperm.xlu0 %2032, %v1673
      %v2034 = vpop.permute.xlu0 %2033
      %2037 = vset.pattern.permute.xlu0 0
      %2038 = vperm.xlu0 %2037, %v1674
      %v2039 = vpop.permute.xlu0 %2038
      %2042 = vset.pattern.permute.xlu0 0
      %2043 = vperm.xlu0 %2042, %v1675
      %v2044 = vpop.permute.xlu0 %2043
      %2047 = vset.pattern.permute.xlu0 0
      %2048 = vperm.xlu0 %2047, %v1676
      %v2049 = vpop.permute.xlu0 %2048
      %2052 = vset.pattern.permute.xlu0 0
      %2053 = vperm.xlu0 %2052, %v1677
      %v2054 = vpop.permute.xlu0 %2053
      %2057 = vset.pattern.permute.xlu0 0
      %2058 = vperm.xlu0 %2057, %v1678
      %v2059 = vpop.permute.xlu0 %2058
      %2062 = vset.pattern.permute.xlu0 0
      %2063 = vperm.xlu0 %2062, %v1679
      %v2064 = vpop.permute.xlu0 %2063
      %2067 = vset.pattern.permute.xlu0 0
      %2068 = vperm.xlu0 %2067, %v1680
      %v2069 = vpop.permute.xlu0 %2068
      %2072 = vset.pattern.permute.xlu0 0
      %2073 = vperm.xlu0 %2072, %v1681
      %v2074 = vpop.permute.xlu0 %2073
      %2077 = vset.pattern.permute.xlu0 0
      %2078 = vperm.xlu0 %2077, %v1682
      %v2079 = vpop.permute.xlu0 %2078
      %2082 = vset.pattern.permute.xlu0 0
      %2083 = vperm.xlu0 %2082, %v1683
      %v2084 = vpop.permute.xlu0 %2083
      %2087 = vset.pattern.permute.xlu0 0
      %2088 = vperm.xlu0 %2087, %v1684
      %v2089 = vpop.permute.xlu0 %2088
      %v2091 = vmul.f32 %v1995, %v2014
      %v2092 = vmul.f32 %v1996, %v2019
      %v2093 = vmul.f32 %v1997, %v2024
      %v2094 = vmul.f32 %v1998, %v2029
      %v2095 = vmul.f32 %v1999, %v2034
      %v2096 = vmul.f32 %v2000, %v2039
      %v2097 = vmul.f32 %v2001, %v2044
      %v2098 = vmul.f32 %v2002, %v2049
      %v2099 = vmul.f32 %v2003, %v2054
      %v2100 = vmul.f32 %v2004, %v2059
      %v2101 = vmul.f32 %v2005, %v2064
      %v2102 = vmul.f32 %v2006, %v2069
      %v2103 = vmul.f32 %v2007, %v2074
      %v2104 = vmul.f32 %v2008, %v2079
      %v2105 = vmul.f32 %v2009, %v2084
      %v2106 = vmul.f32 %v2010, %v2089
      %v2107 = vlaneseq
      %v2108 = vshrl.u32 %v2107, 7
      %v2109 = vsub.s32 0, %v2108
      %v2110 = vrot.slane %v1694, %v2109
      %v2111 = vmul.f32 %v2091, %v2110
      %v2112 = vmul.f32 %v2092, %v2110
      %v2113 = vmul.f32 %v2093, %v2110
      %v2114 = vmul.f32 %v2094, %v2110
      %v2115 = vmul.f32 %v2095, %v2110
      %v2116 = vmul.f32 %v2096, %v2110
      %v2117 = vmul.f32 %v2097, %v2110
      %v2118 = vmul.f32 %v2098, %v2110
      %v2119 = vmul.f32 %v2099, %v2110
      %v2120 = vmul.f32 %v2100, %v2110
      %v2121 = vmul.f32 %v2101, %v2110
      %v2122 = vmul.f32 %v2102, %v2110
      %v2123 = vmul.f32 %v2103, %v2110
      %v2124 = vmul.f32 %v2104, %v2110
      %v2125 = vmul.f32 %v2105, %v2110
      %v2126 = vmul.f32 %v2106, %v2110
      %2127 = vmin.xlane.f32.xlu0 %v1477
      %v2128 = vpop.xlane.xlu0 %2127
      %2129 = vmin.xlane.f32.xlu0 %v1478
      %v2130 = vpop.xlane.xlu0 %2129
      %2131 = vmin.xlane.f32.xlu0 %v1479
      %v2132 = vpop.xlane.xlu0 %2131
      %2133 = vmin.xlane.f32.xlu0 %v1480
      %v2134 = vpop.xlane.xlu0 %2133
      %2135 = vmin.xlane.f32.xlu0 %v1481
      %v2136 = vpop.xlane.xlu0 %2135
      %2137 = vmin.xlane.f32.xlu0 %v1482
      %v2138 = vpop.xlane.xlu0 %2137
      %2139 = vmin.xlane.f32.xlu0 %v1483
      %v2140 = vpop.xlane.xlu0 %2139
      %2141 = vmin.xlane.f32.xlu0 %v1484
      %v2142 = vpop.xlane.xlu0 %2141
      %2143 = vmin.xlane.f32.xlu0 %v1485
      %v2144 = vpop.xlane.xlu0 %2143
      %2145 = vmin.xlane.f32.xlu0 %v1486
      %v2146 = vpop.xlane.xlu0 %2145
      %2147 = vmin.xlane.f32.xlu0 %v1487
      %v2148 = vpop.xlane.xlu0 %2147
      %2149 = vmin.xlane.f32.xlu0 %v1488
      %v2150 = vpop.xlane.xlu0 %2149
      %2151 = vmin.xlane.f32.xlu0 %v1489
      %v2152 = vpop.xlane.xlu0 %2151
      %2153 = vmin.xlane.f32.xlu0 %v1490
      %v2154 = vpop.xlane.xlu0 %2153
      %2155 = vmin.xlane.f32.xlu0 %v1491
      %v2156 = vpop.xlane.xlu0 %2155
      %2157 = vmin.xlane.f32.xlu0 %v1492
      %v2158 = vpop.xlane.xlu0 %2157
      %vm2159 = vcmp.le.f32.partialorder %v1477, %v2128
      %vm2160 = vcmp.le.f32.partialorder %v1478, %v2130
      %vm2161 = vcmp.le.f32.partialorder %v1479, %v2132
      %vm2162 = vcmp.le.f32.partialorder %v1480, %v2134
      %vm2163 = vcmp.le.f32.partialorder %v1481, %v2136
      %vm2164 = vcmp.le.f32.partialorder %v1482, %v2138
      %vm2165 = vcmp.le.f32.partialorder %v1483, %v2140
      %vm2166 = vcmp.le.f32.partialorder %v1484, %v2142
      %vm2167 = vcmp.le.f32.partialorder %v1485, %v2144
      %vm2168 = vcmp.le.f32.partialorder %v1486, %v2146
      %vm2169 = vcmp.le.f32.partialorder %v1487, %v2148
      %vm2170 = vcmp.le.f32.partialorder %v1488, %v2150
      %vm2171 = vcmp.le.f32.partialorder %v1489, %v2152
      %vm2172 = vcmp.le.f32.partialorder %v1490, %v2154
      %vm2173 = vcmp.le.f32.partialorder %v1491, %v2156
      %vm2174 = vcmp.le.f32.partialorder %v1492, %v2158
      %v2175 = vsel %vm2159, 1, 0
      %v2176 = vsel %vm2160, 1, 0
      %v2177 = vsel %vm2161, 1, 0
      %v2178 = vsel %vm2162, 1, 0
      %v2179 = vsel %vm2163, 1, 0
      %v2180 = vsel %vm2164, 1, 0
      %v2181 = vsel %vm2165, 1, 0
      %v2182 = vsel %vm2166, 1, 0
      %v2183 = vsel %vm2167, 1, 0
      %v2184 = vsel %vm2168, 1, 0
      %v2185 = vsel %vm2169, 1, 0
      %v2186 = vsel %vm2170, 1, 0
      %v2187 = vsel %vm2171, 1, 0
      %v2188 = vsel %vm2172, 1, 0
      %v2189 = vsel %vm2173, 1, 0
      %v2190 = vsel %vm2174, 1, 0
      %v2191 = vcvt.s32.f32 %v2175
      %v2192 = vcvt.s32.f32 %v2176
      %v2193 = vcvt.s32.f32 %v2177
      %v2194 = vcvt.s32.f32 %v2178
      %v2195 = vcvt.s32.f32 %v2179
      %v2196 = vcvt.s32.f32 %v2180
      %v2197 = vcvt.s32.f32 %v2181
      %v2198 = vcvt.s32.f32 %v2182
      %v2199 = vcvt.s32.f32 %v2183
      %v2200 = vcvt.s32.f32 %v2184
      %v2201 = vcvt.s32.f32 %v2185
      %v2202 = vcvt.s32.f32 %v2186
      %v2203 = vcvt.s32.f32 %v2187
      %v2204 = vcvt.s32.f32 %v2188
      %v2205 = vcvt.s32.f32 %v2189
      %v2206 = vcvt.s32.f32 %v2190
      %v2207 = vmul.f32 %v2191, %v2111
      %v2208 = vmul.f32 %v2192, %v2112
      %v2209 = vmul.f32 %v2193, %v2113
      %v2210 = vmul.f32 %v2194, %v2114
      %v2211 = vmul.f32 %v2195, %v2115
      %v2212 = vmul.f32 %v2196, %v2116
      %v2213 = vmul.f32 %v2197, %v2117
      %v2214 = vmul.f32 %v2198, %v2118
      %v2215 = vmul.f32 %v2199, %v2119
      %v2216 = vmul.f32 %v2200, %v2120
      %v2217 = vmul.f32 %v2201, %v2121
      %v2218 = vmul.f32 %v2202, %v2122
      %v2219 = vmul.f32 %v2203, %v2123
      %v2220 = vmul.f32 %v2204, %v2124
      %v2221 = vmul.f32 %v2205, %v2125
      %v2222 = vmul.f32 %v2206, %v2126
      %2223 = vadd.xlane.f32.xlu0 %v2207
      %v2224 = vpop.xlane.xlu0 %2223
      %2225 = vadd.xlane.f32.xlu0 %v2208
      %v2226 = vpop.xlane.xlu0 %2225
      %2227 = vadd.xlane.f32.xlu0 %v2209
      %v2228 = vpop.xlane.xlu0 %2227
      %2229 = vadd.xlane.f32.xlu0 %v2210
      %v2230 = vpop.xlane.xlu0 %2229
      %2231 = vadd.xlane.f32.xlu0 %v2211
      %v2232 = vpop.xlane.xlu0 %2231
      %2233 = vadd.xlane.f32.xlu0 %v2212
      %v2234 = vpop.xlane.xlu0 %2233
      %2235 = vadd.xlane.f32.xlu0 %v2213
      %v2236 = vpop.xlane.xlu0 %2235
      %2237 = vadd.xlane.f32.xlu0 %v2214
      %v2238 = vpop.xlane.xlu0 %2237
      %2239 = vadd.xlane.f32.xlu0 %v2215
      %v2240 = vpop.xlane.xlu0 %2239
      %2241 = vadd.xlane.f32.xlu0 %v2216
      %v2242 = vpop.xlane.xlu0 %2241
      %2243 = vadd.xlane.f32.xlu0 %v2217
      %v2244 = vpop.xlane.xlu0 %2243
      %2245 = vadd.xlane.f32.xlu0 %v2218
      %v2246 = vpop.xlane.xlu0 %2245
      %2247 = vadd.xlane.f32.xlu0 %v2219
      %v2248 = vpop.xlane.xlu0 %2247
      %2249 = vadd.xlane.f32.xlu0 %v2220
      %v2250 = vpop.xlane.xlu0 %2249
      %2251 = vadd.xlane.f32.xlu0 %v2221
      %v2252 = vpop.xlane.xlu0 %2251
      %2253 = vadd.xlane.f32.xlu0 %v2222
      %v2254 = vpop.xlane.xlu0 %2253
      %2255 = vadd.xlane.f32.xlu0 %v2191
      %v2256 = vpop.xlane.xlu0 %2255
      %2257 = vadd.xlane.f32.xlu0 %v2192
      %v2258 = vpop.xlane.xlu0 %2257
      %2259 = vadd.xlane.f32.xlu0 %v2193
      %v2260 = vpop.xlane.xlu0 %2259
      %2261 = vadd.xlane.f32.xlu0 %v2194
      %v2262 = vpop.xlane.xlu0 %2261
      %2263 = vadd.xlane.f32.xlu0 %v2195
      %v2264 = vpop.xlane.xlu0 %2263
      %2265 = vadd.xlane.f32.xlu0 %v2196
      %v2266 = vpop.xlane.xlu0 %2265
      %2267 = vadd.xlane.f32.xlu0 %v2197
      %v2268 = vpop.xlane.xlu0 %2267
      %2269 = vadd.xlane.f32.xlu0 %v2198
      %v2270 = vpop.xlane.xlu0 %2269
      %2271 = vadd.xlane.f32.xlu0 %v2199
      %v2272 = vpop.xlane.xlu0 %2271
      %2273 = vadd.xlane.f32.xlu0 %v2200
      %v2274 = vpop.xlane.xlu0 %2273
      %2275 = vadd.xlane.f32.xlu0 %v2201
      %v2276 = vpop.xlane.xlu0 %2275
      %2277 = vadd.xlane.f32.xlu0 %v2202
      %v2278 = vpop.xlane.xlu0 %2277
      %2279 = vadd.xlane.f32.xlu0 %v2203
      %v2280 = vpop.xlane.xlu0 %2279
      %2281 = vadd.xlane.f32.xlu0 %v2204
      %v2282 = vpop.xlane.xlu0 %2281
      %2283 = vadd.xlane.f32.xlu0 %v2205
      %v2284 = vpop.xlane.xlu0 %2283
      %2285 = vadd.xlane.f32.xlu0 %v2206
      %v2286 = vpop.xlane.xlu0 %2285
      %v2287 = vrcp.pop %v2256
      %v2288 = vrcp.pop %v2258
      %v2289 = vrcp.pop %v2260
      %v2290 = vrcp.pop %v2262
      %v2291 = vrcp.pop %v2264
      %v2292 = vrcp.pop %v2266
      %v2293 = vrcp.pop %v2268
      %v2294 = vrcp.pop %v2270
      %v2295 = vrcp.pop %v2272
      %v2296 = vrcp.pop %v2274
      %v2297 = vrcp.pop %v2276
      %v2298 = vrcp.pop %v2278
      %v2299 = vrcp.pop %v2280
      %v2300 = vrcp.pop %v2282
      %v2301 = vrcp.pop %v2284
      %v2302 = vrcp.pop %v2286
      %v2303 = vmul.f32 %v2224, %v2287
      %v2304 = vmul.f32 %v2226, %v2288
      %v2305 = vmul.f32 %v2228, %v2289
      %v2306 = vmul.f32 %v2230, %v2290
      %v2307 = vmul.f32 %v2232, %v2291
      %v2308 = vmul.f32 %v2234, %v2292
      %v2309 = vmul.f32 %v2236, %v2293
      %v2310 = vmul.f32 %v2238, %v2294
      %v2311 = vmul.f32 %v2240, %v2295
      %v2312 = vmul.f32 %v2242, %v2296
      %v2313 = vmul.f32 %v2244, %v2297
      %v2314 = vmul.f32 %v2246, %v2298
      %v2315 = vmul.f32 %v2248, %v2299
      %v2316 = vmul.f32 %v2250, %v2300
      %v2317 = vmul.f32 %v2252, %v2301
      %v2318 = vmul.f32 %v2254, %v2302
      %v2319 = vmul.f32 %v717, %v2128
      %v2320 = vmul.f32 %v718, %v2130
      %v2321 = vmul.f32 %v719, %v2132
      %v2322 = vmul.f32 %v720, %v2134
      %v2323 = vmul.f32 %v721, %v2136
      %v2324 = vmul.f32 %v722, %v2138
      %v2325 = vmul.f32 %v723, %v2140
      %v2326 = vmul.f32 %v724, %v2142
      %v2327 = vmul.f32 %v725, %v2144
      %v2328 = vmul.f32 %v726, %v2146
      %v2329 = vmul.f32 %v727, %v2148
      %v2330 = vmul.f32 %v728, %v2150
      %v2331 = vmul.f32 %v729, %v2152
      %v2332 = vmul.f32 %v730, %v2154
      %v2333 = vmul.f32 %v731, %v2156
      %v2334 = vmul.f32 %v732, %v2158
      %vm2335 = vcmask 7168
      %v2336 = vsel %vm2335, %v2319, 0.0
      %v2337 = vsel %vm2335, %v2320, 0.0
      %v2338 = vadd.f32 %v2336, %v2337
      %v2339 = vsel %vm2335, %v2321, 0.0
      %v2340 = vadd.f32 %v2338, %v2339
      %v2341 = vsel %vm2335, %v2322, 0.0
      %v2342 = vadd.f32 %v2340, %v2341
      %v2343 = vsel %vm2335, %v2323, 0.0
      %v2344 = vadd.f32 %v2342, %v2343
      %v2345 = vsel %vm2335, %v2324, 0.0
      %v2346 = vadd.f32 %v2344, %v2345
      %v2347 = vsel %vm2335, %v2325, 0.0
      %v2348 = vadd.f32 %v2346, %v2347
      %v2349 = vsel %vm2335, %v2326, 0.0
      %v2350 = vadd.f32 %v2348, %v2349
      %v2351 = vsel %vm2335, %v2327, 0.0
      %v2352 = vadd.f32 %v2350, %v2351
      %v2353 = vsel %vm2335, %v2328, 0.0
      %v2354 = vadd.f32 %v2352, %v2353
      %v2355 = vsel %vm2335, %v2329, 0.0
      %v2356 = vadd.f32 %v2354, %v2355
      %v2357 = vsel %vm2335, %v2330, 0.0
      %v2358 = vadd.f32 %v2356, %v2357
      %v2359 = vsel %vm2335, %v2331, 0.0
      %v2360 = vadd.f32 %v2358, %v2359
      %v2361 = vsel %vm2335, %v2332, 0.0
      %v2362 = vadd.f32 %v2360, %v2361
      %v2363 = vsel %vm2335, %v2333, 0.0
      %v2364 = vadd.f32 %v2362, %v2363
      %v2365 = vsel %vm2335, %v2334, 0.0
      %v2366 = vadd.f32 %v2364, %v2365
      %2367 = vadd.xlane.f32.xlu0 %v2366
      %v2368 = vpop.xlane.xlu0 %2367
      %v2369 = vrot.slane %v2368, 4
      %v2370 = vadd.f32 %v2368, %v2369
      %v2371 = vrot.slane %v2370, 2
      %v2372 = vadd.f32 %v2370, %v2371
      %v2373 = vrot.slane %v2372, 1
      %v2374 = vadd.f32 %v2372, %v2373
      %s2375 = vtos %v2374
      %v2376 = vsub.f32 1.0, %v2303
      %v2377 = vsub.f32 1.0, %v2304
      %v2378 = vsub.f32 1.0, %v2305
      %v2379 = vsub.f32 1.0, %v2306
      %v2380 = vsub.f32 1.0, %v2307
      %v2381 = vsub.f32 1.0, %v2308
      %v2382 = vsub.f32 1.0, %v2309
      %v2383 = vsub.f32 1.0, %v2310
      %v2384 = vsub.f32 1.0, %v2311
      %v2385 = vsub.f32 1.0, %v2312
      %v2386 = vsub.f32 1.0, %v2313
      %v2387 = vsub.f32 1.0, %v2314
      %v2388 = vsub.f32 1.0, %v2315
      %v2389 = vsub.f32 1.0, %v2316
      %v2390 = vsub.f32 1.0, %v2317
      %v2391 = vsub.f32 1.0, %v2318
      %v2392 = vmul.f32 %v717, %v2376
      %v2393 = vmul.f32 %v718, %v2377
      %v2394 = vmul.f32 %v719, %v2378
      %v2395 = vmul.f32 %v720, %v2379
      %v2396 = vmul.f32 %v721, %v2380
      %v2397 = vmul.f32 %v722, %v2381
      %v2398 = vmul.f32 %v723, %v2382
      %v2399 = vmul.f32 %v724, %v2383
      %v2400 = vmul.f32 %v725, %v2384
      %v2401 = vmul.f32 %v726, %v2385
      %v2402 = vmul.f32 %v727, %v2386
      %v2403 = vmul.f32 %v728, %v2387
      %v2404 = vmul.f32 %v729, %v2388
      %v2405 = vmul.f32 %v730, %v2389
      %v2406 = vmul.f32 %v731, %v2390
      %v2407 = vmul.f32 %v732, %v2391
      %v2408 = vsel %vm2335, %v2392, 0.0
      %v2409 = vsel %vm2335, %v2393, 0.0
      %v2410 = vadd.f32 %v2408, %v2409
      %v2411 = vsel %vm2335, %v2394, 0.0
      %v2412 = vadd.f32 %v2410, %v2411
      %v2413 = vsel %vm2335, %v2395, 0.0
      %v2414 = vadd.f32 %v2412, %v2413
      %v2415 = vsel %vm2335, %v2396, 0.0
      %v2416 = vadd.f32 %v2414, %v2415
      %v2417 = vsel %vm2335, %v2397, 0.0
      %v2418 = vadd.f32 %v2416, %v2417
      %v2419 = vsel %vm2335, %v2398, 0.0
      %v2420 = vadd.f32 %v2418, %v2419
      %v2421 = vsel %vm2335, %v2399, 0.0
      %v2422 = vadd.f32 %v2420, %v2421
      %v2423 = vsel %vm2335, %v2400, 0.0
      %v2424 = vadd.f32 %v2422, %v2423
      %v2425 = vsel %vm2335, %v2401, 0.0
      %v2426 = vadd.f32 %v2424, %v2425
      %v2427 = vsel %vm2335, %v2402, 0.0
      %v2428 = vadd.f32 %v2426, %v2427
      %v2429 = vsel %vm2335, %v2403, 0.0
      %v2430 = vadd.f32 %v2428, %v2429
      %v2431 = vsel %vm2335, %v2404, 0.0
      %v2432 = vadd.f32 %v2430, %v2431
      %v2433 = vsel %vm2335, %v2405, 0.0
      %v2434 = vadd.f32 %v2432, %v2433
      %v2435 = vsel %vm2335, %v2406, 0.0
      %v2436 = vadd.f32 %v2434, %v2435
      %v2437 = vsel %vm2335, %v2407, 0.0
      %v2438 = vadd.f32 %v2436, %v2437
      %2439 = vadd.xlane.f32.xlu0 %v2438
      %v2440 = vpop.xlane.xlu0 %2439
      %v2441 = vrot.slane %v2440, 4
      %v2442 = vadd.f32 %v2440, %v2441
      %v2443 = vrot.slane %v2442, 2
      %v2444 = vadd.f32 %v2442, %v2443
      %v2445 = vrot.slane %v2444, 1
      %v2446 = vadd.f32 %v2444, %v2445
      %s2447 = vtos %v2446
      %v2448 = vsel %vm2335, %v717, 0.0
      %v2449 = vsel %vm2335, %v718, 0.0
      %v2450 = vadd.f32 %v2448, %v2449
      %v2451 = vsel %vm2335, %v719, 0.0
      %v2452 = vadd.f32 %v2450, %v2451
      %v2453 = vsel %vm2335, %v720, 0.0
      %v2454 = vadd.f32 %v2452, %v2453
      %v2455 = vsel %vm2335, %v721, 0.0
      %v2456 = vadd.f32 %v2454, %v2455
      %v2457 = vsel %vm2335, %v722, 0.0
      %v2458 = vadd.f32 %v2456, %v2457
      %v2459 = vsel %vm2335, %v723, 0.0
      %v2460 = vadd.f32 %v2458, %v2459
      %v2461 = vsel %vm2335, %v724, 0.0
      %v2462 = vadd.f32 %v2460, %v2461
      %v2463 = vsel %vm2335, %v725, 0.0
      %v2464 = vadd.f32 %v2462, %v2463
      %v2465 = vsel %vm2335, %v726, 0.0
      %v2466 = vadd.f32 %v2464, %v2465
      %v2467 = vsel %vm2335, %v727, 0.0
      %v2468 = vadd.f32 %v2466, %v2467
      %v2469 = vsel %vm2335, %v728, 0.0
      %v2470 = vadd.f32 %v2468, %v2469
      %v2471 = vsel %vm2335, %v729, 0.0
      %v2472 = vadd.f32 %v2470, %v2471
      %v2473 = vsel %vm2335, %v730, 0.0
      %v2474 = vadd.f32 %v2472, %v2473
      %v2475 = vsel %vm2335, %v731, 0.0
      %v2476 = vadd.f32 %v2474, %v2475
      %v2477 = vsel %vm2335, %v732, 0.0
      %v2478 = vadd.f32 %v2476, %v2477
      %2479 = vadd.xlane.f32.xlu0 %v2478
      %v2480 = vpop.xlane.xlu0 %2479
      %v2481 = vrot.slane %v2480, 4
      %v2482 = vadd.f32 %v2480, %v2481
      %v2483 = vrot.slane %v2482, 2
      %v2484 = vadd.f32 %v2482, %v2483
      %v2485 = vrot.slane %v2484, 1
      %v2486 = vadd.f32 %v2484, %v2485
      %s2487 = vtos %v2486
      %v2488 = vmin.f32 %v1477, %v1481
      %v2489 = vmin.f32 %v1478, %v1482
      %v2490 = vmin.f32 %v1479, %v1483
      %v2491 = vmin.f32 %v1480, %v1484
      %v2492 = vmin.f32 %v2488, %v1485
      %v2493 = vmin.f32 %v2489, %v1486
      %v2494 = vmin.f32 %v2490, %v1487
      %v2495 = vmin.f32 %v2491, %v1488
      %v2496 = vmin.f32 %v2492, %v1489
      %v2497 = vmin.f32 %v2493, %v1490
      %v2498 = vmin.f32 %v2494, %v1491
      %v2499 = vmin.f32 %v2495, %v1492
      %v2500 = vmin.f32 %v2496, %v2497
      %v2501 = vmin.f32 %v2498, %v2499
      %v2502 = vmin.f32 %v2500, %v2501
      %v2503 = vrot.slane %v2502, 4
      %v2504 = vmin.f32 %v2502, %v2503
      %v2505 = vrot.slane %v2504, 2
      %v2506 = vmin.f32 %v2504, %v2505
      %v2507 = vrot.slane %v2506, 1
      %v2508 = vmin.f32 %v2506, %v2507
      %vm2509 = vcmp.le.f32.partialorder %v1477, %v2508
      %vm2510 = vcmp.le.f32.partialorder %v1478, %v2508
      %vm2511 = vcmp.le.f32.partialorder %v1479, %v2508
      %vm2512 = vcmp.le.f32.partialorder %v1480, %v2508
      %vm2513 = vcmp.le.f32.partialorder %v1481, %v2508
      %vm2514 = vcmp.le.f32.partialorder %v1482, %v2508
      %vm2515 = vcmp.le.f32.partialorder %v1483, %v2508
      %vm2516 = vcmp.le.f32.partialorder %v1484, %v2508
      %vm2517 = vcmp.le.f32.partialorder %v1485, %v2508
      %vm2518 = vcmp.le.f32.partialorder %v1486, %v2508
      %vm2519 = vcmp.le.f32.partialorder %v1487, %v2508
      %vm2520 = vcmp.le.f32.partialorder %v1488, %v2508
      %vm2521 = vcmp.le.f32.partialorder %v1489, %v2508
      %vm2522 = vcmp.le.f32.partialorder %v1490, %v2508
      %vm2523 = vcmp.le.f32.partialorder %v1491, %v2508
      %vm2524 = vcmp.le.f32.partialorder %v1492, %v2508
      %v2525 = vsel %vm2509, 1, 0
      %v2526 = vsel %vm2510, 1, 0
      %v2527 = vsel %vm2511, 1, 0
      %v2528 = vsel %vm2512, 1, 0
      %v2529 = vsel %vm2513, 1, 0
      %v2530 = vsel %vm2514, 1, 0
      %v2531 = vsel %vm2515, 1, 0
      %v2532 = vsel %vm2516, 1, 0
      %v2533 = vsel %vm2517, 1, 0
      %v2534 = vsel %vm2518, 1, 0
      %v2535 = vsel %vm2519, 1, 0
      %v2536 = vsel %vm2520, 1, 0
      %v2537 = vsel %vm2521, 1, 0
      %v2538 = vsel %vm2522, 1, 0
      %v2539 = vsel %vm2523, 1, 0
      %v2540 = vsel %vm2524, 1, 0
      %v2541 = vcvt.s32.f32 %v2525
      %v2542 = vcvt.s32.f32 %v2526
      %v2543 = vcvt.s32.f32 %v2527
      %v2544 = vcvt.s32.f32 %v2528
      %v2545 = vcvt.s32.f32 %v2529
      %v2546 = vcvt.s32.f32 %v2530
      %v2547 = vcvt.s32.f32 %v2531
      %v2548 = vcvt.s32.f32 %v2532
      %v2549 = vcvt.s32.f32 %v2533
      %v2550 = vcvt.s32.f32 %v2534
      %v2551 = vcvt.s32.f32 %v2535
      %v2552 = vcvt.s32.f32 %v2536
      %v2553 = vcvt.s32.f32 %v2537
      %v2554 = vcvt.s32.f32 %v2538
      %v2555 = vcvt.s32.f32 %v2539
      %v2556 = vcvt.s32.f32 %v2540
      %v2557 = vmul.f32 %v2541, %v2111
      %v2558 = vmul.f32 %v2542, %v2112
      %v2559 = vmul.f32 %v2543, %v2113
      %v2560 = vmul.f32 %v2544, %v2114
      %v2561 = vmul.f32 %v2545, %v2115
      %v2562 = vmul.f32 %v2546, %v2116
      %v2563 = vmul.f32 %v2547, %v2117
      %v2564 = vmul.f32 %v2548, %v2118
      %v2565 = vmul.f32 %v2549, %v2119
      %v2566 = vmul.f32 %v2550, %v2120
      %v2567 = vmul.f32 %v2551, %v2121
      %v2568 = vmul.f32 %v2552, %v2122
      %v2569 = vmul.f32 %v2553, %v2123
      %v2570 = vmul.f32 %v2554, %v2124
      %v2571 = vmul.f32 %v2555, %v2125
      %v2572 = vmul.f32 %v2556, %v2126
      %v2573 = vadd.f32 %v2557, %v2558
      %v2574 = vadd.f32 %v2573, %v2559
      %v2575 = vadd.f32 %v2574, %v2560
      %v2576 = vadd.f32 %v2575, %v2561
      %v2577 = vadd.f32 %v2576, %v2562
      %v2578 = vadd.f32 %v2577, %v2563
      %v2579 = vadd.f32 %v2578, %v2564
      %v2580 = vadd.f32 %v2579, %v2565
      %v2581 = vadd.f32 %v2580, %v2566
      %v2582 = vadd.f32 %v2581, %v2567
      %v2583 = vadd.f32 %v2582, %v2568
      %v2584 = vadd.f32 %v2583, %v2569
      %v2585 = vadd.f32 %v2584, %v2570
      %v2586 = vadd.f32 %v2585, %v2571
      %v2587 = vadd.f32 %v2586, %v2572
      %v2588 = vrot.slane %v2587, 4
      %v2589 = vadd.f32 %v2587, %v2588
      %v2590 = vrot.slane %v2589, 2
      %v2591 = vadd.f32 %v2589, %v2590
      %v2592 = vrot.slane %v2591, 1
      %v2593 = vadd.f32 %v2591, %v2592
      %v2594 = vadd.f32 %v2541, %v2542
      %v2595 = vadd.f32 %v2594, %v2543
      %v2596 = vadd.f32 %v2595, %v2544
      %v2597 = vadd.f32 %v2596, %v2545
      %v2598 = vadd.f32 %v2597, %v2546
      %v2599 = vadd.f32 %v2598, %v2547
      %v2600 = vadd.f32 %v2599, %v2548
      %v2601 = vadd.f32 %v2600, %v2549
      %v2602 = vadd.f32 %v2601, %v2550
      %v2603 = vadd.f32 %v2602, %v2551
      %v2604 = vadd.f32 %v2603, %v2552
      %v2605 = vadd.f32 %v2604, %v2553
      %v2606 = vadd.f32 %v2605, %v2554
      %v2607 = vadd.f32 %v2606, %v2555
      %v2608 = vadd.f32 %v2607, %v2556
      %v2609 = vrot.slane %v2608, 4
      %v2610 = vadd.f32 %v2608, %v2609
      %v2611 = vrot.slane %v2610, 2
      %v2612 = vadd.f32 %v2610, %v2611
      %v2613 = vrot.slane %v2612, 1
      %v2614 = vadd.f32 %v2612, %v2613
      %v2615 = vrcp.pop %v2614
      %v2616 = vmul.f32 %v2593, %v2615
      %v2617 = vld [vmem:[#allocation2] sm:$0x1]
      %vm2618 = vcmp.lt.f32.partialorder %v2508, %v2617
      %v2619 = vsel %vm2618, %v2508, %v2617
      %2620 = vst [vmem:[#allocation2] sm:$0x1] %v2619
      %v2621 = vld [vmem:[#allocation3] sm:$0x1]
      %v2622 = vsel %vm2618, %v2616, %v2621
      %2623 = vst [vmem:[#allocation3] sm:$0x1] %v2622
      %v2624 = vld [vmem:[#allocation4] sm:$0xff]
      %v2625 = vstv %s2375
      %v2626 = vstv %s2447
      %v2627 = vstv %s2487
      %vm2628 = vcmask 1040384
      %v2629 = vsel %vm2628, %v2625, %v2626
      %vm2630 = vcmask 1041408
      %v2631 = vsel %vm2630, %v2629, %v2627
      %vm2632 = vcmask 1042432
      %v2633 = vsel %vm2632, %v2631, 0.0
      %vm2634 = vcmask 1043456
      %v2635 = vsel %vm2634, %v2633, 0.0
      %vm2636 = vcmask 1044480
      %v2637 = vsel %vm2636, %v2635, 0.0
      %vm2638 = vcmask 1045504
      %v2639 = vsel %vm2638, %v2637, 0.0
      %vm2640 = vcmask 1046528
      %v2641 = vsel %vm2640, %v2639, 0.0
      %v2642 = vadd.f32 %v2624, %v2641
      %2643 = vst [vmem:[#allocation4] sm:$0xff] %v2642
      %p2644 = scmp.eq.s32.totalorder %s24, 2
      // Predicated region
      $region49: #{_lambda_.1} parent=43 // pred_check
        %p2645 = pneg %p2644
      $region50: #{_lambda_.1} parent=43 // pred_check_branch
        %2647 = sbr.rel (%p2645) target = $region52
      $region51: #{_lambda_.1} parent=43 // pred_region
        %v2648 = vld [vmem:[#allocation2] sm:$0x1]
        %v2649 = vmul.f32 %v321, %v2648
        %v2650 = vsel %vm2628, %v2649, 0.0
        %2651 = vadd.xlane.f32.xlu0 %v2650
        %v2652 = vpop.xlane.xlu0 %2651
        %v2653 = vrot.slane %v2652, 4
        %v2654 = vadd.f32 %v2652, %v2653
        %v2655 = vrot.slane %v2654, 2
        %v2656 = vadd.f32 %v2654, %v2655
        %v2657 = vrot.slane %v2656, 1
        %v2658 = vadd.f32 %v2656, %v2657
        %s2659 = vtos %v2658
        %v2660 = vld [vmem:[#allocation3] sm:$0x1]
        %v2661 = vsub.f32 1.0, %v2660
        %v2662 = vmul.f32 %v321, %v2661
        %v2663 = vsel %vm2628, %v2662, 0.0
        %2664 = vadd.xlane.f32.xlu0 %v2663
        %v2665 = vpop.xlane.xlu0 %2664
        %v2666 = vrot.slane %v2665, 4
        %v2667 = vadd.f32 %v2665, %v2666
        %v2668 = vrot.slane %v2667, 2
        %v2669 = vadd.f32 %v2667, %v2668
        %v2670 = vrot.slane %v2669, 1
        %v2671 = vadd.f32 %v2669, %v2670
        %s2672 = vtos %v2671
        %v2673 = vld [vmem:[%s5] sm:$0xff]
        %v2674 = vld [vmem:[%s5 + $0x8] sm:$0xff]
        %v2675 = vld [vmem:[%s5 + $0x10] sm:$0xff]
        %v2676 = vld [vmem:[%s5 + $0x18] sm:$0xff]
        %v2677 = vld [vmem:[%s5 + $0x20] sm:$0xff]
        %v2678 = vld [vmem:[%s5 + $0x28] sm:$0xff]
        %v2679 = vld [vmem:[%s5 + $0x30] sm:$0xff]
        %v2680 = vld [vmem:[%s5 + $0x38] sm:$0xff]
        %v2681 = vld [vmem:[%s5 + $0x40] sm:$0xff]
        %v2682 = vld [vmem:[%s5 + $0x48] sm:$0xff]
        %v2683 = vld [vmem:[%s5 + $0x50] sm:$0xff]
        %v2684 = vld [vmem:[%s5 + $0x58] sm:$0xff]
        %v2685 = vld [vmem:[%s5 + $0x60] sm:$0xff]
        %v2686 = vld [vmem:[%s5 + $0x68] sm:$0xff]
        %v2687 = vld [vmem:[%s5 + $0x70] sm:$0xff]
        %v2688 = vld [vmem:[%s5 + $0x78] sm:$0xff]
        %v2689 = vld [vmem:[%s6] sm:$0xff]
        %v2690 = vld [vmem:[%s6 + $0x8] sm:$0xff]
        %v2691 = vld [vmem:[%s6 + $0x10] sm:$0xff]
        %v2692 = vld [vmem:[%s6 + $0x18] sm:$0xff]
        %v2693 = vld [vmem:[%s6 + $0x20] sm:$0xff]
        %v2694 = vld [vmem:[%s6 + $0x28] sm:$0xff]
        %v2695 = vld [vmem:[%s6 + $0x30] sm:$0xff]
        %v2696 = vld [vmem:[%s6 + $0x38] sm:$0xff]
        %v2697 = vld [vmem:[%s6 + $0x40] sm:$0xff]
        %v2698 = vld [vmem:[%s6 + $0x48] sm:$0xff]
        %v2699 = vld [vmem:[%s6 + $0x50] sm:$0xff]
        %v2700 = vld [vmem:[%s6 + $0x58] sm:$0xff]
        %v2701 = vld [vmem:[%s6 + $0x60] sm:$0xff]
        %v2702 = vld [vmem:[%s6 + $0x68] sm:$0xff]
        %v2703 = vld [vmem:[%s6 + $0x70] sm:$0xff]
        %v2704 = vld [vmem:[%s6 + $0x78] sm:$0xff]
        %v2705 = vmul.f32 %v2689, %v407
        %v2706 = vmul.f32 %v2690, %v407
        %v2707 = vmul.f32 %v2691, %v407
        %v2708 = vmul.f32 %v2692, %v407
        %v2709 = vmul.f32 %v2693, %v407
        %v2710 = vmul.f32 %v2694, %v407
        %v2711 = vmul.f32 %v2695, %v407
        %v2712 = vmul.f32 %v2696, %v407
        %v2713 = vmul.f32 %v2697, %v407
        %v2714 = vmul.f32 %v2698, %v407
        %v2715 = vmul.f32 %v2699, %v407
        %v2716 = vmul.f32 %v2700, %v407
        %v2717 = vmul.f32 %v2701, %v407
        %v2718 = vmul.f32 %v2702, %v407
        %v2719 = vmul.f32 %v2703, %v407
        %v2720 = vmul.f32 %v2704, %v407
        %v2721 = vmul.f32 %v2689, %v424
        %v2722 = vmul.f32 %v2690, %v424
        %v2723 = vmul.f32 %v2691, %v424
        %v2724 = vmul.f32 %v2692, %v424
        %v2725 = vmul.f32 %v2693, %v424
        %v2726 = vmul.f32 %v2694, %v424
        %v2727 = vmul.f32 %v2695, %v424
        %v2728 = vmul.f32 %v2696, %v424
        %v2729 = vmul.f32 %v2697, %v424
        %v2730 = vmul.f32 %v2698, %v424
        %v2731 = vmul.f32 %v2699, %v424
        %v2732 = vmul.f32 %v2700, %v424
        %v2733 = vmul.f32 %v2701, %v424
        %v2734 = vmul.f32 %v2702, %v424
        %v2735 = vmul.f32 %v2703, %v424
        %v2736 = vmul.f32 %v2704, %v424
        %2753 = vrot.lane.b32.xlu0 %v2721, 127
        %v2754 = vpop.permute.xlu0 %2753
        %2755 = vrot.lane.b32.xlu0 %v2722, 127
        %v2756 = vpop.permute.xlu0 %2755
        %2757 = vrot.lane.b32.xlu0 %v2723, 127
        %v2758 = vpop.permute.xlu0 %2757
        %2759 = vrot.lane.b32.xlu0 %v2724, 127
        %v2760 = vpop.permute.xlu0 %2759
        %2761 = vrot.lane.b32.xlu0 %v2725, 127
        %v2762 = vpop.permute.xlu0 %2761
        %2763 = vrot.lane.b32.xlu0 %v2726, 127
        %v2764 = vpop.permute.xlu0 %2763
        %2765 = vrot.lane.b32.xlu0 %v2727, 127
        %v2766 = vpop.permute.xlu0 %2765
        %2767 = vrot.lane.b32.xlu0 %v2728, 127
        %v2768 = vpop.permute.xlu0 %2767
        %2769 = vrot.lane.b32.xlu0 %v2729, 127
        %v2770 = vpop.permute.xlu0 %2769
        %2771 = vrot.lane.b32.xlu0 %v2730, 127
        %v2772 = vpop.permute.xlu0 %2771
        %2773 = vrot.lane.b32.xlu0 %v2731, 127
        %v2774 = vpop.permute.xlu0 %2773
        %2775 = vrot.lane.b32.xlu0 %v2732, 127
        %v2776 = vpop.permute.xlu0 %2775
        %2777 = vrot.lane.b32.xlu0 %v2733, 127
        %v2778 = vpop.permute.xlu0 %2777
        %2779 = vrot.lane.b32.xlu0 %v2734, 127
        %v2780 = vpop.permute.xlu0 %2779
        %2781 = vrot.lane.b32.xlu0 %v2735, 127
        %v2782 = vpop.permute.xlu0 %2781
        %2783 = vrot.lane.b32.xlu0 %v2736, 127
        %v2784 = vpop.permute.xlu0 %2783
        %v2801 = vadd.f32 %v2705, %v2754
        %v2802 = vadd.f32 %v2706, %v2756
        %v2803 = vadd.f32 %v2707, %v2758
        %v2804 = vadd.f32 %v2708, %v2760
        %v2805 = vadd.f32 %v2709, %v2762
        %v2806 = vadd.f32 %v2710, %v2764
        %v2807 = vadd.f32 %v2711, %v2766
        %v2808 = vadd.f32 %v2712, %v2768
        %v2809 = vadd.f32 %v2713, %v2770
        %v2810 = vadd.f32 %v2714, %v2772
        %v2811 = vadd.f32 %v2715, %v2774
        %v2812 = vadd.f32 %v2716, %v2776
        %v2813 = vadd.f32 %v2717, %v2778
        %v2814 = vadd.f32 %v2718, %v2780
        %v2815 = vadd.f32 %v2719, %v2782
        %v2816 = vadd.f32 %v2720, %v2784
        %v2817 = vmul.f32 %v2689, %v521
        %v2818 = vmul.f32 %v2690, %v521
        %v2819 = vmul.f32 %v2691, %v521
        %v2820 = vmul.f32 %v2692, %v521
        %v2821 = vmul.f32 %v2693, %v521
        %v2822 = vmul.f32 %v2694, %v521
        %v2823 = vmul.f32 %v2695, %v521
        %v2824 = vmul.f32 %v2696, %v521
        %v2825 = vmul.f32 %v2697, %v521
        %v2826 = vmul.f32 %v2698, %v521
        %v2827 = vmul.f32 %v2699, %v521
        %v2828 = vmul.f32 %v2700, %v521
        %v2829 = vmul.f32 %v2701, %v521
        %v2830 = vmul.f32 %v2702, %v521
        %v2831 = vmul.f32 %v2703, %v521
        %v2832 = vmul.f32 %v2704, %v521
        %2849 = vrot.lane.b32.xlu0 %v2817, 126
        %v2850 = vpop.permute.xlu0 %2849
        %2851 = vrot.lane.b32.xlu0 %v2818, 126
        %v2852 = vpop.permute.xlu0 %2851
        %2853 = vrot.lane.b32.xlu0 %v2819, 126
        %v2854 = vpop.permute.xlu0 %2853
        %2855 = vrot.lane.b32.xlu0 %v2820, 126
        %v2856 = vpop.permute.xlu0 %2855
        %2857 = vrot.lane.b32.xlu0 %v2821, 126
        %v2858 = vpop.permute.xlu0 %2857
        %2859 = vrot.lane.b32.xlu0 %v2822, 126
        %v2860 = vpop.permute.xlu0 %2859
        %2861 = vrot.lane.b32.xlu0 %v2823, 126
        %v2862 = vpop.permute.xlu0 %2861
        %2863 = vrot.lane.b32.xlu0 %v2824, 126
        %v2864 = vpop.permute.xlu0 %2863
        %2865 = vrot.lane.b32.xlu0 %v2825, 126
        %v2866 = vpop.permute.xlu0 %2865
        %2867 = vrot.lane.b32.xlu0 %v2826, 126
        %v2868 = vpop.permute.xlu0 %2867
        %2869 = vrot.lane.b32.xlu0 %v2827, 126
        %v2870 = vpop.permute.xlu0 %2869
        %2871 = vrot.lane.b32.xlu0 %v2828, 126
        %v2872 = vpop.permute.xlu0 %2871
        %2873 = vrot.lane.b32.xlu0 %v2829, 126
        %v2874 = vpop.permute.xlu0 %2873
        %2875 = vrot.lane.b32.xlu0 %v2830, 126
        %v2876 = vpop.permute.xlu0 %2875
        %2877 = vrot.lane.b32.xlu0 %v2831, 126
        %v2878 = vpop.permute.xlu0 %2877
        %2879 = vrot.lane.b32.xlu0 %v2832, 126
        %v2880 = vpop.permute.xlu0 %2879
        %v2897 = vadd.f32 %v2801, %v2850
        %v2898 = vadd.f32 %v2802, %v2852
        %v2899 = vadd.f32 %v2803, %v2854
        %v2900 = vadd.f32 %v2804, %v2856
        %v2901 = vadd.f32 %v2805, %v2858
        %v2902 = vadd.f32 %v2806, %v2860
        %v2903 = vadd.f32 %v2807, %v2862
        %v2904 = vadd.f32 %v2808, %v2864
        %v2905 = vadd.f32 %v2809, %v2866
        %v2906 = vadd.f32 %v2810, %v2868
        %v2907 = vadd.f32 %v2811, %v2870
        %v2908 = vadd.f32 %v2812, %v2872
        %v2909 = vadd.f32 %v2813, %v2874
        %v2910 = vadd.f32 %v2814, %v2876
        %v2911 = vadd.f32 %v2815, %v2878
        %v2912 = vadd.f32 %v2816, %v2880
        %v2913 = vmul.f32 %v2673, %v407
        %v2914 = vmul.f32 %v2674, %v407
        %v2915 = vmul.f32 %v2675, %v407
        %v2916 = vmul.f32 %v2676, %v407
        %v2917 = vmul.f32 %v2677, %v407
        %v2918 = vmul.f32 %v2678, %v407
        %v2919 = vmul.f32 %v2679, %v407
        %v2920 = vmul.f32 %v2680, %v407
        %v2921 = vmul.f32 %v2681, %v407
        %v2922 = vmul.f32 %v2682, %v407
        %v2923 = vmul.f32 %v2683, %v407
        %v2924 = vmul.f32 %v2684, %v407
        %v2925 = vmul.f32 %v2685, %v407
        %v2926 = vmul.f32 %v2686, %v407
        %v2927 = vmul.f32 %v2687, %v407
        %v2928 = vmul.f32 %v2688, %v407
        %v2929 = vmul.f32 %v2673, %v424
        %v2930 = vmul.f32 %v2674, %v424
        %v2931 = vmul.f32 %v2675, %v424
        %v2932 = vmul.f32 %v2676, %v424
        %v2933 = vmul.f32 %v2677, %v424
        %v2934 = vmul.f32 %v2678, %v424
        %v2935 = vmul.f32 %v2679, %v424
        %v2936 = vmul.f32 %v2680, %v424
        %v2937 = vmul.f32 %v2681, %v424
        %v2938 = vmul.f32 %v2682, %v424
        %v2939 = vmul.f32 %v2683, %v424
        %v2940 = vmul.f32 %v2684, %v424
        %v2941 = vmul.f32 %v2685, %v424
        %v2942 = vmul.f32 %v2686, %v424
        %v2943 = vmul.f32 %v2687, %v424
        %v2944 = vmul.f32 %v2688, %v424
        %2961 = vrot.lane.b32.xlu0 %v2929, 127
        %v2962 = vpop.permute.xlu0 %2961
        %2963 = vrot.lane.b32.xlu0 %v2930, 127
        %v2964 = vpop.permute.xlu0 %2963
        %2965 = vrot.lane.b32.xlu0 %v2931, 127
        %v2966 = vpop.permute.xlu0 %2965
        %2967 = vrot.lane.b32.xlu0 %v2932, 127
        %v2968 = vpop.permute.xlu0 %2967
        %2969 = vrot.lane.b32.xlu0 %v2933, 127
        %v2970 = vpop.permute.xlu0 %2969
        %2971 = vrot.lane.b32.xlu0 %v2934, 127
        %v2972 = vpop.permute.xlu0 %2971
        %2973 = vrot.lane.b32.xlu0 %v2935, 127
        %v2974 = vpop.permute.xlu0 %2973
        %2975 = vrot.lane.b32.xlu0 %v2936, 127
        %v2976 = vpop.permute.xlu0 %2975
        %2977 = vrot.lane.b32.xlu0 %v2937, 127
        %v2978 = vpop.permute.xlu0 %2977
        %2979 = vrot.lane.b32.xlu0 %v2938, 127
        %v2980 = vpop.permute.xlu0 %2979
        %2981 = vrot.lane.b32.xlu0 %v2939, 127
        %v2982 = vpop.permute.xlu0 %2981
        %2983 = vrot.lane.b32.xlu0 %v2940, 127
        %v2984 = vpop.permute.xlu0 %2983
        %2985 = vrot.lane.b32.xlu0 %v2941, 127
        %v2986 = vpop.permute.xlu0 %2985
        %2987 = vrot.lane.b32.xlu0 %v2942, 127
        %v2988 = vpop.permute.xlu0 %2987
        %2989 = vrot.lane.b32.xlu0 %v2943, 127
        %v2990 = vpop.permute.xlu0 %2989
        %2991 = vrot.lane.b32.xlu0 %v2944, 127
        %v2992 = vpop.permute.xlu0 %2991
        %v3009 = vadd.f32 %v2913, %v2962
        %v3010 = vadd.f32 %v2914, %v2964
        %v3011 = vadd.f32 %v2915, %v2966
        %v3012 = vadd.f32 %v2916, %v2968
        %v3013 = vadd.f32 %v2917, %v2970
        %v3014 = vadd.f32 %v2918, %v2972
        %v3015 = vadd.f32 %v2919, %v2974
        %v3016 = vadd.f32 %v2920, %v2976
        %v3017 = vadd.f32 %v2921, %v2978
        %v3018 = vadd.f32 %v2922, %v2980
        %v3019 = vadd.f32 %v2923, %v2982
        %v3020 = vadd.f32 %v2924, %v2984
        %v3021 = vadd.f32 %v2925, %v2986
        %v3022 = vadd.f32 %v2926, %v2988
        %v3023 = vadd.f32 %v2927, %v2990
        %v3024 = vadd.f32 %v2928, %v2992
        %v3025 = vmul.f32 %v2673, %v521
        %v3026 = vmul.f32 %v2674, %v521
        %v3027 = vmul.f32 %v2675, %v521
        %v3028 = vmul.f32 %v2676, %v521
        %v3029 = vmul.f32 %v2677, %v521
        %v3030 = vmul.f32 %v2678, %v521
        %v3031 = vmul.f32 %v2679, %v521
        %v3032 = vmul.f32 %v2680, %v521
        %v3033 = vmul.f32 %v2681, %v521
        %v3034 = vmul.f32 %v2682, %v521
        %v3035 = vmul.f32 %v2683, %v521
        %v3036 = vmul.f32 %v2684, %v521
        %v3037 = vmul.f32 %v2685, %v521
        %v3038 = vmul.f32 %v2686, %v521
        %v3039 = vmul.f32 %v2687, %v521
        %v3040 = vmul.f32 %v2688, %v521
        %3057 = vrot.lane.b32.xlu0 %v3025, 126
        %v3058 = vpop.permute.xlu0 %3057
        %3059 = vrot.lane.b32.xlu0 %v3026, 126
        %v3060 = vpop.permute.xlu0 %3059
        %3061 = vrot.lane.b32.xlu0 %v3027, 126
        %v3062 = vpop.permute.xlu0 %3061
        %3063 = vrot.lane.b32.xlu0 %v3028, 126
        %v3064 = vpop.permute.xlu0 %3063
        %3065 = vrot.lane.b32.xlu0 %v3029, 126
        %v3066 = vpop.permute.xlu0 %3065
        %3067 = vrot.lane.b32.xlu0 %v3030, 126
        %v3068 = vpop.permute.xlu0 %3067
        %3069 = vrot.lane.b32.xlu0 %v3031, 126
        %v3070 = vpop.permute.xlu0 %3069
        %3071 = vrot.lane.b32.xlu0 %v3032, 126
        %v3072 = vpop.permute.xlu0 %3071
        %3073 = vrot.lane.b32.xlu0 %v3033, 126
        %v3074 = vpop.permute.xlu0 %3073
        %3075 = vrot.lane.b32.xlu0 %v3034, 126
        %v3076 = vpop.permute.xlu0 %3075
        %3077 = vrot.lane.b32.xlu0 %v3035, 126
        %v3078 = vpop.permute.xlu0 %3077
        %3079 = vrot.lane.b32.xlu0 %v3036, 126
        %v3080 = vpop.permute.xlu0 %3079
        %3081 = vrot.lane.b32.xlu0 %v3037, 126
        %v3082 = vpop.permute.xlu0 %3081
        %3083 = vrot.lane.b32.xlu0 %v3038, 126
        %v3084 = vpop.permute.xlu0 %3083
        %3085 = vrot.lane.b32.xlu0 %v3039, 126
        %v3086 = vpop.permute.xlu0 %3085
        %3087 = vrot.lane.b32.xlu0 %v3040, 126
        %v3088 = vpop.permute.xlu0 %3087
        %v3105 = vadd.f32 %v3009, %v3058
        %v3106 = vadd.f32 %v3010, %v3060
        %v3107 = vadd.f32 %v3011, %v3062
        %v3108 = vadd.f32 %v3012, %v3064
        %v3109 = vadd.f32 %v3013, %v3066
        %v3110 = vadd.f32 %v3014, %v3068
        %v3111 = vadd.f32 %v3015, %v3070
        %v3112 = vadd.f32 %v3016, %v3072
        %v3113 = vadd.f32 %v3017, %v3074
        %v3114 = vadd.f32 %v3018, %v3076
        %v3115 = vadd.f32 %v3019, %v3078
        %v3116 = vadd.f32 %v3020, %v3080
        %v3117 = vadd.f32 %v3021, %v3082
        %v3118 = vadd.f32 %v3022, %v3084
        %v3119 = vadd.f32 %v3023, %v3086
        %v3120 = vadd.f32 %v3024, %v3088
        %v3121 = vsub.f32 %v3105, %v2897
        %v3122 = vsub.f32 %v3106, %v2898
        %v3123 = vsub.f32 %v3107, %v2899
        %v3124 = vsub.f32 %v3108, %v2900
        %v3125 = vsub.f32 %v3109, %v2901
        %v3126 = vsub.f32 %v3110, %v2902
        %v3127 = vsub.f32 %v3111, %v2903
        %v3128 = vsub.f32 %v3112, %v2904
        %v3129 = vsub.f32 %v3113, %v2905
        %v3130 = vsub.f32 %v3114, %v2906
        %v3131 = vsub.f32 %v3115, %v2907
        %v3132 = vsub.f32 %v3116, %v2908
        %v3133 = vsub.f32 %v3117, %v2909
        %v3134 = vsub.f32 %v3118, %v2910
        %v3135 = vsub.f32 %v3119, %v2911
        %v3136 = vsub.f32 %v3120, %v2912
        %v3137 = vmul.f32 %v3121, %v3121
        %v3138 = vmul.f32 %v3122, %v3122
        %v3139 = vmul.f32 %v3123, %v3123
        %v3140 = vmul.f32 %v3124, %v3124
        %v3141 = vmul.f32 %v3125, %v3125
        %v3142 = vmul.f32 %v3126, %v3126
        %v3143 = vmul.f32 %v3127, %v3127
        %v3144 = vmul.f32 %v3128, %v3128
        %v3145 = vmul.f32 %v3129, %v3129
        %v3146 = vmul.f32 %v3130, %v3130
        %v3147 = vmul.f32 %v3131, %v3131
        %v3148 = vmul.f32 %v3132, %v3132
        %v3149 = vmul.f32 %v3133, %v3133
        %v3150 = vmul.f32 %v3134, %v3134
        %v3151 = vmul.f32 %v3135, %v3135
        %v3152 = vmul.f32 %v3136, %v3136
        %v3153 = vsel %vm2335, %v3137, 0.0
        %v3154 = vsel %vm2335, %v3138, 0.0
        %v3155 = vadd.f32 %v3153, %v3154
        %v3156 = vsel %vm2335, %v3139, 0.0
        %v3157 = vadd.f32 %v3155, %v3156
        %v3158 = vsel %vm2335, %v3140, 0.0
        %v3159 = vadd.f32 %v3157, %v3158
        %v3160 = vsel %vm2335, %v3141, 0.0
        %v3161 = vadd.f32 %v3159, %v3160
        %v3162 = vsel %vm2335, %v3142, 0.0
        %v3163 = vadd.f32 %v3161, %v3162
        %v3164 = vsel %vm2335, %v3143, 0.0
        %v3165 = vadd.f32 %v3163, %v3164
        %v3166 = vsel %vm2335, %v3144, 0.0
        %v3167 = vadd.f32 %v3165, %v3166
        %v3168 = vsel %vm2335, %v3145, 0.0
        %v3169 = vadd.f32 %v3167, %v3168
        %v3170 = vsel %vm2335, %v3146, 0.0
        %v3171 = vadd.f32 %v3169, %v3170
        %v3172 = vsel %vm2335, %v3147, 0.0
        %v3173 = vadd.f32 %v3171, %v3172
        %v3174 = vsel %vm2335, %v3148, 0.0
        %v3175 = vadd.f32 %v3173, %v3174
        %v3176 = vsel %vm2335, %v3149, 0.0
        %v3177 = vadd.f32 %v3175, %v3176
        %v3178 = vsel %vm2335, %v3150, 0.0
        %v3179 = vadd.f32 %v3177, %v3178
        %v3180 = vsel %vm2335, %v3151, 0.0
        %v3181 = vadd.f32 %v3179, %v3180
        %v3182 = vsel %vm2335, %v3152, 0.0
        %v3183 = vadd.f32 %v3181, %v3182
        %3184 = vadd.xlane.f32.xlu0 %v3183
        %v3185 = vpop.xlane.xlu0 %3184
        %v3186 = vrot.slane %v3185, 4
        %v3187 = vadd.f32 %v3185, %v3186
        %v3188 = vrot.slane %v3187, 2
        %v3189 = vadd.f32 %v3187, %v3188
        %v3190 = vrot.slane %v3189, 1
        %v3191 = vadd.f32 %v3189, %v3190
        %s3192 = vtos %v3191
        %v3193 = vstv %s271
        %vm3194 = vcmp.le.f32.partialorder %v2897, %v3193
        %vm3195 = vcmp.le.f32.partialorder %v2898, %v3193
        %vm3196 = vcmp.le.f32.partialorder %v2899, %v3193
        %vm3197 = vcmp.le.f32.partialorder %v2900, %v3193
        %vm3198 = vcmp.le.f32.partialorder %v2901, %v3193
        %vm3199 = vcmp.le.f32.partialorder %v2902, %v3193
        %vm3200 = vcmp.le.f32.partialorder %v2903, %v3193
        %vm3201 = vcmp.le.f32.partialorder %v2904, %v3193
        %vm3202 = vcmp.le.f32.partialorder %v2905, %v3193
        %vm3203 = vcmp.le.f32.partialorder %v2906, %v3193
        %vm3204 = vcmp.le.f32.partialorder %v2907, %v3193
        %vm3205 = vcmp.le.f32.partialorder %v2908, %v3193
        %vm3206 = vcmp.le.f32.partialorder %v2909, %v3193
        %vm3207 = vcmp.le.f32.partialorder %v2910, %v3193
        %vm3208 = vcmp.le.f32.partialorder %v2911, %v3193
        %vm3209 = vcmp.le.f32.partialorder %v2912, %v3193
        %v3210 = vstv %s272
        %vm3211 = vcmp.ge.f32.partialorder %v2897, %v3210
        %vm3212 = vcmp.ge.f32.partialorder %v2898, %v3210
        %vm3213 = vcmp.ge.f32.partialorder %v2899, %v3210
        %vm3214 = vcmp.ge.f32.partialorder %v2900, %v3210
        %vm3215 = vcmp.ge.f32.partialorder %v2901, %v3210
        %vm3216 = vcmp.ge.f32.partialorder %v2902, %v3210
        %vm3217 = vcmp.ge.f32.partialorder %v2903, %v3210
        %vm3218 = vcmp.ge.f32.partialorder %v2904, %v3210
        %vm3219 = vcmp.ge.f32.partialorder %v2905, %v3210
        %vm3220 = vcmp.ge.f32.partialorder %v2906, %v3210
        %vm3221 = vcmp.ge.f32.partialorder %v2907, %v3210
        %vm3222 = vcmp.ge.f32.partialorder %v2908, %v3210
        %vm3223 = vcmp.ge.f32.partialorder %v2909, %v3210
        %vm3224 = vcmp.ge.f32.partialorder %v2910, %v3210
        %vm3225 = vcmp.ge.f32.partialorder %v2911, %v3210
        %vm3226 = vcmp.ge.f32.partialorder %v2912, %v3210
        %vm3227 = vmor %vm3194, %vm3211
        %vm3228 = vmor %vm3195, %vm3212
        %vm3229 = vmor %vm3196, %vm3213
        %vm3230 = vmor %vm3197, %vm3214
        %vm3231 = vmor %vm3198, %vm3215
        %vm3232 = vmor %vm3199, %vm3216
        %vm3233 = vmor %vm3200, %vm3217
        %vm3234 = vmor %vm3201, %vm3218
        %vm3235 = vmor %vm3202, %vm3219
        %vm3236 = vmor %vm3203, %vm3220
        %vm3237 = vmor %vm3204, %vm3221
        %vm3238 = vmor %vm3205, %vm3222
        %vm3239 = vmor %vm3206, %vm3223
        %vm3240 = vmor %vm3207, %vm3224
        %vm3241 = vmor %vm3208, %vm3225
        %vm3242 = vmor %vm3209, %vm3226
        %v3243 = vsel %vm3227, 1, 0
        %v3244 = vsel %vm3228, 1, 0
        %v3245 = vsel %vm3229, 1, 0
        %v3246 = vsel %vm3230, 1, 0
        %v3247 = vsel %vm3231, 1, 0
        %v3248 = vsel %vm3232, 1, 0
        %v3249 = vsel %vm3233, 1, 0
        %v3250 = vsel %vm3234, 1, 0
        %v3251 = vsel %vm3235, 1, 0
        %v3252 = vsel %vm3236, 1, 0
        %v3253 = vsel %vm3237, 1, 0
        %v3254 = vsel %vm3238, 1, 0
        %v3255 = vsel %vm3239, 1, 0
        %v3256 = vsel %vm3240, 1, 0
        %v3257 = vsel %vm3241, 1, 0
        %v3258 = vsel %vm3242, 1, 0
        %v3259 = vcvt.s32.f32 %v3243
        %v3260 = vcvt.s32.f32 %v3244
        %v3261 = vcvt.s32.f32 %v3245
        %v3262 = vcvt.s32.f32 %v3246
        %v3263 = vcvt.s32.f32 %v3247
        %v3264 = vcvt.s32.f32 %v3248
        %v3265 = vcvt.s32.f32 %v3249
        %v3266 = vcvt.s32.f32 %v3250
        %v3267 = vcvt.s32.f32 %v3251
        %v3268 = vcvt.s32.f32 %v3252
        %v3269 = vcvt.s32.f32 %v3253
        %v3270 = vcvt.s32.f32 %v3254
        %v3271 = vcvt.s32.f32 %v3255
        %v3272 = vcvt.s32.f32 %v3256
        %v3273 = vcvt.s32.f32 %v3257
        %v3274 = vcvt.s32.f32 %v3258
        %v3275 = vsub.f32 %v2689, %v2673
        %v3276 = vsub.f32 %v2690, %v2674
        %v3277 = vsub.f32 %v2691, %v2675
        %v3278 = vsub.f32 %v2692, %v2676
        %v3279 = vsub.f32 %v2693, %v2677
        %v3280 = vsub.f32 %v2694, %v2678
        %v3281 = vsub.f32 %v2695, %v2679
        %v3282 = vsub.f32 %v2696, %v2680
        %v3283 = vsub.f32 %v2697, %v2681
        %v3284 = vsub.f32 %v2698, %v2682
        %v3285 = vsub.f32 %v2699, %v2683
        %v3286 = vsub.f32 %v2700, %v2684
        %v3287 = vsub.f32 %v2701, %v2685
        %v3288 = vsub.f32 %v2702, %v2686
        %v3289 = vsub.f32 %v2703, %v2687
        %v3290 = vsub.f32 %v2704, %v2688
        %v3291 = vmul.f32 %v3275, %v3275
        %v3292 = vmul.f32 %v3276, %v3276
        %v3293 = vmul.f32 %v3277, %v3277
        %v3294 = vmul.f32 %v3278, %v3278
        %v3295 = vmul.f32 %v3279, %v3279
        %v3296 = vmul.f32 %v3280, %v3280
        %v3297 = vmul.f32 %v3281, %v3281
        %v3298 = vmul.f32 %v3282, %v3282
        %v3299 = vmul.f32 %v3283, %v3283
        %v3300 = vmul.f32 %v3284, %v3284
        %v3301 = vmul.f32 %v3285, %v3285
        %v3302 = vmul.f32 %v3286, %v3286
        %v3303 = vmul.f32 %v3287, %v3287
        %v3304 = vmul.f32 %v3288, %v3288
        %v3305 = vmul.f32 %v3289, %v3289
        %v3306 = vmul.f32 %v3290, %v3290
        %vm3307 = vcmask 23552
        %v3308 = vsel %vm3307, %v3291, 0.0
        %3309 = vadd.xlane.f32.xlu0 %v3308
        %v3310 = vpop.xlane.xlu0 %3309
        %v3311 = vsel %vm3307, %v3292, 0.0
        %3312 = vadd.xlane.f32.xlu0 %v3311
        %v3313 = vpop.xlane.xlu0 %3312
        %v3314 = vsel %vm3307, %v3293, 0.0
        %3315 = vadd.xlane.f32.xlu0 %v3314
        %v3316 = vpop.xlane.xlu0 %3315
        %v3317 = vsel %vm3307, %v3294, 0.0
        %3318 = vadd.xlane.f32.xlu0 %v3317
        %v3319 = vpop.xlane.xlu0 %3318
        %v3320 = vsel %vm3307, %v3295, 0.0
        %3321 = vadd.xlane.f32.xlu0 %v3320
        %v3322 = vpop.xlane.xlu0 %3321
        %v3323 = vsel %vm3307, %v3296, 0.0
        %3324 = vadd.xlane.f32.xlu0 %v3323
        %v3325 = vpop.xlane.xlu0 %3324
        %v3326 = vsel %vm3307, %v3297, 0.0
        %3327 = vadd.xlane.f32.xlu0 %v3326
        %v3328 = vpop.xlane.xlu0 %3327
        %v3329 = vsel %vm3307, %v3298, 0.0
        %3330 = vadd.xlane.f32.xlu0 %v3329
        %v3331 = vpop.xlane.xlu0 %3330
        %v3332 = vsel %vm3307, %v3299, 0.0
        %3333 = vadd.xlane.f32.xlu0 %v3332
        %v3334 = vpop.xlane.xlu0 %3333
        %v3335 = vsel %vm3307, %v3300, 0.0
        %3336 = vadd.xlane.f32.xlu0 %v3335
        %v3337 = vpop.xlane.xlu0 %3336
        %v3338 = vsel %vm3307, %v3301, 0.0
        %3339 = vadd.xlane.f32.xlu0 %v3338
        %v3340 = vpop.xlane.xlu0 %3339
        %v3341 = vsel %vm3307, %v3302, 0.0
        %3342 = vadd.xlane.f32.xlu0 %v3341
        %v3343 = vpop.xlane.xlu0 %3342
        %v3344 = vsel %vm3307, %v3303, 0.0
        %3345 = vadd.xlane.f32.xlu0 %v3344
        %v3346 = vpop.xlane.xlu0 %3345
        %v3347 = vsel %vm3307, %v3304, 0.0
        %3348 = vadd.xlane.f32.xlu0 %v3347
        %v3349 = vpop.xlane.xlu0 %3348
        %v3350 = vsel %vm3307, %v3305, 0.0
        %3351 = vadd.xlane.f32.xlu0 %v3350
        %v3352 = vpop.xlane.xlu0 %3351
        %v3353 = vsel %vm3307, %v3306, 0.0
        %3354 = vadd.xlane.f32.xlu0 %v3353
        %v3355 = vpop.xlane.xlu0 %3354
        %v3356 = vmul.f32 %v3259, %v3310
        %v3357 = vmul.f32 %v3260, %v3313
        %v3358 = vmul.f32 %v3261, %v3316
        %v3359 = vmul.f32 %v3262, %v3319
        %v3360 = vmul.f32 %v3263, %v3322
        %v3361 = vmul.f32 %v3264, %v3325
        %v3362 = vmul.f32 %v3265, %v3328
        %v3363 = vmul.f32 %v3266, %v3331
        %v3364 = vmul.f32 %v3267, %v3334
        %v3365 = vmul.f32 %v3268, %v3337
        %v3366 = vmul.f32 %v3269, %v3340
        %v3367 = vmul.f32 %v3270, %v3343
        %v3368 = vmul.f32 %v3271, %v3346
        %v3369 = vmul.f32 %v3272, %v3349
        %v3370 = vmul.f32 %v3273, %v3352
        %v3371 = vmul.f32 %v3274, %v3355
        %v3372 = vsel %vm2335, %v3356, 0.0
        %v3373 = vsel %vm2335, %v3357, 0.0
        %v3374 = vadd.f32 %v3372, %v3373
        %v3375 = vsel %vm2335, %v3358, 0.0
        %v3376 = vadd.f32 %v3374, %v3375
        %v3377 = vsel %vm2335, %v3359, 0.0
        %v3378 = vadd.f32 %v3376, %v3377
        %v3379 = vsel %vm2335, %v3360, 0.0
        %v3380 = vadd.f32 %v3378, %v3379
        %v3381 = vsel %vm2335, %v3361, 0.0
        %v3382 = vadd.f32 %v3380, %v3381
        %v3383 = vsel %vm2335, %v3362, 0.0
        %v3384 = vadd.f32 %v3382, %v3383
        %v3385 = vsel %vm2335, %v3363, 0.0
        %v3386 = vadd.f32 %v3384, %v3385
        %v3387 = vsel %vm2335, %v3364, 0.0
        %v3388 = vadd.f32 %v3386, %v3387
        %v3389 = vsel %vm2335, %v3365, 0.0
        %v3390 = vadd.f32 %v3388, %v3389
        %v3391 = vsel %vm2335, %v3366, 0.0
        %v3392 = vadd.f32 %v3390, %v3391
        %v3393 = vsel %vm2335, %v3367, 0.0
        %v3394 = vadd.f32 %v3392, %v3393
        %v3395 = vsel %vm2335, %v3368, 0.0
        %v3396 = vadd.f32 %v3394, %v3395
        %v3397 = vsel %vm2335, %v3369, 0.0
        %v3398 = vadd.f32 %v3396, %v3397
        %v3399 = vsel %vm2335, %v3370, 0.0
        %v3400 = vadd.f32 %v3398, %v3399
        %v3401 = vsel %vm2335, %v3371, 0.0
        %v3402 = vadd.f32 %v3400, %v3401
        %3403 = vadd.xlane.f32.xlu0 %v3402
        %v3404 = vpop.xlane.xlu0 %3403
        %v3405 = vrot.slane %v3404, 4
        %v3406 = vadd.f32 %v3404, %v3405
        %v3407 = vrot.slane %v3406, 2
        %v3408 = vadd.f32 %v3406, %v3407
        %v3409 = vrot.slane %v3408, 1
        %v3410 = vadd.f32 %v3408, %v3409
        %s3411 = vtos %v3410
        %v3412 = vld [vmem:[#allocation4] sm:$0xff]
        %v3413 = vstv %s2659
        %v3414 = vstv %s2672
        %v3415 = vstv %s3192
        %v3416 = vstv %s3411
        %v3418 = vrot.slane %v3412, 7
        %v3420 = vrot.slane %v3412, 6
        %v3422 = vsel %vm2628, %v3412, %v3413
        %v3423 = vsel %vm2630, %v3422, %v3418
        %v3424 = vsel %vm2632, %v3423, %v3414
        %v3425 = vsel %vm2634, %v3424, %v3420
        %v3426 = vsel %vm2636, %v3425, %v3415
        %v3427 = vsel %vm2638, %v3426, %v3416
        %v3428 = vsel %vm2640, %v3427, 0.0
        %3429 = vst [vmem:[%s7] sm:$0xff] %v3428
      $region52: #{_lambda_.1} parent=43 // pred_fallthru
        _
      // Predicated region
      $region53: #{_lambda_.1} parent=43 // pred_check
        %p3430 = pneg %p173
      $region54: #{_lambda_.1} parent=43 // pred_check_branch
        %3432 = sbr.rel (%p3430) target = $region56
      $region55: #{_lambda_.1} parent=43 // pred_region
        _
      $region56: #{_lambda_.1} parent=43 // pred_fallthru
        _
      // Predicated region
      $region57: #{_lambda_.1} parent=43 // pred_check
        %p3433 = pneg %p173
      $region58: #{_lambda_.1} parent=43 // pred_check_branch
        %3435 = sbr.rel (%p3433) target = $region60
      $region59: #{_lambda_.1} parent=43 // pred_region
        _
      $region60: #{_lambda_.1} parent=43 // pred_fallthru
        _
    $region44: #{_lambda_.1} parent=5 // pred_fallthru
      _
    %p3436 = scmp.le.s32.totalorder 2, %s19
    // Predicated region
    $region61: #{_lambda_.1} parent=5 // pred_check
      %p3437 = pneg %p3436
    $region62: #{_lambda_.1} parent=5 // pred_check_branch
      %3439 = sbr.rel (%p3437) target = $region64
    $region63: #{_lambda_.1} parent=5 // pred_region
      %s3440 = ssub.s32 %s19, 2
    $region64: #{_lambda_.1} parent=5 // pred_fallthru
      _
  $region6: #{_lambda_.1} parent=0 // loop_footer
    %s23 = sadd.s32 1, %s19
  $region7: #{_lambda_.1} parent=0 // loop_footer_branch
    %18 = sbr.rel target = $region3
  $region8: #{_lambda_.1} parent=0 // loop_exit
    _

</llo_original>
